<compile_context>
chip_gen: v5e
topology: v5e:2x2
jax: 0.10.0
libtpu: 0.0.40
codegen_flags: <defaults>
</compile_context>

<pallas_src>
import functools

import numpy as np
import jax
import jax.numpy as jnp
from jax.experimental import pallas as pl
from jax.experimental.pallas import tpu as pltpu


MAX_ROW_TILE = 2048
VMEM_LIMIT = 48 * 1024 * 1024          # explicit scoped-VMEM limit (< v7x 64 MiB)

_CP_ROWS = pltpu.CompilerParams(dimension_semantics=("parallel",),
                                vmem_limit_bytes=VMEM_LIMIT)
_CP_SEG = pltpu.CompilerParams(dimension_semantics=("parallel", "arbitrary"),
                               vmem_limit_bytes=VMEM_LIMIT)


# ----------------------------------------------------------------------------
# helpers
# ----------------------------------------------------------------------------
def _cdiv(a, b):
    return (a + b - 1) // b


def _round_up(x, m):
    return ((x + m - 1) // m) * m


def _row_grid(m):
    """Row tile + #blocks; >=2 blocks when rows permit (v7x megacore)."""
    if m <= 8:
        return m, 1
    tile = min(MAX_ROW_TILE, _round_up(_cdiv(m, 2), 8))
    return tile, _cdiv(m, tile)


# ----------------------------------------------------------------------------
# Pallas kernels
# ----------------------------------------------------------------------------
def _linear_kernel(x_ref, w_ref, b_ref, o_ref, *, act):
    y = jnp.dot(x_ref[...].astype(jnp.bfloat16), w_ref[...],
                preferred_element_type=jnp.float32) + b_ref[...]
    if act == "silu":
        y = y * jax.nn.sigmoid(y)
    o_ref[...] = y


def linear_p(x, w, b, act=None):
    """y = act(x @ w + b); weights resident, rows tiled (ragged tail masked)."""
    M, K = x.shape
    Nf = w.shape[1]
    tile, n_blk = _row_grid(M)
    return pl.pallas_call(
        functools.partial(_linear_kernel, act=act),
        out_shape=jax.ShapeDtypeStruct((M, Nf), jnp.float32),
        grid=(n_blk,),
        in_specs=[pl.BlockSpec((tile, K), lambda i: (i, 0)),
                  pl.BlockSpec((K, Nf), lambda i: (0, 0)),
                  pl.BlockSpec((1, Nf), lambda i: (0, 0))],
        out_specs=pl.BlockSpec((tile, Nf), lambda i: (i, 0)),
        compiler_params=_CP_ROWS,
    )(x, w, b.reshape(1, Nf))


def _ln_linear_kernel(xv_ref, lnw_ref, lnb_ref, w_ref, b_ref, o_ref):
    # LayerNorm over the first H lanes of the packed [x | vec] state, fused
    # with the following projection (per-layer qkv / final out_norm + proj).
    H = lnw_ref.shape[1]
    x = xv_ref[:, :H]
    mu = jnp.mean(x, axis=-1, keepdims=True)
    xc = x - mu
    var = jnp.mean(xc * xc, axis=-1, keepdims=True)
    xn = xc * jax.lax.rsqrt(var + 1e-5) * lnw_ref[...] + lnb_ref[...]
    o_ref[...] = jnp.dot(xn.astype(jnp.bfloat16), w_ref[...],
                         preferred_element_type=jnp.float32) + b_ref[...]


def ln_linear_p(xv, ln_w, ln_b, w, b):
    M, Kp = xv.shape
    H = ln_w.shape[0]
    Nf = w.shape[1]
    tile, n_blk = _row_grid(M)
    return pl.pallas_call(
        _ln_linear_kernel,
        out_shape=jax.ShapeDtypeStruct((M, Nf), jnp.float32),
        grid=(n_blk,),
        in_specs=[pl.BlockSpec((tile, Kp), lambda i: (i, 0)),
                  pl.BlockSpec((1, H), lambda i: (0, 0)),
                  pl.BlockSpec((1, H), lambda i: (0, 0)),
                  pl.BlockSpec((H, Nf), lambda i: (0, 0)),
                  pl.BlockSpec((1, Nf), lambda i: (0, 0))],
        out_specs=pl.BlockSpec((tile, Nf), lambda i: (i, 0)),
        compiler_params=_CP_ROWS,
    )(xv, ln_w.reshape(1, H), ln_b.reshape(1, H), w, b.reshape(1, Nf))


def _nbr_msg_kernel(ef_ref, xj_ref, aux_ref, w_ref, b_ref, o_ref, *, cutoff_upper):
    # NeighborEmbedding message: x_j * distance_proj(e_fea) * cutoff * nonself
    Wn = jnp.dot(ef_ref[...].astype(jnp.bfloat16), w_ref[...],
                 preferred_element_type=jnp.float32) + b_ref[...]
    aux = aux_ref[...]                                   # [T,5]=(d0,d1,d2,r,ns)
    r = aux[:, 3:4]
    c = 0.5 * (jnp.cos(r * (jnp.pi / cutoff_upper)) + 1.0)
    c = jnp.where(r < cutoff_upper, c, 0.0) * aux[:, 4:5]
    o_ref[...] = xj_ref[...] * Wn * c


def nbr_msg_p(e_fea, x_nbr_j, edge_aux, dist_w, dist_b, cutoff_upper):
    E, R = e_fea.shape
    H = dist_w.shape[1]
    tile, n_blk = _row_grid(E)
    return pl.pallas_call(
        functools.partial(_nbr_msg_kernel, cutoff_upper=cutoff_upper),
        out_shape=jax.ShapeDtypeStruct((E, H), jnp.float32),
        grid=(n_blk,),
        in_specs=[pl.BlockSpec((tile, R), lambda i: (i, 0)),
                  pl.BlockSpec((tile, H), lambda i: (i, 0)),
                  pl.BlockSpec((tile, 5), lambda i: (i, 0)),
                  pl.BlockSpec((R, H), lambda i: (0, 0)),
                  pl.BlockSpec((1, H), lambda i: (0, 0))],
        out_specs=pl.BlockSpec((tile, H), lambda i: (i, 0)),
        compiler_params=_CP_ROWS,
    )(e_fea, x_nbr_j, edge_aux, dist_w, dist_b.reshape(1, H))


def _nbr_comb_kernel(x_ref, xn_ref, w_ref, b_ref, o_ref):
    # combination(cat([x, x_neighbors])) -> packed [x | vec=0] state slab.
    H = x_ref.shape[1]
    xcat = jnp.concatenate([x_ref[...], xn_ref[...]], axis=-1)
    y = jnp.dot(xcat.astype(jnp.bfloat16), w_ref[...],
                preferred_element_type=jnp.float32) + b_ref[...]
    o_ref[...] = jnp.concatenate(
        [y, jnp.zeros((y.shape[0], 3 * H), jnp.float32)], axis=-1)


def nbr_comb_p(x, x_neighbors, comb_w, comb_b):
    N, H = x.shape
    tile, n_blk = _row_grid(N)
    return pl.pallas_call(
        _nbr_comb_kernel,
        out_shape=jax.ShapeDtypeStruct((N, 4 * H), jnp.float32),
        grid=(n_blk,),
        in_specs=[pl.BlockSpec((tile, H), lambda i: (i, 0)),
                  pl.BlockSpec((tile, H), lambda i: (i, 0)),
                  pl.BlockSpec((2 * H, H), lambda i: (0, 0)),
                  pl.BlockSpec((1, H), lambda i: (0, 0))],
        out_specs=pl.BlockSpec((tile, 4 * H), lambda i: (i, 0)),
        compiler_params=_CP_ROWS,
    )(x, x_neighbors, comb_w, comb_b.reshape(1, H))


def _edge_msg_kernel(q_ref, sj_ref, dkv_ref, aux_ref, hm_ref, o_ref, *, cutoff_upper):
    # Per-edge equivariant multi-head attention message, lane-dense 2-D.
    # sj = gathered source slab [k | v(3H) | vec(3H)], dkv = [dk | dv(3H)].
    # hm = block-diagonal [H,H] ones: (q*k*dk) @ hm == per-head sum broadcast
    # back across the head's lanes.
    H = q_ref.shape[1]
    sj = sj_ref[...]
    dkv = dkv_ref[...]
    qk = q_ref[...] * sj[:, :H] * dkv[:, :H]
    head_sum = jnp.dot(qk.astype(jnp.bfloat16), hm_ref[...],
                       preferred_element_type=jnp.float32)
    attn = head_sum * jax.nn.sigmoid(head_sum)           # SiLU attention act
    aux = aux_ref[...]                                   # (d0,d1,d2,r,nonself)
    r = aux[:, 3:4]
    c = 0.5 * (jnp.cos(r * (jnp.pi / cutoff_upper)) + 1.0)
    c = jnp.where(r < cutoff_upper, c, 0.0)
    attn = attn * c

    v = sj[:, H:4 * H] * dkv[:, H:]                      # dist-influenced values
    vj = sj[:, 4 * H:]
    xmsg = v[:, :H] * attn
    v1 = v[:, H:2 * H]
    v2 = v[:, 2 * H:]
    vm0 = vj[:, :H] * v1 + v2 * aux[:, 0:1]
    vm1 = vj[:, H:2 * H] * v1 + v2 * aux[:, 1:2]
    vm2 = vj[:, 2 * H:] * v1 + v2 * aux[:, 2:3]
    o_ref[...] = jnp.concatenate([xmsg, vm0, vm1, vm2], axis=-1)   # [T, 4H]


def edge_message_p(q_i, s_j, dkv, edge_aux, head_mask, cutoff_upper):
    E, H = q_i.shape
    tile, n_blk = _row_grid(E)
    return pl.pallas_call(
        functools.partial(_edge_msg_kernel, cutoff_upper=cutoff_upper),
        out_shape=jax.ShapeDtypeStruct((E, 4 * H), jnp.float32),
        grid=(n_blk,),
        in_specs=[pl.BlockSpec((tile, H), lambda i: (i, 0)),
                  pl.BlockSpec((tile, 7 * H), lambda i: (i, 0)),
                  pl.BlockSpec((tile, 4 * H), lambda i: (i, 0)),
                  pl.BlockSpec((tile, 5), lambda i: (i, 0)),
                  pl.BlockSpec((H, H), lambda i: (0, 0))],
        out_specs=pl.BlockSpec((tile, 4 * H), lambda i: (i, 0)),
        compiler_params=_CP_ROWS,
    )(q_i, s_j, dkv, edge_aux, head_mask)


def _combine_kernel(agg_ref, xv_ref, ow_ref, ob_ref, vw_ref, o_ref):
    # Fused vec_proj + o_proj + residual update; state stays packed [x|vec].
    H = ow_ref.shape[0]
    agg = agg_ref[...]                                   # [T, 4H] aggregated msg
    xv = xv_ref[...]                                     # [T, 4H] layer input
    o = jnp.dot(agg[:, :H].astype(jnp.bfloat16), ow_ref[...],
                preferred_element_type=jnp.float32) + ob_ref[...]
    o1 = o[:, :H]
    o2 = o[:, H:2 * H]
    o3 = o[:, 2 * H:]
    vec_dot = jnp.zeros_like(o1)
    new_vec = []
    for a in range(3):
        vec_a = xv[:, (a + 1) * H:(a + 2) * H]
        vp = jnp.dot(vec_a.astype(jnp.bfloat16), vw_ref[...],
                     preferred_element_type=jnp.float32)          # [T, 3H]
        vec_dot = vec_dot + vp[:, :H] * vp[:, H:2 * H]
        new_vec.append(vec_a + vp[:, 2 * H:] * o1
                       + agg[:, (a + 1) * H:(a + 2) * H])
    x_new = xv[:, :H] + vec_dot * o2 + o3
    o_ref[...] = jnp.concatenate([x_new] + new_vec, axis=-1)       # [T, 4H]


def combine_p(agg, xv, o_w, o_b, vec_w):
    N = xv.shape[0]
    H = o_w.shape[0]
    tile, n_blk = _row_grid(N)
    return pl.pallas_call(
        _combine_kernel,
        out_shape=jax.ShapeDtypeStruct((N, 4 * H), jnp.float32),
        grid=(n_blk,),
        in_specs=[pl.BlockSpec((tile, 4 * H), lambda i: (i, 0)),
                  pl.BlockSpec((tile, 4 * H), lambda i: (i, 0)),
                  pl.BlockSpec((H, 3 * H), lambda i: (0, 0)),
                  pl.BlockSpec((1, 3 * H), lambda i: (0, 0)),
                  pl.BlockSpec((H, 3 * H), lambda i: (0, 0))],
        out_specs=pl.BlockSpec((tile, 4 * H), lambda i: (i, 0)),
        compiler_params=_CP_ROWS,
    )(agg, xv, o_w, o_b.reshape(1, 3 * H), vec_w)


def _segsum_kernel(dst_ref, msg_ref, o_ref, acc_ref, *, n_edges):
    # Segment-sum via one-hot matmul:  acc[n,:] += sum_e [dst_e == n] * msg[e,:]
    j = pl.program_id(1)
    tile_n = acc_ref.shape[0]
    tile_e = msg_ref.shape[0]

    @pl.when(j == 0)
    def _():
        acc_ref[...] = jnp.zeros_like(acc_ref)

    node_ids = pl.program_id(0) * tile_n + jax.lax.broadcasted_iota(
        jnp.int32, (tile_n, tile_e), 0)
    onehot = jnp.where(node_ids == dst_ref[...], 1.0, 0.0).astype(jnp.bfloat16)
    msg = msg_ref[...]
    if n_edges % tile_e != 0:
        edge_ids = j * tile_e + jax.lax.broadcasted_iota(jnp.int32, (tile_e, 1), 0)
        msg = jnp.where(edge_ids < n_edges, msg, 0.0)    # mask ragged tail block
    acc_ref[...] += jnp.dot(onehot, msg.astype(jnp.bfloat16),
                            preferred_element_type=jnp.float32)

    @pl.when(j == pl.num_programs(1) - 1)
    def _():
        o_ref[...] = acc_ref[...]


def segment_sum_p(dst_row, msg, num_nodes):
    """Scatter-add msg [E,C] into [num_nodes,C] by dst (no XLA scatter)."""
    E, C = msg.shape
    tile_e = E if E <= 2048 else 2048          # full dim or multiple of 128
    tile_n = num_nodes if num_nodes <= 1024 else 1024
    grid = (_cdiv(num_nodes, tile_n), _cdiv(E, tile_e))
    return pl.pallas_call(
        functools.partial(_segsum_kernel, n_edges=E),
        out_shape=jax.ShapeDtypeStruct((num_nodes, C), jnp.float32),
        grid=grid,
        in_specs=[pl.BlockSpec((1, tile_e), lambda i, j: (0, j)),
                  pl.BlockSpec((tile_e, C), lambda i, j: (j, 0))],
        out_specs=pl.BlockSpec((tile_n, C), lambda i, j: (i, 0)),
        scratch_shapes=[pltpu.VMEM((tile_n, C), jnp.float32)],
        compiler_params=_CP_SEG,
    )(dst_row, msg)


# ----------------------------------------------------------------------------
# Parameters (deterministic synthetic init; shapes follow ModelI / TorchMD_ET).
# Matmul weights stored in bf16 (MXU operands); biases / LN params in f32.
# ----------------------------------------------------------------------------
def init_params(key, dim_hidden, dim_out, layers, rbf, heads, max_z=100):
    H, R = dim_hidden, rbf
    keys = iter(jax.random.split(key, 8 + 8 * layers))

    def w(shape, scale=None, dtype=jnp.bfloat16):
        if scale is None:
            scale = 1.0 / np.sqrt(shape[0])
        v = jax.random.uniform(next(keys), shape, jnp.float32, -scale, scale)
        return v.astype(dtype)

    params = dict(
        embedding=w((max_z, H), 1.0, jnp.float32),
        nbr_embedding=w((max_z, H), 1.0, jnp.float32),
        nbr_dist_w=w((R, H)), nbr_dist_b=jnp.zeros((H,), jnp.float32),
        nbr_comb_w=w((2 * H, H)), nbr_comb_b=jnp.zeros((H,), jnp.float32),
        out_norm_w=jnp.ones((H,), jnp.float32),
        out_norm_b=jnp.zeros((H,), jnp.float32),
        proj_w=w((H, dim_out)), proj_b=jnp.zeros((dim_out,), jnp.float32),
        layers=[],
    )
    for _ in range(layers):
        q_w, k_w, v_w = w((H, H)), w((H, H)), w((H, 3 * H))
        dk_w, dv_w = w((R, H)), w((R, 3 * H))
        params["layers"].append(dict(
            ln_w=jnp.ones((H,), jnp.float32), ln_b=jnp.zeros((H,), jnp.float32),
            qkv_w=jnp.concatenate([q_w, k_w, v_w], axis=1),      # [H, 5H] bf16
            qkv_b=jnp.zeros((5 * H,), jnp.float32),
            dkv_w=jnp.concatenate([dk_w, dv_w], axis=1),         # [R, 4H] bf16
            dkv_b=jnp.zeros((4 * H,), jnp.float32),
            vec_w=w((H, 3 * H)),                                 # bf16, no bias
            o_w=w((H, 3 * H)), o_b=jnp.zeros((3 * H,), jnp.float32),
        ))
    return params


# ----------------------------------------------------------------------------
# ModelI forward (mtl=False path): TorchMD_ET representation + proj_network
# ----------------------------------------------------------------------------
def model_i_forward(params, z, e_id, e_fea, e_we, e_vec, pos, mtl=False,
                    *, heads, cutoff_upper):
    # TODO(synk): mtl=True branch (EquivariantScalar pre/post_reduce, mean/std
    # scaling and the -d(out)/d(pos) force via autograd) is not implemented.
    del pos, mtl
    H = params["embedding"].shape[1]
    hd = H // heads
    N = z.shape[0]
    E = e_id.shape[1]

    e_fea = e_fea.astype(jnp.float32)
    e_we = e_we.astype(jnp.float32)
    e_vec = e_vec.astype(jnp.float32)
    e_id = e_id.astype(jnp.int32)
    src, dst = e_id[0], e_id[1]               # messages flow j=src -> i=dst
    dst_row = dst.reshape(1, E)

    # per-edge auxiliaries: unit direction, distance, non-self mask  [E, 5]
    nonself = src != dst
    norm = jnp.linalg.norm(e_vec, axis=1, keepdims=True)
    d_ij = jnp.where(nonself[:, None],
                     e_vec / jnp.where(norm == 0.0, 1.0, norm), e_vec)
    edge_aux = jnp.concatenate(
        [d_ij, e_we[:, None], nonself.astype(jnp.float32)[:, None]], axis=1)

    # block-diagonal per-head reduction matrix (constant)
    head_mask = jnp.asarray(
        (np.arange(H)[:, None] // hd) == (np.arange(H)[None, :] // hd),
        dtype=jnp.bfloat16)                                            # [H, H]

    # ---- atom embedding + NeighborEmbedding --------------------------------
    x = jnp.take(params["embedding"], z, axis=0)                       # [N, H]
    x_nbr = jnp.take(params["nbr_embedding"], z, axis=0)               # [N, H]
    msg = nbr_msg_p(e_fea, jnp.take(x_nbr, src, axis=0), edge_aux,
                    params["nbr_dist_w"], params["nbr_dist_b"], cutoff_upper)
    x_neighbors = segment_sum_p(dst_row, msg, N)                       # [N, H]
    xv = nbr_comb_p(x, x_neighbors, params["nbr_comb_w"],
                    params["nbr_comb_b"])                              # [N, 4H]

    # ---- EquivariantMultiHeadAttention layers ------------------------------
    for lp in params["layers"]:
        qkv = ln_linear_p(xv, lp["ln_w"], lp["ln_b"],
                          lp["qkv_w"], lp["qkv_b"])                    # [N, 5H]
        dkv = linear_p(e_fea, lp["dkv_w"], lp["dkv_b"], act="silu")    # [E, 4H]

        # gathers (glue): q by destination, packed [k|v|vec] slab by source
        q_i = jnp.take(qkv[:, :H], dst, axis=0)                        # [E, H]
        src_slab = jnp.concatenate([qkv[:, H:], xv[:, H:]], axis=1)    # [N, 7H]
        s_j = jnp.take(src_slab, src, axis=0)                          # [E, 7H]

        emsg = edge_message_p(q_i, s_j, dkv, edge_aux, head_mask,
                              cutoff_upper)                            # [E, 4H]
        agg = segment_sum_p(dst_row, emsg, N)                          # [N, 4H]
        xv = combine_p(agg, xv, lp["o_w"], lp["o_b"], lp["vec_w"])     # [N, 4H]

    # ---- out_norm + proj_network head (ModelI, mtl=False) ------------------
    out = ln_linear_p(xv, params["out_norm_w"], params["out_norm_b"],
                      params["proj_w"], params["proj_b"])              # [N, dim_out]
    v_out = xv[:, H:].reshape(N, 3, H)
    return out, v_out


# ----------------------------------------------------------------------------
if __name__ == "__main__":
    key = jax.random.PRNGKey(0)
    # ModelI(layers, dim_in, dim_hidden, dim_out, rbf, cut_dist, heads, ...)
    layers, dim_hidden, dim_out, rbf, cut_dist, heads = 2, 32, 8, 16, 5.0, 4
    N = 8

    kz, kpos, kp = jax.random.split(key, 3)
    z = jax.random.randint(kz, (N,), 1, 10, dtype=jnp.int32)           # atomic numbers
    pos = jax.random.normal(kpos, (N, 3), jnp.float32) * 2.0

    # all-pairs edges without self loops (precomputed, as fed to ModelI.forward)
    src_l, dst_l = [], []
    for a in range(N):
        for b in range(N):
            if a != b:
                src_l.append(a)
                dst_l.append(b)
    e_id = jnp.array([src_l, dst_l], dtype=jnp.int32)                  # [2, E]
    e_vec = pos[e_id[0]] - pos[e_id[1]]                                # [E, 3]
    e_we = jnp.linalg.norm(e_vec, axis=1)                              # [E]
    centers = jnp.linspace(0.0, cut_dist, rbf)
    e_fea = jnp.exp(-((e_we[:, None] - centers[None, :]) ** 2))        # [E, rbf]

    params = init_params(kp, dim_hidden, dim_out, layers, rbf, heads)

    fwd = jax.jit(functools.partial(model_i_forward,
                                    heads=heads, cutoff_upper=cut_dist))
    out, v = fwd(params, z, e_id, e_fea, e_we, e_vec, pos)
    jax.block_until_ready((out, v))
    assert out.shape == (N, dim_out) and v.shape == (N, 3, dim_hidden)
    print("KERNEL_OK")
</pallas_src>

<mosaic_0001>
module attributes {stable_mosaic.version = 11 : i64} {
  func.func @_nbr_msg_kernel(%arg0: i32, %arg1: memref<32x16xf32, #tpu.memory_space<vmem>>, %arg2: memref<32x32xf32, #tpu.memory_space<vmem>>, %arg3: memref<32x5xf32, #tpu.memory_space<vmem>>, %arg4: memref<16x32xbf16, #tpu.memory_space<vmem>>, %arg5: memref<1x32xf32, #tpu.memory_space<vmem>>, %arg6: memref<32x32xf32, #tpu.memory_space<vmem>>) attributes {dimension_semantics = [#tpu.dimension_semantics<parallel>], iteration_bounds = array<i64: 2>, scalar_prefetch = 0 : i64, scratch_operands = 0 : i64, tpu.core_type = #tpu.core_type<tc>, window_params = [{transform_indices = @transform_0, window_bounds = array<i64: 32, 16>}, {transform_indices = @transform_1, window_bounds = array<i64: 32, 32>}, {transform_indices = @transform_2, window_bounds = array<i64: 32, 5>}, {pipeline_mode = #tpu.pipeline_mode<synchronous>, transform_indices = @transform_3, window_bounds = array<i64: 16, 32>}, {pipeline_mode = #tpu.pipeline_mode<synchronous>, transform_indices = @transform_4, window_bounds = array<i64: 1, 32>}, {transform_indices = @transform_5, window_bounds = array<i64: 32, 32>}]} {
    %c0 = arith.constant 0 : index
    %c0_0 = arith.constant 0 : index
    %0 = vector.load %arg1[%c0, %c0_0] : memref<32x16xf32, #tpu.memory_space<vmem>>, vector<32x16xf32>
    %1 = arith.truncf %0 : vector<32x16xf32> to vector<32x16xbf16>
    %c0_1 = arith.constant 0 : index
    %c0_2 = arith.constant 0 : index
    %2 = vector.load %arg4[%c0_1, %c0_2] : memref<16x32xbf16, #tpu.memory_space<vmem>>, vector<16x32xbf16>
    %cst = arith.constant dense<0.000000e+00> : vector<32x32xf32>
    %3 = tpu.matmul %1, %2, %cst {dimension_numbers = #tpu.dot_dimension_numbers<[1], [0], [0], [1], [0, 0, 1, 1], [], []>} : vector<32x16xbf16>, vector<16x32xbf16>, vector<32x32xf32> -> vector<32x32xf32>
    %c0_3 = arith.constant 0 : index
    %c0_4 = arith.constant 0 : index
    %4 = vector.load %arg5[%c0_3, %c0_4] : memref<1x32xf32, #tpu.memory_space<vmem>>, vector<1x32xf32>
    %5 = vector.broadcast %4 : vector<1x32xf32> to vector<32x32xf32>
    %6 = arith.addf %3, %5 : vector<32x32xf32>
    %c0_5 = arith.constant 0 : index
    %c0_6 = arith.constant 0 : index
    %7 = vector.load %arg3[%c0_5, %c0_6] : memref<32x5xf32, #tpu.memory_space<vmem>>, vector<32x5xf32>
    %8 = vector.extract_strided_slice %7 {offsets = [0, 3], sizes = [32, 1], strides = [1, 1]} : vector<32x5xf32> to vector<32x1xf32>
    %cst_7 = arith.constant 0.628318548 : f32
    %9 = vector.broadcast %cst_7 : f32 to vector<32x1xf32>
    %10 = arith.mulf %8, %9 : vector<32x1xf32>
    %11 = math.cos %10 : vector<32x1xf32>
    %cst_8 = arith.constant 1.000000e+00 : f32
    %12 = vector.broadcast %cst_8 : f32 to vector<32x1xf32>
    %13 = arith.addf %11, %12 : vector<32x1xf32>
    %cst_9 = arith.constant 5.000000e-01 : f32
    %14 = vector.broadcast %cst_9 : f32 to vector<32x1xf32>
    %15 = arith.mulf %14, %13 : vector<32x1xf32>
    %cst_10 = arith.constant 5.000000e+00 : f32
    %16 = vector.broadcast %cst_10 : f32 to vector<32x1xf32>
    %17 = arith.cmpf olt, %8, %16 : vector<32x1xf32>
    %cst_11 = arith.constant 0.000000e+00 : f32
    %18 = vector.broadcast %cst_11 : f32 to vector<32x1xf32>
    %19 = arith.select %17, %15, %18 : vector<32x1xi1>, vector<32x1xf32>
    %20 = vector.extract_strided_slice %7 {offsets = [0, 4], sizes = [32, 1], strides = [1, 1]} : vector<32x5xf32> to vector<32x1xf32>
    %21 = arith.mulf %19, %20 : vector<32x1xf32>
    %c0_12 = arith.constant 0 : index
    %c0_13 = arith.constant 0 : index
    %22 = vector.load %arg2[%c0_12, %c0_13] : memref<32x32xf32, #tpu.memory_space<vmem>>, vector<32x32xf32>
    %23 = arith.mulf %22, %6 : vector<32x32xf32>
    %24 = vector.broadcast %21 : vector<32x1xf32> to vector<32x32xf32>
    %25 = arith.mulf %23, %24 : vector<32x32xf32>
    %c0_14 = arith.constant 0 : index
    %c0_15 = arith.constant 0 : index
    %26 = vector.load %arg6[%c0_14, %c0_15] : memref<32x32xf32, #tpu.memory_space<vmem>>, vector<32x32xf32>
    tpu.vector_store %arg6[%c0_14, %c0_15], %25 {strides = array<i32>} : memref<32x32xf32, #tpu.memory_space<vmem>>, vector<32x32xf32>,
    return
  }
  func.func @transform_0(%arg0: i32) -> (i32, i32) {
    %c0_i32 = arith.constant 0 : i32
    %c0_i32_0 = arith.constant 0 : i32
    return %arg0, %c0_i32 : i32, i32
  }
  func.func @transform_1(%arg0: i32) -> (i32, i32) {
    %c0_i32 = arith.constant 0 : i32
    %c0_i32_0 = arith.constant 0 : i32
    return %arg0, %c0_i32 : i32, i32
  }
  func.func @transform_2(%arg0: i32) -> (i32, i32) {
    %c0_i32 = arith.constant 0 : i32
    %c0_i32_0 = arith.constant 0 : i32
    return %arg0, %c0_i32 : i32, i32
  }
  func.func @transform_3(%arg0: i32) -> (i32, i32) {
    %c0_i32 = arith.constant 0 : i32
    %c0_i32_0 = arith.constant 0 : i32
    %c0_i32_1 = arith.constant 0 : i32
    return %c0_i32, %c0_i32_0 : i32, i32
  }
  func.func @transform_4(%arg0: i32) -> (i32, i32) {
    %c0_i32 = arith.constant 0 : i32
    %c0_i32_0 = arith.constant 0 : i32
    %c0_i32_1 = arith.constant 0 : i32
    return %c0_i32, %c0_i32_0 : i32, i32
  }
  func.func @transform_5(%arg0: i32) -> (i32, i32) {
    %c0_i32 = arith.constant 0 : i32
    %c0_i32_0 = arith.constant 0 : i32
    return %arg0, %c0_i32 : i32, i32
  }
}

module attributes {stable_mosaic.version = 11 : i64} {
  func.func @_segsum_kernel(%arg0: i32, %arg1: i32, %arg2: memref<1x56xi32, #tpu.memory_space<vmem>>, %arg3: memref<56x32xf32, #tpu.memory_space<vmem>>, %arg4: memref<8x32xf32, #tpu.memory_space<vmem>>, %arg5: memref<8x32xf32, #tpu.memory_space<vmem>>) attributes {dimension_semantics = [#tpu.dimension_semantics<parallel>, #tpu.dimension_semantics<arbitrary>], iteration_bounds = array<i64: 1, 1>, scalar_prefetch = 0 : i64, scratch_operands = 1 : i64, tpu.core_type = #tpu.core_type<tc>, window_params = [{transform_indices = @transform_0, window_bounds = array<i64: 1, 56>}, {transform_indices = @transform_1, window_bounds = array<i64: 56, 32>}, {transform_indices = @transform_2, window_bounds = array<i64: 8, 32>}]} {
    %c0_i32 = arith.constant 0 : i32
    %0 = arith.cmpi eq, %arg1, %c0_i32 : i32
    %1 = arith.extui %0 : i1 to i32
    %c0_i32_0 = arith.constant 0 : i32
    %2 = arith.cmpi ne, %1, %c0_i32_0 : i32
    scf.if %2 {
      %cst_12 = arith.constant 0.000000e+00 : f32
      %23 = vector.broadcast %cst_12 : f32 to vector<8x32xf32>
      %c0_13 = arith.constant 0 : index
      %c0_14 = arith.constant 0 : index
      %24 = vector.load %arg5[%c0_13, %c0_14] : memref<8x32xf32, #tpu.memory_space<vmem>>, vector<8x32xf32>
      tpu.vector_store %arg5[%c0_13, %c0_14], %23 {strides = array<i32>} : memref<8x32xf32, #tpu.memory_space<vmem>>, vector<8x32xf32>,
    } else {
    }
    %c8_i32 = arith.constant 8 : i32
    %3 = arith.muli %arg0, %c8_i32 : i32
    %4 = tpu.iota {dimensions = array<i32: 0>} : vector<8x56xi32>
    %5 = vector.broadcast %3 : i32 to vector<8x56xi32>
    %6 = arith.addi %5, %4 : vector<8x56xi32>
    %c0 = arith.constant 0 : index
    %c0_1 = arith.constant 0 : index
    %7 = vector.load %arg2[%c0, %c0_1] : memref<1x56xi32, #tpu.memory_space<vmem>>, vector<1x56xi32>
    %8 = vector.broadcast %7 : vector<1x56xi32> to vector<8x56xi32>
    %9 = arith.cmpi eq, %6, %8 : vector<8x56xi32>
    %cst = arith.constant 1.000000e+00 : f32
    %cst_2 = arith.constant 0.000000e+00 : f32
    %10 = vector.broadcast %cst : f32 to vector<8x56xf32>
    %11 = vector.broadcast %cst_2 : f32 to vector<8x56xf32>
    %12 = arith.select %9, %10, %11 : vector<8x56xi1>, vector<8x56xf32>
    %13 = arith.truncf %12 : vector<8x56xf32> to vector<8x56xbf16>
    %c0_3 = arith.constant 0 : index
    %c0_4 = arith.constant 0 : index
    %14 = vector.load %arg3[%c0_3, %c0_4] : memref<56x32xf32, #tpu.memory_space<vmem>>, vector<56x32xf32>
    %c0_5 = arith.constant 0 : index
    %c0_6 = arith.constant 0 : index
    %15 = vector.load %arg5[%c0_5, %c0_6] : memref<8x32xf32, #tpu.memory_space<vmem>>, vector<8x32xf32>
    %16 = arith.truncf %14 : vector<56x32xf32> to vector<56x32xbf16>
    %cst_7 = arith.constant dense<0.000000e+00> : vector<8x32xf32>
    %17 = tpu.matmul %13, %16, %cst_7 {dimension_numbers = #tpu.dot_dimension_numbers<[1], [0], [0], [1], [0, 0, 1, 1], [], []>} : vector<8x56xbf16>, vector<56x32xbf16>, vector<8x32xf32> -> vector<8x32xf32>
    %18 = arith.addf %15, %17 : vector<8x32xf32>
    %c0_8 = arith.constant 0 : index
    %c0_9 = arith.constant 0 : index
    %19 = vector.load %arg5[%c0_8, %c0_9] : memref<8x32xf32, #tpu.memory_space<vmem>>, vector<8x32xf32>
    tpu.vector_store %arg5[%c0_8, %c0_9], %18 {strides = array<i32>} : memref<8x32xf32, #tpu.memory_space<vmem>>, vector<8x32xf32>,
    %c0_i32_10 = arith.constant 0 : i32
    %20 = arith.cmpi eq, %arg1, %c0_i32_10 : i32
    %21 = arith.extui %20 : i1 to i32
    %c0_i32_11 = arith.constant 0 : i32
    %22 = arith.cmpi ne, %21, %c0_i32_11 : i32
    scf.if %22 {
      %c0_12 = arith.constant 0 : index
      %c0_13 = arith.constant 0 : index
      %23 = vector.load %arg5[%c0_12, %c0_13] : memref<8x32xf32, #tpu.memory_space<vmem>>, vector<8x32xf32>
      %c0_14 = arith.constant 0 : index
      %c0_15 = arith.constant 0 : index
      %24 = vector.load %arg4[%c0_14, %c0_15] : memref<8x32xf32, #tpu.memory_space<vmem>>, vector<8x32xf32>
      tpu.vector_store %arg4[%c0_14, %c0_15], %23 {strides = array<i32>} : memref<8x32xf32, #tpu.memory_space<vmem>>, vector<8x32xf32>,
    } else {
    }
    return
  }
  func.func @transform_0(%arg0: i32, %arg1: i32) -> (i32, i32) {
    %c0_i32 = arith.constant 0 : i32
    %c0_i32_0 = arith.constant 0 : i32
    return %c0_i32, %arg1 : i32, i32
  }
  func.func @transform_1(%arg0: i32, %arg1: i32) -> (i32, i32) {
    %c0_i32 = arith.constant 0 : i32
    %c0_i32_0 = arith.constant 0 : i32
    return %arg1, %c0_i32 : i32, i32
  }
  func.func @transform_2(%arg0: i32, %arg1: i32) -> (i32, i32) {
    %c0_i32 = arith.constant 0 : i32
    %c0_i32_0 = arith.constant 0 : i32
    return %arg0, %c0_i32 : i32, i32
  }
}

module attributes {stable_mosaic.version = 11 : i64} {
  func.func @_nbr_comb_kernel(%arg0: i32, %arg1: memref<8x32xf32, #tpu.memory_space<vmem>>, %arg2: memref<8x32xf32, #tpu.memory_space<vmem>>, %arg3: memref<64x32xbf16, #tpu.memory_space<vmem>>, %arg4: memref<1x32xf32, #tpu.memory_space<vmem>>, %arg5: memref<8x128xf32, #tpu.memory_space<vmem>>) attributes {dimension_semantics = [#tpu.dimension_semantics<parallel>], iteration_bounds = array<i64: 1>, scalar_prefetch = 0 : i64, scratch_operands = 0 : i64, tpu.core_type = #tpu.core_type<tc>, window_params = [{transform_indices = @transform_0, window_bounds = array<i64: 8, 32>}, {transform_indices = @transform_1, window_bounds = array<i64: 8, 32>}, {pipeline_mode = #tpu.pipeline_mode<synchronous>, transform_indices = @transform_2, window_bounds = array<i64: 64, 32>}, {pipeline_mode = #tpu.pipeline_mode<synchronous>, transform_indices = @transform_3, window_bounds = array<i64: 1, 32>}, {transform_indices = @transform_4, window_bounds = array<i64: 8, 128>}]} {
    %c0 = arith.constant 0 : index
    %c0_0 = arith.constant 0 : index
    %0 = vector.load %arg1[%c0, %c0_0] : memref<8x32xf32, #tpu.memory_space<vmem>>, vector<8x32xf32>
    %c0_1 = arith.constant 0 : index
    %c0_2 = arith.constant 0 : index
    %1 = vector.load %arg2[%c0_1, %c0_2] : memref<8x32xf32, #tpu.memory_space<vmem>>, vector<8x32xf32>
    %2 = tpu.concatenate %0, %1 in 1 : vector<8x32xf32>, vector<8x32xf32> -> vector<8x64xf32>
    %3 = arith.truncf %2 : vector<8x64xf32> to vector<8x64xbf16>
    %c0_3 = arith.constant 0 : index
    %c0_4 = arith.constant 0 : index
    %4 = vector.load %arg3[%c0_3, %c0_4] : memref<64x32xbf16, #tpu.memory_space<vmem>>, vector<64x32xbf16>
    %cst = arith.constant dense<0.000000e+00> : vector<8x32xf32>
    %5 = tpu.matmul %3, %4, %cst {dimension_numbers = #tpu.dot_dimension_numbers<[1], [0], [0], [1], [0, 0, 1, 1], [], []>} : vector<8x64xbf16>, vector<64x32xbf16>, vector<8x32xf32> -> vector<8x32xf32>
    %c0_5 = arith.constant 0 : index
    %c0_6 = arith.constant 0 : index
    %6 = vector.load %arg4[%c0_5, %c0_6] : memref<1x32xf32, #tpu.memory_space<vmem>>, vector<1x32xf32>
    %7 = vector.broadcast %6 : vector<1x32xf32> to vector<8x32xf32>
    %8 = arith.addf %5, %7 : vector<8x32xf32>
    %cst_7 = arith.constant 0.000000e+00 : f32
    %9 = vector.broadcast %cst_7 : f32 to vector<8x96xf32>
    %10 = tpu.concatenate %8, %9 in 1 : vector<8x32xf32>, vector<8x96xf32> -> vector<8x128xf32>
    %c0_8 = arith.constant 0 : index
    %c0_9 = arith.constant 0 : index
    %11 = vector.load %arg5[%c0_8, %c0_9] : memref<8x128xf32, #tpu.memory_space<vmem>>, vector<8x128xf32>
    tpu.vector_store %arg5[%c0_8, %c0_9], %10 {strides = array<i32>} : memref<8x128xf32, #tpu.memory_space<vmem>>, vector<8x128xf32>,
    return
  }
  func.func @transform_0(%arg0: i32) -> (i32, i32) {
    %c0_i32 = arith.constant 0 : i32
    %c0_i32_0 = arith.constant 0 : i32
    return %arg0, %c0_i32 : i32, i32
  }
  func.func @transform_1(%arg0: i32) -> (i32, i32) {
    %c0_i32 = arith.constant 0 : i32
    %c0_i32_0 = arith.constant 0 : i32
    return %arg0, %c0_i32 : i32, i32
  }
  func.func @transform_2(%arg0: i32) -> (i32, i32) {
    %c0_i32 = arith.constant 0 : i32
    %c0_i32_0 = arith.constant 0 : i32
    %c0_i32_1 = arith.constant 0 : i32
    return %c0_i32, %c0_i32_0 : i32, i32
  }
  func.func @transform_3(%arg0: i32) -> (i32, i32) {
    %c0_i32 = arith.constant 0 : i32
    %c0_i32_0 = arith.constant 0 : i32
    %c0_i32_1 = arith.constant 0 : i32
    return %c0_i32, %c0_i32_0 : i32, i32
  }
  func.func @transform_4(%arg0: i32) -> (i32, i32) {
    %c0_i32 = arith.constant 0 : i32
    %c0_i32_0 = arith.constant 0 : i32
    return %arg0, %c0_i32 : i32, i32
  }
}

module attributes {stable_mosaic.version = 11 : i64} {
  func.func @_ln_linear_kernel(%arg0: i32, %arg1: memref<8x128xf32, #tpu.memory_space<vmem>>, %arg2: memref<1x32xf32, #tpu.memory_space<vmem>>, %arg3: memref<1x32xf32, #tpu.memory_space<vmem>>, %arg4: memref<32x160xbf16, #tpu.memory_space<vmem>>, %arg5: memref<1x160xf32, #tpu.memory_space<vmem>>, %arg6: memref<8x160xf32, #tpu.memory_space<vmem>>) attributes {dimension_semantics = [#tpu.dimension_semantics<parallel>], iteration_bounds = array<i64: 1>, scalar_prefetch = 0 : i64, scratch_operands = 0 : i64, tpu.core_type = #tpu.core_type<tc>, window_params = [{transform_indices = @transform_0, window_bounds = array<i64: 8, 128>}, {pipeline_mode = #tpu.pipeline_mode<synchronous>, transform_indices = @transform_1, window_bounds = array<i64: 1, 32>}, {pipeline_mode = #tpu.pipeline_mode<synchronous>, transform_indices = @transform_2, window_bounds = array<i64: 1, 32>}, {pipeline_mode = #tpu.pipeline_mode<synchronous>, transform_indices = @transform_3, window_bounds = array<i64: 32, 160>}, {pipeline_mode = #tpu.pipeline_mode<synchronous>, transform_indices = @transform_4, window_bounds = array<i64: 1, 160>}, {transform_indices = @transform_5, window_bounds = array<i64: 8, 160>}]} {
    %c0 = arith.constant 0 : index
    %c0_0 = arith.constant 0 : index
    %0 = vector.load %arg1[%c0, %c0_0] : memref<8x128xf32, #tpu.memory_space<vmem>>, vector<8x32xf32>
    %cst = arith.constant dense<0.000000e+00> : vector<8xf32>
    %1 = vector.multi_reduction <add>, %0, %cst [1] : vector<8x32xf32> to vector<8xf32>
    %2 = vector.shape_cast %1 : vector<8xf32> to vector<8x1xf32>
    %cst_1 = arith.constant 3.200000e+01 : f32
    %3 = vector.broadcast %cst_1 : f32 to vector<8x1xf32>
    %4 = arith.divf %2, %3 : vector<8x1xf32>
    %5 = vector.broadcast %4 : vector<8x1xf32> to vector<8x32xf32>
    %6 = arith.subf %0, %5 : vector<8x32xf32>
    %7 = arith.mulf %6, %6 : vector<8x32xf32>
    %cst_2 = arith.constant dense<0.000000e+00> : vector<8xf32>
    %8 = vector.multi_reduction <add>, %7, %cst_2 [1] : vector<8x32xf32> to vector<8xf32>
    %9 = vector.shape_cast %8 : vector<8xf32> to vector<8x1xf32>
    %cst_3 = arith.constant 3.200000e+01 : f32
    %10 = vector.broadcast %cst_3 : f32 to vector<8x1xf32>
    %11 = arith.divf %9, %10 : vector<8x1xf32>
    %cst_4 = arith.constant 9.99999974E-6 : f32
    %12 = vector.broadcast %cst_4 : f32 to vector<8x1xf32>
    %13 = arith.addf %11, %12 : vector<8x1xf32>
    %14 = math.rsqrt %13 : vector<8x1xf32>
    %15 = vector.broadcast %14 : vector<8x1xf32> to vector<8x32xf32>
    %16 = arith.mulf %6, %15 : vector<8x32xf32>
    %c0_5 = arith.constant 0 : index
    %c0_6 = arith.constant 0 : index
    %17 = vector.load %arg2[%c0_5, %c0_6] : memref<1x32xf32, #tpu.memory_space<vmem>>, vector<1x32xf32>
    %18 = vector.broadcast %17 : vector<1x32xf32> to vector<8x32xf32>
    %19 = arith.mulf %16, %18 : vector<8x32xf32>
    %c0_7 = arith.constant 0 : index
    %c0_8 = arith.constant 0 : index
    %20 = vector.load %arg3[%c0_7, %c0_8] : memref<1x32xf32, #tpu.memory_space<vmem>>, vector<1x32xf32>
    %21 = vector.broadcast %20 : vector<1x32xf32> to vector<8x32xf32>
    %22 = arith.addf %19, %21 : vector<8x32xf32>
    %23 = arith.truncf %22 : vector<8x32xf32> to vector<8x32xbf16>
    %c0_9 = arith.constant 0 : index
    %c0_10 = arith.constant 0 : index
    %24 = vector.load %arg4[%c0_9, %c0_10] : memref<32x160xbf16, #tpu.memory_space<vmem>>, vector<32x160xbf16>
    %cst_11 = arith.constant dense<0.000000e+00> : vector<8x160xf32>
    %25 = tpu.matmul %23, %24, %cst_11 {dimension_numbers = #tpu.dot_dimension_numbers<[1], [0], [0], [1], [0, 0, 1, 1], [], []>} : vector<8x32xbf16>, vector<32x160xbf16>, vector<8x160xf32> -> vector<8x160xf32>
    %c0_12 = arith.constant 0 : index
    %c0_13 = arith.constant 0 : index
    %26 = vector.load %arg5[%c0_12, %c0_13] : memref<1x160xf32, #tpu.memory_space<vmem>>, vector<1x160xf32>
    %27 = vector.broadcast %26 : vector<1x160xf32> to vector<8x160xf32>
    %28 = arith.addf %25, %27 : vector<8x160xf32>
    %c0_14 = arith.constant 0 : index
    %c0_15 = arith.constant 0 : index
    %29 = vector.load %arg6[%c0_14, %c0_15] : memref<8x160xf32, #tpu.memory_space<vmem>>, vector<8x160xf32>
    tpu.vector_store %arg6[%c0_14, %c0_15], %28 {strides = array<i32>} : memref<8x160xf32, #tpu.memory_space<vmem>>, vector<8x160xf32>,
    return
  }
  func.func @transform_0(%arg0: i32) -> (i32, i32) {
    %c0_i32 = arith.constant 0 : i32
    %c0_i32_0 = arith.constant 0 : i32
    return %arg0, %c0_i32 : i32, i32
  }
  func.func @transform_1(%arg0: i32) -> (i32, i32) {
    %c0_i32 = arith.constant 0 : i32
    %c0_i32_0 = arith.constant 0 : i32
    %c0_i32_1 = arith.constant 0 : i32
    return %c0_i32, %c0_i32_0 : i32, i32
  }
  func.func @transform_2(%arg0: i32) -> (i32, i32) {
    %c0_i32 = arith.constant 0 : i32
    %c0_i32_0 = arith.constant 0 : i32
    %c0_i32_1 = arith.constant 0 : i32
    return %c0_i32, %c0_i32_0 : i32, i32
  }
  func.func @transform_3(%arg0: i32) -> (i32, i32) {
    %c0_i32 = arith.constant 0 : i32
    %c0_i32_0 = arith.constant 0 : i32
    %c0_i32_1 = arith.constant 0 : i32
    return %c0_i32, %c0_i32_0 : i32, i32
  }
  func.func @transform_4(%arg0: i32) -> (i32, i32) {
    %c0_i32 = arith.constant 0 : i32
    %c0_i32_0 = arith.constant 0 : i32
    %c0_i32_1 = arith.constant 0 : i32
    return %c0_i32, %c0_i32_0 : i32, i32
  }
  func.func @transform_5(%arg0: i32) -> (i32, i32) {
    %c0_i32 = arith.constant 0 : i32
    %c0_i32_0 = arith.constant 0 : i32
    return %arg0, %c0_i32 : i32, i32
  }
}

module attributes {stable_mosaic.version = 11 : i64} {
  func.func @_edge_msg_kernel(%arg0: i32, %arg1: memref<32x32xf32, #tpu.memory_space<vmem>>, %arg2: memref<32x224xf32, #tpu.memory_space<vmem>>, %arg3: memref<32x128xf32, #tpu.memory_space<vmem>>, %arg4: memref<32x5xf32, #tpu.memory_space<vmem>>, %arg5: memref<32x32xbf16, #tpu.memory_space<vmem>>, %arg6: memref<32x128xf32, #tpu.memory_space<vmem>>) attributes {dimension_semantics = [#tpu.dimension_semantics<parallel>], iteration_bounds = array<i64: 2>, scalar_prefetch = 0 : i64, scratch_operands = 0 : i64, tpu.core_type = #tpu.core_type<tc>, window_params = [{transform_indices = @transform_0, window_bounds = array<i64: 32, 32>}, {transform_indices = @transform_1, window_bounds = array<i64: 32, 224>}, {transform_indices = @transform_2, window_bounds = array<i64: 32, 128>}, {transform_indices = @transform_3, window_bounds = array<i64: 32, 5>}, {pipeline_mode = #tpu.pipeline_mode<synchronous>, transform_indices = @transform_4, window_bounds = array<i64: 32, 32>}, {transform_indices = @transform_5, window_bounds = array<i64: 32, 128>}]} {
    %c0 = arith.constant 0 : index
    %c0_0 = arith.constant 0 : index
    %0 = vector.load %arg2[%c0, %c0_0] : memref<32x224xf32, #tpu.memory_space<vmem>>, vector<32x224xf32>
    %c0_1 = arith.constant 0 : index
    %c0_2 = arith.constant 0 : index
    %1 = vector.load %arg3[%c0_1, %c0_2] : memref<32x128xf32, #tpu.memory_space<vmem>>, vector<32x128xf32>
    %c0_3 = arith.constant 0 : index
    %c0_4 = arith.constant 0 : index
    %2 = vector.load %arg1[%c0_3, %c0_4] : memref<32x32xf32, #tpu.memory_space<vmem>>, vector<32x32xf32>
    %3 = vector.extract_strided_slice %0 {offsets = [0, 0], sizes = [32, 32], strides = [1, 1]} : vector<32x224xf32> to vector<32x32xf32>
    %4 = arith.mulf %2, %3 : vector<32x32xf32>
    %5 = vector.extract_strided_slice %1 {offsets = [0, 0], sizes = [32, 32], strides = [1, 1]} : vector<32x128xf32> to vector<32x32xf32>
    %6 = arith.mulf %4, %5 : vector<32x32xf32>
    %7 = arith.truncf %6 : vector<32x32xf32> to vector<32x32xbf16>
    %c0_5 = arith.constant 0 : index
    %c0_6 = arith.constant 0 : index
    %8 = vector.load %arg5[%c0_5, %c0_6] : memref<32x32xbf16, #tpu.memory_space<vmem>>, vector<32x32xbf16>
    %cst = arith.constant dense<0.000000e+00> : vector<32x32xf32>
    %9 = tpu.matmul %7, %8, %cst {dimension_numbers = #tpu.dot_dimension_numbers<[1], [0], [0], [1], [0, 0, 1, 1], [], []>} : vector<32x32xbf16>, vector<32x32xbf16>, vector<32x32xf32> -> vector<32x32xf32>
    %10 = arith.negf %9 : vector<32x32xf32>
    %11 = math.exp %10 : vector<32x32xf32>
    %cst_7 = arith.constant 1.000000e+00 : f32
    %12 = vector.broadcast %cst_7 : f32 to vector<32x32xf32>
    %13 = arith.addf %12, %11 : vector<32x32xf32>
    %14 = arith.divf %12, %13 : vector<32x32xf32>
    %15 = arith.mulf %9, %14 : vector<32x32xf32>
    %c0_8 = arith.constant 0 : index
    %c0_9 = arith.constant 0 : index
    %16 = vector.load %arg4[%c0_8, %c0_9] : memref<32x5xf32, #tpu.memory_space<vmem>>, vector<32x5xf32>
    %17 = vector.extract_strided_slice %16 {offsets = [0, 3], sizes = [32, 1], strides = [1, 1]} : vector<32x5xf32> to vector<32x1xf32>
    %cst_10 = arith.constant 0.628318548 : f32
    %18 = vector.broadcast %cst_10 : f32 to vector<32x1xf32>
    %19 = arith.mulf %17, %18 : vector<32x1xf32>
    %20 = math.cos %19 : vector<32x1xf32>
    %cst_11 = arith.constant 1.000000e+00 : f32
    %21 = vector.broadcast %cst_11 : f32 to vector<32x1xf32>
    %22 = arith.addf %20, %21 : vector<32x1xf32>
    %cst_12 = arith.constant 5.000000e-01 : f32
    %23 = vector.broadcast %cst_12 : f32 to vector<32x1xf32>
    %24 = arith.mulf %23, %22 : vector<32x1xf32>
    %cst_13 = arith.constant 5.000000e+00 : f32
    %25 = vector.broadcast %cst_13 : f32 to vector<32x1xf32>
    %26 = arith.cmpf olt, %17, %25 : vector<32x1xf32>
    %cst_14 = arith.constant 0.000000e+00 : f32
    %27 = vector.broadcast %cst_14 : f32 to vector<32x1xf32>
    %28 = arith.select %26, %24, %27 : vector<32x1xi1>, vector<32x1xf32>
    %29 = vector.broadcast %28 : vector<32x1xf32> to vector<32x32xf32>
    %30 = arith.mulf %15, %29 : vector<32x32xf32>
    %31 = vector.extract_strided_slice %0 {offsets = [0, 32], sizes = [32, 96], strides = [1, 1]} : vector<32x224xf32> to vector<32x96xf32>
    %32 = vector.extract_strided_slice %1 {offsets = [0, 32], sizes = [32, 96], strides = [1, 1]} : vector<32x128xf32> to vector<32x96xf32>
    %33 = arith.mulf %31, %32 : vector<32x96xf32>
    %34 = vector.extract_strided_slice %0 {offsets = [0, 128], sizes = [32, 96], strides = [1, 1]} : vector<32x224xf32> to vector<32x96xf32>
    %35 = vector.extract_strided_slice %33 {offsets = [0, 0], sizes = [32, 32], strides = [1, 1]} : vector<32x96xf32> to vector<32x32xf32>
    %36 = arith.mulf %35, %30 : vector<32x32xf32>
    %37 = vector.extract_strided_slice %33 {offsets = [0, 32], sizes = [32, 32], strides = [1, 1]} : vector<32x96xf32> to vector<32x32xf32>
    %38 = vector.extract_strided_slice %33 {offsets = [0, 64], sizes = [32, 32], strides = [1, 1]} : vector<32x96xf32> to vector<32x32xf32>
    %39 = vector.extract_strided_slice %34 {offsets = [0, 0], sizes = [32, 32], strides = [1, 1]} : vector<32x96xf32> to vector<32x32xf32>
    %40 = arith.mulf %39, %37 : vector<32x32xf32>
    %41 = vector.extract_strided_slice %16 {offsets = [0, 0], sizes = [32, 1], strides = [1, 1]} : vector<32x5xf32> to vector<32x1xf32>
    %42 = vector.broadcast %41 : vector<32x1xf32> to vector<32x32xf32>
    %43 = arith.mulf %38, %42 : vector<32x32xf32>
    %44 = arith.addf %40, %43 : vector<32x32xf32>
    %45 = vector.extract_strided_slice %34 {offsets = [0, 32], sizes = [32, 32], strides = [1, 1]} : vector<32x96xf32> to vector<32x32xf32>
    %46 = arith.mulf %45, %37 : vector<32x32xf32>
    %47 = vector.extract_strided_slice %16 {offsets = [0, 1], sizes = [32, 1], strides = [1, 1]} : vector<32x5xf32> to vector<32x1xf32>
    %48 = vector.broadcast %47 : vector<32x1xf32> to vector<32x32xf32>
    %49 = arith.mulf %38, %48 : vector<32x32xf32>
    %50 = arith.addf %46, %49 : vector<32x32xf32>
    %51 = vector.extract_strided_slice %34 {offsets = [0, 64], sizes = [32, 32], strides = [1, 1]} : vector<32x96xf32> to vector<32x32xf32>
    %52 = arith.mulf %51, %37 : vector<32x32xf32>
    %53 = vector.extract_strided_slice %16 {offsets = [0, 2], sizes = [32, 1], strides = [1, 1]} : vector<32x5xf32> to vector<32x1xf32>
    %54 = vector.broadcast %53 : vector<32x1xf32> to vector<32x32xf32>
    %55 = arith.mulf %38, %54 : vector<32x32xf32>
    %56 = arith.addf %52, %55 : vector<32x32xf32>
    %57 = tpu.concatenate %36, %44, %50, %56 in 1 : vector<32x32xf32>, vector<32x32xf32>, vector<32x32xf32>, vector<32x32xf32> -> vector<32x128xf32>
    %c0_15 = arith.constant 0 : index
    %c0_16 = arith.constant 0 : index
    %58 = vector.load %arg6[%c0_15, %c0_16] : memref<32x128xf32, #tpu.memory_space<vmem>>, vector<32x128xf32>
    tpu.vector_store %arg6[%c0_15, %c0_16], %57 {strides = array<i32>} : memref<32x128xf32, #tpu.memory_space<vmem>>, vector<32x128xf32>,
    return
  }
  func.func @transform_0(%arg0: i32) -> (i32, i32) {
    %c0_i32 = arith.constant 0 : i32
    %c0_i32_0 = arith.constant 0 : i32
    return %arg0, %c0_i32 : i32, i32
  }
  func.func @transform_1(%arg0: i32) -> (i32, i32) {
    %c0_i32 = arith.constant 0 : i32
    %c0_i32_0 = arith.constant 0 : i32
    return %arg0, %c0_i32 : i32, i32
  }
  func.func @transform_2(%arg0: i32) -> (i32, i32) {
    %c0_i32 = arith.constant 0 : i32
    %c0_i32_0 = arith.constant 0 : i32
    return %arg0, %c0_i32 : i32, i32
  }
  func.func @transform_3(%arg0: i32) -> (i32, i32) {
    %c0_i32 = arith.constant 0 : i32
    %c0_i32_0 = arith.constant 0 : i32
    return %arg0, %c0_i32 : i32, i32
  }
  func.func @transform_4(%arg0: i32) -> (i32, i32) {
    %c0_i32 = arith.constant 0 : i32
    %c0_i32_0 = arith.constant 0 : i32
    %c0_i32_1 = arith.constant 0 : i32
    return %c0_i32, %c0_i32_0 : i32, i32
  }
  func.func @transform_5(%arg0: i32) -> (i32, i32) {
    %c0_i32 = arith.constant 0 : i32
    %c0_i32_0 = arith.constant 0 : i32
    return %arg0, %c0_i32 : i32, i32
  }
}

module attributes {stable_mosaic.version = 11 : i64} {
  func.func @_linear_kernel(%arg0: i32, %arg1: memref<32x16xf32, #tpu.memory_space<vmem>>, %arg2: memref<16x128xbf16, #tpu.memory_space<vmem>>, %arg3: memref<1x128xf32, #tpu.memory_space<vmem>>, %arg4: memref<32x128xf32, #tpu.memory_space<vmem>>) attributes {dimension_semantics = [#tpu.dimension_semantics<parallel>], iteration_bounds = array<i64: 2>, scalar_prefetch = 0 : i64, scratch_operands = 0 : i64, tpu.core_type = #tpu.core_type<tc>, window_params = [{transform_indices = @transform_0, window_bounds = array<i64: 32, 16>}, {pipeline_mode = #tpu.pipeline_mode<synchronous>, transform_indices = @transform_1, window_bounds = array<i64: 16, 128>}, {pipeline_mode = #tpu.pipeline_mode<synchronous>, transform_indices = @transform_2, window_bounds = array<i64: 1, 128>}, {transform_indices = @transform_3, window_bounds = array<i64: 32, 128>}]} {
    %c0 = arith.constant 0 : index
    %c0_0 = arith.constant 0 : index
    %0 = vector.load %arg1[%c0, %c0_0] : memref<32x16xf32, #tpu.memory_space<vmem>>, vector<32x16xf32>
    %1 = arith.truncf %0 : vector<32x16xf32> to vector<32x16xbf16>
    %c0_1 = arith.constant 0 : index
    %c0_2 = arith.constant 0 : index
    %2 = vector.load %arg2[%c0_1, %c0_2] : memref<16x128xbf16, #tpu.memory_space<vmem>>, vector<16x128xbf16>
    %cst = arith.constant dense<0.000000e+00> : vector<32x128xf32>
    %3 = tpu.matmul %1, %2, %cst {dimension_numbers = #tpu.dot_dimension_numbers<[1], [0], [0], [1], [0, 0, 1, 1], [], []>} : vector<32x16xbf16>, vector<16x128xbf16>, vector<32x128xf32> -> vector<32x128xf32>
    %c0_3 = arith.constant 0 : index
    %c0_4 = arith.constant 0 : index
    %4 = vector.load %arg3[%c0_3, %c0_4] : memref<1x128xf32, #tpu.memory_space<vmem>>, vector<1x128xf32>
    %5 = vector.broadcast %4 : vector<1x128xf32> to vector<32x128xf32>
    %6 = arith.addf %3, %5 : vector<32x128xf32>
    %7 = arith.negf %6 : vector<32x128xf32>
    %8 = math.exp %7 : vector<32x128xf32>
    %cst_5 = arith.constant 1.000000e+00 : f32
    %9 = vector.broadcast %cst_5 : f32 to vector<32x128xf32>
    %10 = arith.addf %9, %8 : vector<32x128xf32>
    %11 = arith.divf %9, %10 : vector<32x128xf32>
    %12 = arith.mulf %6, %11 : vector<32x128xf32>
    %c0_6 = arith.constant 0 : index
    %c0_7 = arith.constant 0 : index
    %13 = vector.load %arg4[%c0_6, %c0_7] : memref<32x128xf32, #tpu.memory_space<vmem>>, vector<32x128xf32>
    tpu.vector_store %arg4[%c0_6, %c0_7], %12 {strides = array<i32>} : memref<32x128xf32, #tpu.memory_space<vmem>>, vector<32x128xf32>,
    return
  }
  func.func @transform_0(%arg0: i32) -> (i32, i32) {
    %c0_i32 = arith.constant 0 : i32
    %c0_i32_0 = arith.constant 0 : i32
    return %arg0, %c0_i32 : i32, i32
  }
  func.func @transform_1(%arg0: i32) -> (i32, i32) {
    %c0_i32 = arith.constant 0 : i32
    %c0_i32_0 = arith.constant 0 : i32
    %c0_i32_1 = arith.constant 0 : i32
    return %c0_i32, %c0_i32_0 : i32, i32
  }
  func.func @transform_2(%arg0: i32) -> (i32, i32) {
    %c0_i32 = arith.constant 0 : i32
    %c0_i32_0 = arith.constant 0 : i32
    %c0_i32_1 = arith.constant 0 : i32
    return %c0_i32, %c0_i32_0 : i32, i32
  }
  func.func @transform_3(%arg0: i32) -> (i32, i32) {
    %c0_i32 = arith.constant 0 : i32
    %c0_i32_0 = arith.constant 0 : i32
    return %arg0, %c0_i32 : i32, i32
  }
}

module attributes {stable_mosaic.version = 11 : i64} {
  func.func @_segsum_kernel(%arg0: i32, %arg1: i32, %arg2: memref<1x56xi32, #tpu.memory_space<vmem>>, %arg3: memref<56x128xf32, #tpu.memory_space<vmem>>, %arg4: memref<8x128xf32, #tpu.memory_space<vmem>>, %arg5: memref<8x128xf32, #tpu.memory_space<vmem>>) attributes {dimension_semantics = [#tpu.dimension_semantics<parallel>, #tpu.dimension_semantics<arbitrary>], iteration_bounds = array<i64: 1, 1>, scalar_prefetch = 0 : i64, scratch_operands = 1 : i64, tpu.core_type = #tpu.core_type<tc>, window_params = [{transform_indices = @transform_0, window_bounds = array<i64: 1, 56>}, {transform_indices = @transform_1, window_bounds = array<i64: 56, 128>}, {transform_indices = @transform_2, window_bounds = array<i64: 8, 128>}]} {
    %c0_i32 = arith.constant 0 : i32
    %0 = arith.cmpi eq, %arg1, %c0_i32 : i32
    %1 = arith.extui %0 : i1 to i32
    %c0_i32_0 = arith.constant 0 : i32
    %2 = arith.cmpi ne, %1, %c0_i32_0 : i32
    scf.if %2 {
      %cst_12 = arith.constant 0.000000e+00 : f32
      %23 = vector.broadcast %cst_12 : f32 to vector<8x128xf32>
      %c0_13 = arith.constant 0 : index
      %c0_14 = arith.constant 0 : index
      %24 = vector.load %arg5[%c0_13, %c0_14] : memref<8x128xf32, #tpu.memory_space<vmem>>, vector<8x128xf32>
      tpu.vector_store %arg5[%c0_13, %c0_14], %23 {strides = array<i32>} : memref<8x128xf32, #tpu.memory_space<vmem>>, vector<8x128xf32>,
    } else {
    }
    %c8_i32 = arith.constant 8 : i32
    %3 = arith.muli %arg0, %c8_i32 : i32
    %4 = tpu.iota {dimensions = array<i32: 0>} : vector<8x56xi32>
    %5 = vector.broadcast %3 : i32 to vector<8x56xi32>
    %6 = arith.addi %5, %4 : vector<8x56xi32>
    %c0 = arith.constant 0 : index
    %c0_1 = arith.constant 0 : index
    %7 = vector.load %arg2[%c0, %c0_1] : memref<1x56xi32, #tpu.memory_space<vmem>>, vector<1x56xi32>
    %8 = vector.broadcast %7 : vector<1x56xi32> to vector<8x56xi32>
    %9 = arith.cmpi eq, %6, %8 : vector<8x56xi32>
    %cst = arith.constant 1.000000e+00 : f32
    %cst_2 = arith.constant 0.000000e+00 : f32
    %10 = vector.broadcast %cst : f32 to vector<8x56xf32>
    %11 = vector.broadcast %cst_2 : f32 to vector<8x56xf32>
    %12 = arith.select %9, %10, %11 : vector<8x56xi1>, vector<8x56xf32>
    %13 = arith.truncf %12 : vector<8x56xf32> to vector<8x56xbf16>
    %c0_3 = arith.constant 0 : index
    %c0_4 = arith.constant 0 : index
    %14 = vector.load %arg3[%c0_3, %c0_4] : memref<56x128xf32, #tpu.memory_space<vmem>>, vector<56x128xf32>
    %c0_5 = arith.constant 0 : index
    %c0_6 = arith.constant 0 : index
    %15 = vector.load %arg5[%c0_5, %c0_6] : memref<8x128xf32, #tpu.memory_space<vmem>>, vector<8x128xf32>
    %16 = arith.truncf %14 : vector<56x128xf32> to vector<56x128xbf16>
    %cst_7 = arith.constant dense<0.000000e+00> : vector<8x128xf32>
    %17 = tpu.matmul %13, %16, %cst_7 {dimension_numbers = #tpu.dot_dimension_numbers<[1], [0], [0], [1], [0, 0, 1, 1], [], []>} : vector<8x56xbf16>, vector<56x128xbf16>, vector<8x128xf32> -> vector<8x128xf32>
    %18 = arith.addf %15, %17 : vector<8x128xf32>
    %c0_8 = arith.constant 0 : index
    %c0_9 = arith.constant 0 : index
    %19 = vector.load %arg5[%c0_8, %c0_9] : memref<8x128xf32, #tpu.memory_space<vmem>>, vector<8x128xf32>
    tpu.vector_store %arg5[%c0_8, %c0_9], %18 {strides = array<i32>} : memref<8x128xf32, #tpu.memory_space<vmem>>, vector<8x128xf32>,
    %c0_i32_10 = arith.constant 0 : i32
    %20 = arith.cmpi eq, %arg1, %c0_i32_10 : i32
    %21 = arith.extui %20 : i1 to i32
    %c0_i32_11 = arith.constant 0 : i32
    %22 = arith.cmpi ne, %21, %c0_i32_11 : i32
    scf.if %22 {
      %c0_12 = arith.constant 0 : index
      %c0_13 = arith.constant 0 : index
      %23 = vector.load %arg5[%c0_12, %c0_13] : memref<8x128xf32, #tpu.memory_space<vmem>>, vector<8x128xf32>
      %c0_14 = arith.constant 0 : index
      %c0_15 = arith.constant 0 : index
      %24 = vector.load %arg4[%c0_14, %c0_15] : memref<8x128xf32, #tpu.memory_space<vmem>>, vector<8x128xf32>
      tpu.vector_store %arg4[%c0_14, %c0_15], %23 {strides = array<i32>} : memref<8x128xf32, #tpu.memory_space<vmem>>, vector<8x128xf32>,
    } else {
    }
    return
  }
  func.func @transform_0(%arg0: i32, %arg1: i32) -> (i32, i32) {
    %c0_i32 = arith.constant 0 : i32
    %c0_i32_0 = arith.constant 0 : i32
    return %c0_i32, %arg1 : i32, i32
  }
  func.func @transform_1(%arg0: i32, %arg1: i32) -> (i32, i32) {
    %c0_i32 = arith.constant 0 : i32
    %c0_i32_0 = arith.constant 0 : i32
    return %arg1, %c0_i32 : i32, i32
  }
  func.func @transform_2(%arg0: i32, %arg1: i32) -> (i32, i32) {
    %c0_i32 = arith.constant 0 : i32
    %c0_i32_0 = arith.constant 0 : i32
    return %arg0, %c0_i32 : i32, i32
  }
}

module attributes {stable_mosaic.version = 11 : i64} {
  func.func @_combine_kernel(%arg0: i32, %arg1: memref<8x128xf32, #tpu.memory_space<vmem>>, %arg2: memref<8x128xf32, #tpu.memory_space<vmem>>, %arg3: memref<32x96xbf16, #tpu.memory_space<vmem>>, %arg4: memref<1x96xf32, #tpu.memory_space<vmem>>, %arg5: memref<32x96xbf16, #tpu.memory_space<vmem>>, %arg6: memref<8x128xf32, #tpu.memory_space<vmem>>) attributes {dimension_semantics = [#tpu.dimension_semantics<parallel>], iteration_bounds = array<i64: 1>, scalar_prefetch = 0 : i64, scratch_operands = 0 : i64, tpu.core_type = #tpu.core_type<tc>, window_params = [{transform_indices = @transform_0, window_bounds = array<i64: 8, 128>}, {transform_indices = @transform_1, window_bounds = array<i64: 8, 128>}, {pipeline_mode = #tpu.pipeline_mode<synchronous>, transform_indices = @transform_2, window_bounds = array<i64: 32, 96>}, {pipeline_mode = #tpu.pipeline_mode<synchronous>, transform_indices = @transform_3, window_bounds = array<i64: 1, 96>}, {pipeline_mode = #tpu.pipeline_mode<synchronous>, transform_indices = @transform_4, window_bounds = array<i64: 32, 96>}, {transform_indices = @transform_5, window_bounds = array<i64: 8, 128>}]} {
    %c0 = arith.constant 0 : index
    %c0_0 = arith.constant 0 : index
    %0 = vector.load %arg1[%c0, %c0_0] : memref<8x128xf32, #tpu.memory_space<vmem>>, vector<8x128xf32>
    %c0_1 = arith.constant 0 : index
    %c0_2 = arith.constant 0 : index
    %1 = vector.load %arg2[%c0_1, %c0_2] : memref<8x128xf32, #tpu.memory_space<vmem>>, vector<8x128xf32>
    %2 = vector.extract_strided_slice %0 {offsets = [0, 0], sizes = [8, 32], strides = [1, 1]} : vector<8x128xf32> to vector<8x32xf32>
    %3 = arith.truncf %2 : vector<8x32xf32> to vector<8x32xbf16>
    %c0_3 = arith.constant 0 : index
    %c0_4 = arith.constant 0 : index
    %4 = vector.load %arg3[%c0_3, %c0_4] : memref<32x96xbf16, #tpu.memory_space<vmem>>, vector<32x96xbf16>
    %cst = arith.constant dense<0.000000e+00> : vector<8x96xf32>
    %5 = tpu.matmul %3, %4, %cst {dimension_numbers = #tpu.dot_dimension_numbers<[1], [0], [0], [1], [0, 0, 1, 1], [], []>} : vector<8x32xbf16>, vector<32x96xbf16>, vector<8x96xf32> -> vector<8x96xf32>
    %c0_5 = arith.constant 0 : index
    %c0_6 = arith.constant 0 : index
    %6 = vector.load %arg4[%c0_5, %c0_6] : memref<1x96xf32, #tpu.memory_space<vmem>>, vector<1x96xf32>
    %7 = vector.broadcast %6 : vector<1x96xf32> to vector<8x96xf32>
    %8 = arith.addf %5, %7 : vector<8x96xf32>
    %9 = vector.extract_strided_slice %8 {offsets = [0, 0], sizes = [8, 32], strides = [1, 1]} : vector<8x96xf32> to vector<8x32xf32>
    %10 = vector.extract_strided_slice %8 {offsets = [0, 32], sizes = [8, 32], strides = [1, 1]} : vector<8x96xf32> to vector<8x32xf32>
    %11 = vector.extract_strided_slice %8 {offsets = [0, 64], sizes = [8, 32], strides = [1, 1]} : vector<8x96xf32> to vector<8x32xf32>
    %cst_7 = arith.constant 0.000000e+00 : f32
    %12 = vector.broadcast %cst_7 : f32 to vector<8x32xf32>
    %13 = vector.extract_strided_slice %1 {offsets = [0, 32], sizes = [8, 32], strides = [1, 1]} : vector<8x128xf32> to vector<8x32xf32>
    %14 = arith.truncf %13 : vector<8x32xf32> to vector<8x32xbf16>
    %c0_8 = arith.constant 0 : index
    %c0_9 = arith.constant 0 : index
    %15 = vector.load %arg5[%c0_8, %c0_9] : memref<32x96xbf16, #tpu.memory_space<vmem>>, vector<32x96xbf16>
    %cst_10 = arith.constant dense<0.000000e+00> : vector<8x96xf32>
    %16 = tpu.matmul %14, %15, %cst_10 {dimension_numbers = #tpu.dot_dimension_numbers<[1], [0], [0], [1], [0, 0, 1, 1], [], []>} : vector<8x32xbf16>, vector<32x96xbf16>, vector<8x96xf32> -> vector<8x96xf32>
    %17 = vector.extract_strided_slice %16 {offsets = [0, 0], sizes = [8, 32], strides = [1, 1]} : vector<8x96xf32> to vector<8x32xf32>
    %18 = vector.extract_strided_slice %16 {offsets = [0, 32], sizes = [8, 32], strides = [1, 1]} : vector<8x96xf32> to vector<8x32xf32>
    %19 = arith.mulf %17, %18 : vector<8x32xf32>
    %20 = arith.addf %12, %19 : vector<8x32xf32>
    %21 = vector.extract_strided_slice %16 {offsets = [0, 64], sizes = [8, 32], strides = [1, 1]} : vector<8x96xf32> to vector<8x32xf32>
    %22 = arith.mulf %21, %9 : vector<8x32xf32>
    %23 = arith.addf %13, %22 : vector<8x32xf32>
    %24 = vector.extract_strided_slice %0 {offsets = [0, 32], sizes = [8, 32], strides = [1, 1]} : vector<8x128xf32> to vector<8x32xf32>
    %25 = arith.addf %23, %24 : vector<8x32xf32>
    %26 = vector.extract_strided_slice %1 {offsets = [0, 64], sizes = [8, 32], strides = [1, 1]} : vector<8x128xf32> to vector<8x32xf32>
    %27 = arith.truncf %26 : vector<8x32xf32> to vector<8x32xbf16>
    %c0_11 = arith.constant 0 : index
    %c0_12 = arith.constant 0 : index
    %28 = vector.load %arg5[%c0_11, %c0_12] : memref<32x96xbf16, #tpu.memory_space<vmem>>, vector<32x96xbf16>
    %cst_13 = arith.constant dense<0.000000e+00> : vector<8x96xf32>
    %29 = tpu.matmul %27, %28, %cst_13 {dimension_numbers = #tpu.dot_dimension_numbers<[1], [0], [0], [1], [0, 0, 1, 1], [], []>} : vector<8x32xbf16>, vector<32x96xbf16>, vector<8x96xf32> -> vector<8x96xf32>
    %30 = vector.extract_strided_slice %29 {offsets = [0, 0], sizes = [8, 32], strides = [1, 1]} : vector<8x96xf32> to vector<8x32xf32>
    %31 = vector.extract_strided_slice %29 {offsets = [0, 32], sizes = [8, 32], strides = [1, 1]} : vector<8x96xf32> to vector<8x32xf32>
    %32 = arith.mulf %30, %31 : vector<8x32xf32>
    %33 = arith.addf %20, %32 : vector<8x32xf32>
    %34 = vector.extract_strided_slice %29 {offsets = [0, 64], sizes = [8, 32], strides = [1, 1]} : vector<8x96xf32> to vector<8x32xf32>
    %35 = arith.mulf %34, %9 : vector<8x32xf32>
    %36 = arith.addf %26, %35 : vector<8x32xf32>
    %37 = vector.extract_strided_slice %0 {offsets = [0, 64], sizes = [8, 32], strides = [1, 1]} : vector<8x128xf32> to vector<8x32xf32>
    %38 = arith.addf %36, %37 : vector<8x32xf32>
    %39 = vector.extract_strided_slice %1 {offsets = [0, 96], sizes = [8, 32], strides = [1, 1]} : vector<8x128xf32> to vector<8x32xf32>
    %40 = arith.truncf %39 : vector<8x32xf32> to vector<8x32xbf16>
    %c0_14 = arith.constant 0 : index
    %c0_15 = arith.constant 0 : index
    %41 = vector.load %arg5[%c0_14, %c0_15] : memref<32x96xbf16, #tpu.memory_space<vmem>>, vector<32x96xbf16>
    %cst_16 = arith.constant dense<0.000000e+00> : vector<8x96xf32>
    %42 = tpu.matmul %40, %41, %cst_16 {dimension_numbers = #tpu.dot_dimension_numbers<[1], [0], [0], [1], [0, 0, 1, 1], [], []>} : vector<8x32xbf16>, vector<32x96xbf16>, vector<8x96xf32> -> vector<8x96xf32>
    %43 = vector.extract_strided_slice %42 {offsets = [0, 0], sizes = [8, 32], strides = [1, 1]} : vector<8x96xf32> to vector<8x32xf32>
    %44 = vector.extract_strided_slice %42 {offsets = [0, 32], sizes = [8, 32], strides = [1, 1]} : vector<8x96xf32> to vector<8x32xf32>
    %45 = arith.mulf %43, %44 : vector<8x32xf32>
    %46 = arith.addf %33, %45 : vector<8x32xf32>
    %47 = vector.extract_strided_slice %42 {offsets = [0, 64], sizes = [8, 32], strides = [1, 1]} : vector<8x96xf32> to vector<8x32xf32>
    %48 = arith.mulf %47, %9 : vector<8x32xf32>
    %49 = arith.addf %39, %48 : vector<8x32xf32>
    %50 = vector.extract_strided_slice %0 {offsets = [0, 96], sizes = [8, 32], strides = [1, 1]} : vector<8x128xf32> to vector<8x32xf32>
    %51 = arith.addf %49, %50 : vector<8x32xf32>
    %52 = vector.extract_strided_slice %1 {offsets = [0, 0], sizes = [8, 32], strides = [1, 1]} : vector<8x128xf32> to vector<8x32xf32>
    %53 = arith.mulf %46, %10 : vector<8x32xf32>
    %54 = arith.addf %52, %53 : vector<8x32xf32>
    %55 = arith.addf %54, %11 : vector<8x32xf32>
    %56 = tpu.concatenate %55, %25, %38, %51 in 1 : vector<8x32xf32>, vector<8x32xf32>, vector<8x32xf32>, vector<8x32xf32> -> vector<8x128xf32>
    %c0_17 = arith.constant 0 : index
    %c0_18 = arith.constant 0 : index
    %57 = vector.load %arg6[%c0_17, %c0_18] : memref<8x128xf32, #tpu.memory_space<vmem>>, vector<8x128xf32>
    tpu.vector_store %arg6[%c0_17, %c0_18], %56 {strides = array<i32>} : memref<8x128xf32, #tpu.memory_space<vmem>>, vector<8x128xf32>,
    return
  }
  func.func @transform_0(%arg0: i32) -> (i32, i32) {
    %c0_i32 = arith.constant 0 : i32
    %c0_i32_0 = arith.constant 0 : i32
    return %arg0, %c0_i32 : i32, i32
  }
  func.func @transform_1(%arg0: i32) -> (i32, i32) {
    %c0_i32 = arith.constant 0 : i32
    %c0_i32_0 = arith.constant 0 : i32
    return %arg0, %c0_i32 : i32, i32
  }
  func.func @transform_2(%arg0: i32) -> (i32, i32) {
    %c0_i32 = arith.constant 0 : i32
    %c0_i32_0 = arith.constant 0 : i32
    %c0_i32_1 = arith.constant 0 : i32
    return %c0_i32, %c0_i32_0 : i32, i32
  }
  func.func @transform_3(%arg0: i32) -> (i32, i32) {
    %c0_i32 = arith.constant 0 : i32
    %c0_i32_0 = arith.constant 0 : i32
    %c0_i32_1 = arith.constant 0 : i32
    return %c0_i32, %c0_i32_0 : i32, i32
  }
  func.func @transform_4(%arg0: i32) -> (i32, i32) {
    %c0_i32 = arith.constant 0 : i32
    %c0_i32_0 = arith.constant 0 : i32
    %c0_i32_1 = arith.constant 0 : i32
    return %c0_i32, %c0_i32_0 : i32, i32
  }
  func.func @transform_5(%arg0: i32) -> (i32, i32) {
    %c0_i32 = arith.constant 0 : i32
    %c0_i32_0 = arith.constant 0 : i32
    return %arg0, %c0_i32 : i32, i32
  }
}

module attributes {stable_mosaic.version = 11 : i64} {
  func.func @_ln_linear_kernel(%arg0: i32, %arg1: memref<8x128xf32, #tpu.memory_space<vmem>>, %arg2: memref<1x32xf32, #tpu.memory_space<vmem>>, %arg3: memref<1x32xf32, #tpu.memory_space<vmem>>, %arg4: memref<32x8xbf16, #tpu.memory_space<vmem>>, %arg5: memref<1x8xf32, #tpu.memory_space<vmem>>, %arg6: memref<8x8xf32, #tpu.memory_space<vmem>>) attributes {dimension_semantics = [#tpu.dimension_semantics<parallel>], iteration_bounds = array<i64: 1>, scalar_prefetch = 0 : i64, scratch_operands = 0 : i64, tpu.core_type = #tpu.core_type<tc>, window_params = [{transform_indices = @transform_0, window_bounds = array<i64: 8, 128>}, {pipeline_mode = #tpu.pipeline_mode<synchronous>, transform_indices = @transform_1, window_bounds = array<i64: 1, 32>}, {pipeline_mode = #tpu.pipeline_mode<synchronous>, transform_indices = @transform_2, window_bounds = array<i64: 1, 32>}, {pipeline_mode = #tpu.pipeline_mode<synchronous>, transform_indices = @transform_3, window_bounds = array<i64: 32, 8>}, {pipeline_mode = #tpu.pipeline_mode<synchronous>, transform_indices = @transform_4, window_bounds = array<i64: 1, 8>}, {transform_indices = @transform_5, window_bounds = array<i64: 8, 8>}]} {
    %c0 = arith.constant 0 : index
    %c0_0 = arith.constant 0 : index
    %0 = vector.load %arg1[%c0, %c0_0] : memref<8x128xf32, #tpu.memory_space<vmem>>, vector<8x32xf32>
    %cst = arith.constant dense<0.000000e+00> : vector<8xf32>
    %1 = vector.multi_reduction <add>, %0, %cst [1] : vector<8x32xf32> to vector<8xf32>
    %2 = vector.shape_cast %1 : vector<8xf32> to vector<8x1xf32>
    %cst_1 = arith.constant 3.200000e+01 : f32
    %3 = vector.broadcast %cst_1 : f32 to vector<8x1xf32>
    %4 = arith.divf %2, %3 : vector<8x1xf32>
    %5 = vector.broadcast %4 : vector<8x1xf32> to vector<8x32xf32>
    %6 = arith.subf %0, %5 : vector<8x32xf32>
    %7 = arith.mulf %6, %6 : vector<8x32xf32>
    %cst_2 = arith.constant dense<0.000000e+00> : vector<8xf32>
    %8 = vector.multi_reduction <add>, %7, %cst_2 [1] : vector<8x32xf32> to vector<8xf32>
    %9 = vector.shape_cast %8 : vector<8xf32> to vector<8x1xf32>
    %cst_3 = arith.constant 3.200000e+01 : f32
    %10 = vector.broadcast %cst_3 : f32 to vector<8x1xf32>
    %11 = arith.divf %9, %10 : vector<8x1xf32>
    %cst_4 = arith.constant 9.99999974E-6 : f32
    %12 = vector.broadcast %cst_4 : f32 to vector<8x1xf32>
    %13 = arith.addf %11, %12 : vector<8x1xf32>
    %14 = math.rsqrt %13 : vector<8x1xf32>
    %15 = vector.broadcast %14 : vector<8x1xf32> to vector<8x32xf32>
    %16 = arith.mulf %6, %15 : vector<8x32xf32>
    %c0_5 = arith.constant 0 : index
    %c0_6 = arith.constant 0 : index
    %17 = vector.load %arg2[%c0_5, %c0_6] : memref<1x32xf32, #tpu.memory_space<vmem>>, vector<1x32xf32>
    %18 = vector.broadcast %17 : vector<1x32xf32> to vector<8x32xf32>
    %19 = arith.mulf %16, %18 : vector<8x32xf32>
    %c0_7 = arith.constant 0 : index
    %c0_8 = arith.constant 0 : index
    %20 = vector.load %arg3[%c0_7, %c0_8] : memref<1x32xf32, #tpu.memory_space<vmem>>, vector<1x32xf32>
    %21 = vector.broadcast %20 : vector<1x32xf32> to vector<8x32xf32>
    %22 = arith.addf %19, %21 : vector<8x32xf32>
    %23 = arith.truncf %22 : vector<8x32xf32> to vector<8x32xbf16>
    %c0_9 = arith.constant 0 : index
    %c0_10 = arith.constant 0 : index
    %24 = vector.load %arg4[%c0_9, %c0_10] : memref<32x8xbf16, #tpu.memory_space<vmem>>, vector<32x8xbf16>
    %cst_11 = arith.constant dense<0.000000e+00> : vector<8x8xf32>
    %25 = tpu.matmul %23, %24, %cst_11 {dimension_numbers = #tpu.dot_dimension_numbers<[1], [0], [0], [1], [0, 0, 1, 1], [], []>} : vector<8x32xbf16>, vector<32x8xbf16>, vector<8x8xf32> -> vector<8x8xf32>
    %c0_12 = arith.constant 0 : index
    %c0_13 = arith.constant 0 : index
    %26 = vector.load %arg5[%c0_12, %c0_13] : memref<1x8xf32, #tpu.memory_space<vmem>>, vector<1x8xf32>
    %27 = vector.broadcast %26 : vector<1x8xf32> to vector<8x8xf32>
    %28 = arith.addf %25, %27 : vector<8x8xf32>
    %c0_14 = arith.constant 0 : index
    %c0_15 = arith.constant 0 : index
    %29 = vector.load %arg6[%c0_14, %c0_15] : memref<8x8xf32, #tpu.memory_space<vmem>>, vector<8x8xf32>
    tpu.vector_store %arg6[%c0_14, %c0_15], %28 {strides = array<i32>} : memref<8x8xf32, #tpu.memory_space<vmem>>, vector<8x8xf32>,
    return
  }
  func.func @transform_0(%arg0: i32) -> (i32, i32) {
    %c0_i32 = arith.constant 0 : i32
    %c0_i32_0 = arith.constant 0 : i32
    return %arg0, %c0_i32 : i32, i32
  }
  func.func @transform_1(%arg0: i32) -> (i32, i32) {
    %c0_i32 = arith.constant 0 : i32
    %c0_i32_0 = arith.constant 0 : i32
    %c0_i32_1 = arith.constant 0 : i32
    return %c0_i32, %c0_i32_0 : i32, i32
  }
  func.func @transform_2(%arg0: i32) -> (i32, i32) {
    %c0_i32 = arith.constant 0 : i32
    %c0_i32_0 = arith.constant 0 : i32
    %c0_i32_1 = arith.constant 0 : i32
    return %c0_i32, %c0_i32_0 : i32, i32
  }
  func.func @transform_3(%arg0: i32) -> (i32, i32) {
    %c0_i32 = arith.constant 0 : i32
    %c0_i32_0 = arith.constant 0 : i32
    %c0_i32_1 = arith.constant 0 : i32
    return %c0_i32, %c0_i32_0 : i32, i32
  }
  func.func @transform_4(%arg0: i32) -> (i32, i32) {
    %c0_i32 = arith.constant 0 : i32
    %c0_i32_0 = arith.constant 0 : i32
    %c0_i32_1 = arith.constant 0 : i32
    return %c0_i32, %c0_i32_0 : i32, i32
  }
  func.func @transform_5(%arg0: i32) -> (i32, i32) {
    %c0_i32 = arith.constant 0 : i32
    %c0_i32_0 = arith.constant 0 : i32
    return %arg0, %c0_i32 : i32, i32
  }
}

</mosaic_0001>

<llo_original>
// kernel: model_i_forward.16
$region0: #{model_i_forward.16}
  #allocation0 [shape = 'u32[]', space=smem, size = 0x4, offset = 0x4, fixed_abs, tag = 'smem constant byte address 0x4 - core index']
  #allocation1 [shape = 'u32[72,128]{1,0:T(1,128)}', space=vmem, size = 0x9000, scoped, tag = 'internal scratch']
  %s0 = inlined_call_operand.vmem [shape: f32[8,32], index: 0, kind: input, shape index: {}]
  %s1 = inlined_call_operand.vmem [shape: f32[8,32], index: 1, kind: input, shape index: {}]
  %s2 = inlined_call_operand.vmem [shape: bf16[64,32], index: 2, kind: input, shape index: {}]
  %s3 = inlined_call_operand.vmem [shape: f32[1,32], index: 3, kind: input, shape index: {}]
  %s4 = inlined_call_operand.vmem [shape: f32[8,128], index: 4, kind: output, shape index: {}]
  %s5 = sld [smem:[#allocation0]]
  $region26: #{model_i_forward.16} parent=0
    _
  %s7 = ssub.s32 1, %s5
  %s8 = scalar_select 0, %s7, %s5
  // Predicated region
  $region2: #{model_i_forward.16} parent=0 // pred_check
    _
  $region3: #{model_i_forward.16} parent=0 // pred_check_branch
    %10 = sbr.rel (0) target = $region5
  $region4: #{model_i_forward.16} parent=0 // pred_region
    _
  $region5: #{model_i_forward.16} parent=0 // pred_fallthru
    _
  // Predicated region
  $region6: #{model_i_forward.16} parent=0 // pred_check
    _
  $region7: #{model_i_forward.16} parent=0 // pred_check_branch
    %12 = sbr.rel (0) target = $region9
  $region8: #{model_i_forward.16} parent=0 // pred_region
    _
  $region9: #{model_i_forward.16} parent=0 // pred_fallthru
    _
  // Predicated region
  $region10: #{model_i_forward.16} parent=0 // pred_check
    _
  $region11: #{model_i_forward.16} parent=0 // pred_check_branch
    %14 = sbr.rel (0) target = $region13
  $region12: #{model_i_forward.16} parent=0 // pred_region
    _
  $region13: #{model_i_forward.16} parent=0 // pred_fallthru
    _
  // Predicated region
  $region14: #{model_i_forward.16} parent=0 // pred_check
    _
  $region15: #{model_i_forward.16} parent=0 // pred_check_branch
    %16 = sbr.rel (0) target = $region17
  $region16: #{model_i_forward.16} parent=0 // pred_region
    _
  $region17: #{model_i_forward.16} parent=0 // pred_fallthru
    _
  %v18 = vld [vmem:[%s0] sm:$0xff]
  %v19 = vld [vmem:[%s1] sm:$0xff]
  %21 = vrot.lane.b32.xlu0 %v19, 32
  %v22 = vpop.permute.xlu0 %21
  %vm24 = vcmask 261120
  %v25 = vsel %vm24, %v18, %v22
  %v26 = vpack.c.bf16 %v25, %v25
  %v27 = vld [vmem:[%s2] sm:$0xf]
  %v28 = vld [vmem:[%s2 + $0x4] sm:$0xf]
  %v29 = vld [vmem:[%s2 + $0x8] sm:$0xf]
  %v30 = vld [vmem:[%s2 + $0xc] sm:$0xf]
  %v31 = vld [vmem:[%s2 + $0x10] sm:$0xf]
  %v32 = vld [vmem:[%s2 + $0x14] sm:$0xf]
  %v33 = vld [vmem:[%s2 + $0x18] sm:$0xf]
  %v34 = vld [vmem:[%s2 + $0x1c] sm:$0xf]
  %v35 = vld [vmem:[%s3] sm:$0x1]
  %v37 = vperm.slane %v35, 0
  %v47 = vunpack.c.l.b16 %v27
  %v48 = vunpack.c.l.b16 %v28
  %v49 = vunpack.c.l.b16 %v29
  %v50 = vunpack.c.l.b16 %v30
  %v51 = vunpack.c.l.b16 %v31
  %v52 = vunpack.c.l.b16 %v32
  %v53 = vunpack.c.l.b16 %v33
  %v54 = vunpack.c.l.b16 %v34
  %v55 = vpack.c.b16 %v48, %v47
  %v56 = vpack.c.b16 %v50, %v49
  %v57 = vpack.c.b16 %v52, %v51
  %v58 = vpack.c.b16 %v54, %v53
  %vm63 = vcmask 523264
  %v65 = vsel %vm63, %v26, 0
  %67 = vmatpush.bf16.msra.mxu0 0
  %68 = vmatpush.bf16.msra.mxu0 0
  %69 = vmatpush.bf16.msra.mxu0 0
  %70 = vmatpush.bf16.msra.mxu0 0
  %71 = vmatpush.bf16.msra.mxu0 %v58
  %72 = vmatpush.bf16.msra.mxu0 %v57
  %73 = vmatpush.bf16.msra.mxu0 %v56
  %74 = vmatpush.bf16.msra.mxu0 %v55
  %75 = vmatmul.bf16.gmra.mxu0 %v65
  %v76 = vpop.f32.mrf.mxu0
  %v77 = vadd.f32 %v37, %v76
  %v78 = vpop.f32.mrf.mxu0
  %79 = vdwg.mxu0
  %v80 = vsel %vm24, %v77, 0.0
  %81 = vst [vmem:[%s4] sm:$0xff] %v80
  // Predicated region
  $region18: #{model_i_forward.16} parent=0 // pred_check
    _
  $region19: #{model_i_forward.16} parent=0 // pred_check_branch
    %83 = sbr.rel (0) target = $region21
  $region20: #{model_i_forward.16} parent=0 // pred_region
    _
  $region21: #{model_i_forward.16} parent=0 // pred_fallthru
    _
  // Predicated region
  $region22: #{model_i_forward.16} parent=0 // pred_check
    _
  $region23: #{model_i_forward.16} parent=0 // pred_check_branch
    %85 = sbr.rel (0) target = $region25
  $region24: #{model_i_forward.16} parent=0 // pred_region
    _
  $region25: #{model_i_forward.16} parent=0 // pred_fallthru
    _

// kernel: model_i_forward.15
$region0: #{model_i_forward.15}
  #allocation0 [shape = 'u32[]', space=smem, size = 0x4, offset = 0x4, fixed_abs, tag = 'smem constant byte address 0x4 - core index']
  #allocation1 [shape = 'u32[72,128]{1,0:T(1,128)}', space=vmem, size = 0x9000, scoped, tag = 'internal scratch']
  #allocation2 [shape = 'f32[8,32]{1,0:T(8,128)}', space=vmem, size = 0x1000, scoped, tag = 'scratch operand']
  %s0 = inlined_call_operand.vmem [shape: s32[1,56], index: 0, kind: input, shape index: {}]
  %s1 = inlined_call_operand.vmem [shape: f32[56,32], index: 1, kind: input, shape index: {}]
  %s2 = inlined_call_operand.vmem [shape: f32[8,32], index: 2, kind: output, shape index: {}]
  %s3 = sld [smem:[#allocation0]]
  $region26: #{model_i_forward.15} parent=0
    _
  %s5 = ssub.s32 1, %s3
  %s6 = scalar_select 0, %s5, %s3
  // Predicated region
  $region2: #{model_i_forward.15} parent=0 // pred_check
    _
  $region3: #{model_i_forward.15} parent=0 // pred_check_branch
    %8 = sbr.rel (0) target = $region5
  $region4: #{model_i_forward.15} parent=0 // pred_region
    _
  $region5: #{model_i_forward.15} parent=0 // pred_fallthru
    _
  // Predicated region
  $region6: #{model_i_forward.15} parent=0 // pred_check
    _
  $region7: #{model_i_forward.15} parent=0 // pred_check_branch
    %10 = sbr.rel (0) target = $region9
  $region8: #{model_i_forward.15} parent=0 // pred_region
    _
  $region9: #{model_i_forward.15} parent=0 // pred_fallthru
    _
  %p12 = scmp.eq.s32.totalorder 0, 0
  // Predicated region
  $region10: #{model_i_forward.15} parent=0 // pred_check
    %p13 = pneg %p12
  $region11: #{model_i_forward.15} parent=0 // pred_check_branch
    %15 = sbr.rel (%p13) target = $region13
  $region12: #{model_i_forward.15} parent=0 // pred_region
    %vm16 = vcmask 261120
    %17 = vst.msk [vmem:[#allocation2] sm:$0xff] %vm16, 0.0
  $region13: #{model_i_forward.15} parent=0 // pred_fallthru
    _
  %s18 = smul.u32 0, 8
  %v19 = vlaneseq
  %v20 = vshrl.u32 %v19, 7
  %v21 = vstv %s18
  %v22 = vadd.s32 %v21, %v20
  %v23 = vld [vmem:[%s0] sm:$0x1]
  %v24 = vperm.slane %v23, 0
  %vm25 = vcmp.eq.s32.totalorder %v22, %v24
  %v26 = vsel %vm25, 1.0, 0.0
  %v27 = vpack.c.bf16 %v26, %v26
  %v28 = vld [vmem:[%s1] sm:$0xff]
  %v29 = vld [vmem:[%s1 + $0x8] sm:$0xff]
  %v30 = vld [vmem:[%s1 + $0x10] sm:$0xff]
  %v31 = vld [vmem:[%s1 + $0x18] sm:$0xff]
  %v32 = vld [vmem:[%s1 + $0x20] sm:$0xff]
  %v33 = vld [vmem:[%s1 + $0x28] sm:$0xff]
  %v34 = vld [vmem:[%s1 + $0x30] sm:$0xff]
  %v35 = vld [vmem:[#allocation2] sm:$0xff]
  %v36 = vpack.c.bf16 %v29, %v28
  %v37 = vpack.c.bf16 %v31, %v30
  %v38 = vpack.c.bf16 %v33, %v32
  %v39 = vpack.c.bf16 %v34, %v34
  %vm40 = vcmask 457728
  %v42 = vsel %vm40, %v27, 0
  %vm44 = vcmask 1043456
  %v46 = vsel %vm44, %v39, 0
  %48 = vmatpush.bf16.msra.mxu0 0
  %49 = vmatpush.bf16.msra.mxu0 0
  %50 = vmatpush.bf16.msra.mxu0 0
  %51 = vmatpush.bf16.msra.mxu0 0
  %52 = vmatpush.bf16.msra.mxu0 %v46
  %53 = vmatpush.bf16.msra.mxu0 %v38
  %54 = vmatpush.bf16.msra.mxu0 %v37
  %55 = vmatpush.bf16.msra.mxu0 %v36
  %56 = vmatmul.bf16.gmra.mxu0 %v42
  %v57 = vpop.f32.mrf.mxu0
  %v58 = vadd.f32 0.0, %v57
  %v59 = vpop.f32.mrf.mxu0
  %60 = vdwg.mxu0
  %v61 = vadd.f32 %v35, %v58
  %vm62 = vcmask 261120
  %63 = vst.msk [vmem:[#allocation2] sm:$0xff] %vm62, %v61
  // Predicated region
  $region14: #{model_i_forward.15} parent=0 // pred_check
    %p64 = pneg %p12
  $region15: #{model_i_forward.15} parent=0 // pred_check_branch
    %66 = sbr.rel (%p64) target = $region17
  $region16: #{model_i_forward.15} parent=0 // pred_region
    %v67 = vld [vmem:[#allocation2] sm:$0xff]
    %68 = vst.msk [vmem:[%s2] sm:$0xff] %vm62, %v67
  $region17: #{model_i_forward.15} parent=0 // pred_fallthru
    _
  // Predicated region
  $region18: #{model_i_forward.15} parent=0 // pred_check
    _
  $region19: #{model_i_forward.15} parent=0 // pred_check_branch
    %70 = sbr.rel (0) target = $region21
  $region20: #{model_i_forward.15} parent=0 // pred_region
    _
  $region21: #{model_i_forward.15} parent=0 // pred_fallthru
    _
  // Predicated region
  $region22: #{model_i_forward.15} parent=0 // pred_check
    _
  $region23: #{model_i_forward.15} parent=0 // pred_check_branch
    %72 = sbr.rel (0) target = $region25
  $region24: #{model_i_forward.15} parent=0 // pred_region
    _
  $region25: #{model_i_forward.15} parent=0 // pred_fallthru
    _

// kernel: model_i_forward.17
$region0: #{model_i_forward.17}
  #allocation0 [shape = 'u32[]', space=smem, size = 0x4, offset = 0x4, fixed_abs, tag = 'smem constant byte address 0x4 - core index']
  #allocation1 [shape = 'u32[72,128]{1,0:T(1,128)}', space=vmem, size = 0x9000, scoped, tag = 'internal scratch']
  %s0 = inlined_call_operand.vmem [shape: f32[8,128], index: 0, kind: input, shape index: {}]
  %s1 = inlined_call_operand.vmem [shape: f32[1,32], index: 1, kind: input, shape index: {}]
  %s2 = inlined_call_operand.vmem [shape: f32[1,32], index: 2, kind: input, shape index: {}]
  %s3 = inlined_call_operand.vmem [shape: bf16[32,160], index: 3, kind: input, shape index: {}]
  %s4 = inlined_call_operand.vmem [shape: f32[1,160], index: 4, kind: input, shape index: {}]
  %s5 = inlined_call_operand.vmem [shape: f32[8,160], index: 5, kind: output, shape index: {}]
  %s6 = sld [smem:[#allocation0]]
  $region30: #{model_i_forward.17} parent=0
    _
  %s8 = ssub.s32 1, %s6
  %s9 = scalar_select 0, %s8, %s6
  // Predicated region
  $region2: #{model_i_forward.17} parent=0 // pred_check
    _
  $region3: #{model_i_forward.17} parent=0 // pred_check_branch
    %11 = sbr.rel (0) target = $region5
  $region4: #{model_i_forward.17} parent=0 // pred_region
    _
  $region5: #{model_i_forward.17} parent=0 // pred_fallthru
    _
  // Predicated region
  $region6: #{model_i_forward.17} parent=0 // pred_check
    _
  $region7: #{model_i_forward.17} parent=0 // pred_check_branch
    %13 = sbr.rel (0) target = $region9
  $region8: #{model_i_forward.17} parent=0 // pred_region
    _
  $region9: #{model_i_forward.17} parent=0 // pred_fallthru
    _
  // Predicated region
  $region10: #{model_i_forward.17} parent=0 // pred_check
    _
  $region11: #{model_i_forward.17} parent=0 // pred_check_branch
    %15 = sbr.rel (0) target = $region13
  $region12: #{model_i_forward.17} parent=0 // pred_region
    _
  $region13: #{model_i_forward.17} parent=0 // pred_fallthru
    _
  // Predicated region
  $region14: #{model_i_forward.17} parent=0 // pred_check
    _
  $region15: #{model_i_forward.17} parent=0 // pred_check_branch
    %17 = sbr.rel (0) target = $region17
  $region16: #{model_i_forward.17} parent=0 // pred_region
    _
  $region17: #{model_i_forward.17} parent=0 // pred_fallthru
    _
  // Predicated region
  $region18: #{model_i_forward.17} parent=0 // pred_check
    _
  $region19: #{model_i_forward.17} parent=0 // pred_check_branch
    %19 = sbr.rel (0) target = $region21
  $region20: #{model_i_forward.17} parent=0 // pred_region
    _
  $region21: #{model_i_forward.17} parent=0 // pred_fallthru
    _
  %v21 = vld [vmem:[%s0] sm:$0xff]
  %vm22 = vcmask 261120
  %v23 = vsel %vm22, %v21, 0.0
  %24 = vadd.xlane.f32.xlu0 %v23
  %v25 = vpop.xlane.xlu0 %24
  %v26 = vrcp.pop 32.0
  %v27 = vmul.f32 32.0, %v26
  %v28 = vsub.f32 1.0, %v27
  %v29 = vmul.f32 %v26, %v28
  %v30 = vadd.f32 %v26, %v29
  %vm31 = vweird.f32 %v26
  %v32 = vsel %vm31, %v26, %v30
  %v33 = vmul.f32 %v25, %v32
  %v34 = vsub.f32 %v21, %v33
  %v35 = vmul.f32 %v34, %v34
  %v36 = vsel %vm22, %v35, 0.0
  %37 = vadd.xlane.f32.xlu0 %v36
  %v38 = vpop.xlane.xlu0 %37
  %v39 = vmul.f32 %v38, %v32
  %v40 = vadd.f32 %v39, 1e-05
  %v41 = vrsqrt.pop %v40
  %v42 = vmul.f32 %v41, %v40
  %v43 = vmul.f32 %v42, %v41
  %v44 = vmul.f32 0.5, %v43
  %v45 = vsub.f32 1.5, %v44
  %v46 = vmul.f32 %v41, %v45
  %vm47 = vweird.f32 %v40
  %vm48 = vweird.f32 %v41
  %vm49 = vmor %vm47, %vm48
  %v50 = vsel %vm49, %v41, %v46
  %v51 = vmul.f32 %v34, %v50
  %v52 = vld [vmem:[%s1] sm:$0x1]
  %v54 = vperm.slane %v52, 0
  %v56 = vmul.f32 %v51, %v54
  %v57 = vld [vmem:[%s2] sm:$0x1]
  %v59 = vperm.slane %v57, 0
  %v61 = vadd.f32 %v56, %v59
  %v62 = vpack.c.bf16 %v61, %v61
  %v63 = vld [vmem:[%s3] sm:$0xff]
  %v64 = vld [vmem:[%s3 + $0x8] sm:$0xff]
  %v65 = vld [vmem:[%s3 + $0x10] sm:$0xff]
  %v66 = vld [vmem:[%s3 + $0x18] sm:$0xff]
  %v67 = vld [vmem:[%s4] sm:$0x3]
  %v69 = vperm.slane %v67, 0
  %v70 = vperm.slane %v67, 1
  %v77 = vunpack.c.l.b16 %v63
  %v78 = vunpack.c.h.b16 %v63
  %v79 = vunpack.c.l.b16 %v64
  %v80 = vunpack.c.h.b16 %v64
  %v81 = vunpack.c.l.b16 %v65
  %v82 = vunpack.c.h.b16 %v65
  %v83 = vunpack.c.l.b16 %v66
  %v84 = vunpack.c.h.b16 %v66
  %v85 = vpack.c.b16 %v79, %v77
  %v86 = vpack.c.b16 %v80, %v78
  %v87 = vpack.c.b16 %v83, %v81
  %v88 = vpack.c.b16 %v84, %v82
  %v94 = vsel %vm22, %v62, 0
  %96 = vmatpush.bf16.msra.mxu0 0
  %97 = vmatpush.bf16.msra.mxu0 0
  %98 = vmatpush.bf16.msra.mxu0 0
  %99 = vmatpush.bf16.msra.mxu0 0
  %100 = vmatpush.bf16.msra.mxu0 0
  %101 = vmatpush.bf16.msra.mxu0 0
  %102 = vmatpush.bf16.msra.mxu0 %v87
  %103 = vmatpush.bf16.msra.mxu0 %v85
  %104 = vmatmul.bf16.gmra.mxu0 %v94
  %v105 = vpop.f32.mrf.mxu0
  %v106 = vadd.f32 %v69, %v105
  %v107 = vpop.f32.mrf.mxu0
  %108 = vdwg.mxu0
  %109 = vmatpush.bf16.msra.mxu0 0
  %110 = vmatpush.bf16.msra.mxu0 0
  %111 = vmatpush.bf16.msra.mxu0 0
  %112 = vmatpush.bf16.msra.mxu0 0
  %113 = vmatpush.bf16.msra.mxu0 0
  %114 = vmatpush.bf16.msra.mxu0 0
  %115 = vmatpush.bf16.msra.mxu0 %v88
  %116 = vmatpush.bf16.msra.mxu0 %v86
  %117 = vmatmul.bf16.gmra.mxu0 %v94
  %v118 = vpop.f32.mrf.mxu0
  %v119 = vadd.f32 %v70, %v118
  %v120 = vpop.f32.mrf.mxu0
  %121 = vdwg.mxu0
  %122 = vst [vmem:[%s5] sm:$0xff] %v106
  %123 = vst.msk [vmem:[%s5 + $0x8] sm:$0xff] %vm22, %v119
  // Predicated region
  $region22: #{model_i_forward.17} parent=0 // pred_check
    _
  $region23: #{model_i_forward.17} parent=0 // pred_check_branch
    %125 = sbr.rel (0) target = $region25
  $region24: #{model_i_forward.17} parent=0 // pred_region
    _
  $region25: #{model_i_forward.17} parent=0 // pred_fallthru
    _
  // Predicated region
  $region26: #{model_i_forward.17} parent=0 // pred_check
    _
  $region27: #{model_i_forward.17} parent=0 // pred_check_branch
    %127 = sbr.rel (0) target = $region29
  $region28: #{model_i_forward.17} parent=0 // pred_region
    _
  $region29: #{model_i_forward.17} parent=0 // pred_fallthru
    _

// kernel: model_i_forward.14
$region0: #{model_i_forward.14}
  #allocation0 [shape = 'u32[]', space=smem, size = 0x4, offset = 0x4, fixed_abs, tag = 'smem constant byte address 0x4 - core index']
  #allocation1 [shape = 'u32[72,128]{1,0:T(1,128)}', space=vmem, size = 0x9000, scoped, tag = 'internal scratch']
  %s0 = inlined_call_operand.vmem [shape: f32[56,16], index: 0, kind: input, shape index: {}]
  %s1 = inlined_call_operand.vmem [shape: f32[56,32], index: 1, kind: input, shape index: {}]
  %s2 = inlined_call_operand.vmem [shape: f32[56,5], index: 2, kind: input, shape index: {}]
  %s3 = inlined_call_operand.vmem [shape: bf16[16,32], index: 3, kind: input, shape index: {}]
  %s4 = inlined_call_operand.vmem [shape: f32[1,32], index: 4, kind: input, shape index: {}]
  %s5 = inlined_call_operand.vmem [shape: f32[56,32], index: 5, kind: output, shape index: {}]
  %s6 = sld [smem:[#allocation0]]
  $region101: #{model_i_forward.14} parent=0
    _
  %s8 = ssub.s32 1, %s6
  %s9 = scalar_select 0, %s8, %s6
  $region1: #{model_i_forward.14} parent=0
    #allocation2 [shape = 'u8[32768]{0}', space=vmem, size = 0x8000, scoped, tag = 'output window, operand 0']
    loop: start=0, step=1, limit=4
    $region2: #{model_i_forward.14} parent=1 // loop_pre_header
      _
    $region3: #{model_i_forward.14} parent=1 // loop_header
      %s11 = sphi 0, %s15
      %p12 = scmp.ge.s32.totalorder %s11, 4
      %s21 = sphi 0, %s23
      %s24 = sphi 0, %s21
      %s25 = sphi 0, %s24
      %s41 = sphi 0, %s25
      %s47 = sphi 0, %s49
      %s50 = sphi 0, %s47
      %s51 = sphi 0, %s50
      %s67 = sphi 0, %s51
      %s73 = sphi 0, %s75
      %s76 = sphi 0, %s73
      %s77 = sphi 0, %s76
      %s93 = sphi 0, %s77
      %s97 = sphi 0, %s97
      %s99 = sphi 0, %s97
      %s100 = sphi 0, %s99
      %s114 = sphi 0, %s100
      %s118 = sphi 0, %s118
      %s120 = sphi 0, %s118
      %s121 = sphi 0, %s120
      %s135 = sphi 0, %s121
      %s141 = sphi 0, %s143
      %s144 = sphi 0, %s141
      %s145 = sphi 0, %s144
      %s161 = sphi 0, %s145
    $region4: #{model_i_forward.14} parent=1 // loop_header_branch
      %14 = sbr.rel (%p12) target = $region8
    $region5: #{model_i_forward.14} parent=1 // loop_body
      %s16 = ssub.s32 %s11, 1
      %s17 = ssub.s32 %s11, 2
      %s18 = sadd.s32 %s11, 1
      %s19 = ssub.s32 %s11, %s18
      %p20 = scmp.eq.s32.totalorder %s19, 0
      %s22 = sadd.s32 %s21, 1
      %s23 = scalar_select %p20, %s21, %s22
      %p26 = pneg %p20
      %p27 = scmp.eq.s32.totalorder %s11, 1
      %p28 = por %p26, %p27
      %p29 = scmp.ne.s32.totalorder %s21, %s24
      %p30 = scmp.eq.s32.totalorder %s11, 0
      %p31 = por %p29, %p30
      %p32 = scmp.ne.s32.totalorder %s21, %s24
      %p33 = scmp.eq.s32.totalorder %s16, 1
      %p34 = por %p32, %p33
      %p35 = scmp.ne.s32.totalorder %s24, %s25
      %p36 = scmp.eq.s32.totalorder %s16, 0
      %p37 = por %p35, %p36
      %p38 = scmp.ne.s32.totalorder %s24, %s25
      %p39 = scmp.eq.s32.totalorder %s17, 1
      %p40 = por %p38, %p39
      %p42 = scmp.ne.s32.totalorder %s25, %s41
      %p43 = scmp.eq.s32.totalorder %s17, 0
      %p44 = por %p42, %p43
      %s45 = ssub.s32 %s11, %s18
      %p46 = scmp.eq.s32.totalorder %s45, 0
      %s48 = sadd.s32 %s47, 1
      %s49 = scalar_select %p46, %s47, %s48
      %p52 = pneg %p46
      %p53 = scmp.eq.s32.totalorder %s11, 1
      %p54 = por %p52, %p53
      %p55 = scmp.ne.s32.totalorder %s47, %s50
      %p56 = scmp.eq.s32.totalorder %s11, 0
      %p57 = por %p55, %p56
      %p58 = scmp.ne.s32.totalorder %s47, %s50
      %p59 = scmp.eq.s32.totalorder %s16, 1
      %p60 = por %p58, %p59
      %p61 = scmp.ne.s32.totalorder %s50, %s51
      %p62 = scmp.eq.s32.totalorder %s16, 0
      %p63 = por %p61, %p62
      %p64 = scmp.ne.s32.totalorder %s50, %s51
      %p65 = scmp.eq.s32.totalorder %s17, 1
      %p66 = por %p64, %p65
      %p68 = scmp.ne.s32.totalorder %s51, %s67
      %p69 = scmp.eq.s32.totalorder %s17, 0
      %p70 = por %p68, %p69
      %s71 = ssub.s32 %s11, %s18
      %p72 = scmp.eq.s32.totalorder %s71, 0
      %s74 = sadd.s32 %s73, 1
      %s75 = scalar_select %p72, %s73, %s74
      %p78 = pneg %p72
      %p79 = scmp.eq.s32.totalorder %s11, 1
      %p80 = por %p78, %p79
      %p81 = scmp.ne.s32.totalorder %s73, %s76
      %p82 = scmp.eq.s32.totalorder %s11, 0
      %p83 = por %p81, %p82
      %p84 = scmp.ne.s32.totalorder %s73, %s76
      %p85 = scmp.eq.s32.totalorder %s16, 1
      %p86 = por %p84, %p85
      %p87 = scmp.ne.s32.totalorder %s76, %s77
      %p88 = scmp.eq.s32.totalorder %s16, 0
      %p89 = por %p87, %p88
      %p90 = scmp.ne.s32.totalorder %s76, %s77
      %p91 = scmp.eq.s32.totalorder %s17, 1
      %p92 = por %p90, %p91
      %p94 = scmp.ne.s32.totalorder %s77, %s93
      %p95 = scmp.eq.s32.totalorder %s17, 0
      %p96 = por %p94, %p95
      %s98 = sadd.s32 %s97, 1
      %p101 = scmp.eq.s32.totalorder %s11, 1
      %p102 = scmp.ne.s32.totalorder %s97, %s99
      %p103 = scmp.eq.s32.totalorder %s11, 0
      %p104 = por %p102, %p103
      %p105 = scmp.ne.s32.totalorder %s97, %s99
      %p106 = scmp.eq.s32.totalorder %s16, 1
      %p107 = por %p105, %p106
      %p108 = scmp.ne.s32.totalorder %s99, %s100
      %p109 = scmp.eq.s32.totalorder %s16, 0
      %p110 = por %p108, %p109
      %p111 = scmp.ne.s32.totalorder %s99, %s100
      %p112 = scmp.eq.s32.totalorder %s17, 1
      %p113 = por %p111, %p112
      %p115 = scmp.ne.s32.totalorder %s100, %s114
      %p116 = scmp.eq.s32.totalorder %s17, 0
      %p117 = por %p115, %p116
      %s119 = sadd.s32 %s118, 1
      %p122 = scmp.eq.s32.totalorder %s11, 1
      %p123 = scmp.ne.s32.totalorder %s118, %s120
      %p124 = scmp.eq.s32.totalorder %s11, 0
      %p125 = por %p123, %p124
      %p126 = scmp.ne.s32.totalorder %s118, %s120
      %p127 = scmp.eq.s32.totalorder %s16, 1
      %p128 = por %p126, %p127
      %p129 = scmp.ne.s32.totalorder %s120, %s121
      %p130 = scmp.eq.s32.totalorder %s16, 0
      %p131 = por %p129, %p130
      %p132 = scmp.ne.s32.totalorder %s120, %s121
      %p133 = scmp.eq.s32.totalorder %s17, 1
      %p134 = por %p132, %p133
      %p136 = scmp.ne.s32.totalorder %s121, %s135
      %p137 = scmp.eq.s32.totalorder %s17, 0
      %p138 = por %p136, %p137
      %s139 = ssub.s32 %s11, %s18
      %p140 = scmp.eq.s32.totalorder %s139, 0
      %s142 = sadd.s32 %s141, 1
      %s143 = scalar_select %p140, %s141, %s142
      %p146 = pneg %p140
      %p147 = scmp.eq.s32.totalorder %s11, 1
      %p148 = por %p146, %p147
      %p149 = scmp.ne.s32.totalorder %s141, %s144
      %p150 = scmp.eq.s32.totalorder %s11, 0
      %p151 = por %p149, %p150
      %p152 = scmp.ne.s32.totalorder %s141, %s144
      %p153 = scmp.eq.s32.totalorder %s16, 1
      %p154 = por %p152, %p153
      %p155 = scmp.ne.s32.totalorder %s144, %s145
      %p156 = scmp.eq.s32.totalorder %s16, 0
      %p157 = por %p155, %p156
      %p158 = scmp.ne.s32.totalorder %s144, %s145
      %p159 = scmp.eq.s32.totalorder %s17, 1
      %p160 = por %p158, %p159
      %p162 = scmp.ne.s32.totalorder %s145, %s161
      %p163 = scmp.eq.s32.totalorder %s17, 0
      %p164 = por %p162, %p163
      %p165 = scmp.le.s32.totalorder 1, %s11
      %p166 = scmp.lt.s32.totalorder %s11, 3
      %p167 = pnand %p165, %p166
      %p168 = pneg %p167
      // Predicated region
      $region9: #{model_i_forward.14} parent=5 // pred_check
        _
      $region10: #{model_i_forward.14} parent=5 // pred_check_branch
        %170 = sbr.rel (%p167) target = $region12
      $region11: #{model_i_forward.14} parent=5 // pred_region
        %s171 = ssub.s32 %s11, 1
        // Predicated region
        $region13: #{model_i_forward.14} parent=11 // pred_check
          %p172 = pneg %p110
        $region14: #{model_i_forward.14} parent=11 // pred_check_branch
          %174 = sbr.rel (%p172) target = $region16
        $region15: #{model_i_forward.14} parent=11 // pred_region
          _
        $region16: #{model_i_forward.14} parent=11 // pred_fallthru
          _
        // Predicated region
        $region17: #{model_i_forward.14} parent=11 // pred_check
          %p175 = pneg %p131
        $region18: #{model_i_forward.14} parent=11 // pred_check_branch
          %177 = sbr.rel (%p175) target = $region20
        $region19: #{model_i_forward.14} parent=11 // pred_region
          _
        $region20: #{model_i_forward.14} parent=11 // pred_fallthru
          _
      $region12: #{model_i_forward.14} parent=5 // pred_fallthru
        _
      %p178 = scmp.lt.s32.totalorder %s11, 2
      // Predicated region
      $region21: #{model_i_forward.14} parent=5 // pred_check
        %p179 = pneg %p178
      $region22: #{model_i_forward.14} parent=5 // pred_check_branch
        %181 = sbr.rel (%p179) target = $region24
      $region23: #{model_i_forward.14} parent=5 // pred_region
        // Predicated region
        $region25: #{model_i_forward.14} parent=23 // pred_check
          %p182 = pneg %p31
        $region26: #{model_i_forward.14} parent=23 // pred_check_branch
          %184 = sbr.rel (%p182) target = $region28
        $region27: #{model_i_forward.14} parent=23 // pred_region
          %s185 = smul.u32 4, %s11
          %s186 = ssub.s32 7, %s185
          %p187 = scmp.lt.s32.totalorder %s186, 4
          %s188 = scalar_select %p187, %s186, 4
          %s189 = smul.u32 8, %s188
          %p190 = scmp.lt.s32.totalorder %s185, 6
          %s191 = scalar_select %p190, %s185, 6
          %s192 = smul.addr %s191, 8
          %s193 = scalar_lea.vmem %s0, %s192
          %s194 = smul.u32 4, %s11
          %s195 = ssub.s32 7, %s194
          %p196 = scmp.lt.s32.totalorder %s195, 4
          %s197 = scalar_select %p196, %s195, 4
          %s198 = smul.u32 8, %s197
        $region28: #{model_i_forward.14} parent=23 // pred_fallthru
          _
        // Predicated region
        $region29: #{model_i_forward.14} parent=23 // pred_check
          %p199 = pneg %p57
        $region30: #{model_i_forward.14} parent=23 // pred_check_branch
          %201 = sbr.rel (%p199) target = $region32
        $region31: #{model_i_forward.14} parent=23 // pred_region
          %s202 = smul.u32 4, %s11
          %s203 = ssub.s32 7, %s202
          %p204 = scmp.lt.s32.totalorder %s203, 4
          %s205 = scalar_select %p204, %s203, 4
          %s206 = smul.u32 8, %s205
          %p207 = scmp.lt.s32.totalorder %s202, 6
          %s208 = scalar_select %p207, %s202, 6
          %s209 = smul.addr %s208, 8
          %s210 = scalar_lea.vmem %s1, %s209
          %s211 = smul.u32 4, %s11
          %s212 = ssub.s32 7, %s211
          %p213 = scmp.lt.s32.totalorder %s212, 4
          %s214 = scalar_select %p213, %s212, 4
          %s215 = smul.u32 8, %s214
        $region32: #{model_i_forward.14} parent=23 // pred_fallthru
          _
        // Predicated region
        $region33: #{model_i_forward.14} parent=23 // pred_check
          %p216 = pneg %p83
        $region34: #{model_i_forward.14} parent=23 // pred_check_branch
          %218 = sbr.rel (%p216) target = $region36
        $region35: #{model_i_forward.14} parent=23 // pred_region
          %s219 = smul.u32 4, %s11
          %s220 = ssub.s32 7, %s219
          %p221 = scmp.lt.s32.totalorder %s220, 4
          %s222 = scalar_select %p221, %s220, 4
          %s223 = smul.u32 8, %s222
          %p224 = scmp.lt.s32.totalorder %s219, 6
          %s225 = scalar_select %p224, %s219, 6
          %s226 = smul.addr %s225, 8
          %s227 = scalar_lea.vmem %s2, %s226
          %s228 = smul.u32 4, %s11
          %s229 = ssub.s32 7, %s228
          %p230 = scmp.lt.s32.totalorder %s229, 4
          %s231 = scalar_select %p230, %s229, 4
          %s232 = smul.u32 8, %s231
        $region36: #{model_i_forward.14} parent=23 // pred_fallthru
          _
      $region24: #{model_i_forward.14} parent=5 // pred_fallthru
        _
      %p233 = scmp.le.s32.totalorder 1, %s11
      %p234 = scmp.lt.s32.totalorder %s11, 3
      %p235 = pnand %p233, %p234
      %p236 = pneg %p235
      // Predicated region
      $region37: #{model_i_forward.14} parent=5 // pred_check
        _
      $region38: #{model_i_forward.14} parent=5 // pred_check_branch
        %238 = sbr.rel (%p235) target = $region40
      $region39: #{model_i_forward.14} parent=5 // pred_region
        %s239 = ssub.s32 %s11, 1
        %s240 = smul.u32 4, %s16
        %s241 = ssub.s32 7, %s240
        %p242 = scmp.lt.s32.totalorder %s241, 4
        %s243 = scalar_select %p242, %s241, 4
        %s244 = smul.u32 8, %s243
        %p245 = scmp.lt.s32.totalorder %s240, 6
        %s246 = scalar_select %p245, %s240, 6
        %s247 = smul.addr %s246, 8
        %s248 = scalar_lea.vmem %s0, %s247
        %p249 = pneg %p37
        %p250 = pneg %p34
        %s251 = smul.u32 4, %s16
        %s252 = ssub.s32 7, %s251
        %p253 = scmp.lt.s32.totalorder %s252, 4
        %s254 = scalar_select %p253, %s252, 4
        %s255 = smul.u32 8, %s254
        %p256 = scmp.lt.s32.totalorder %s251, 6
        %s257 = scalar_select %p256, %s251, 6
        %s258 = smul.addr %s257, 8
        %s259 = scalar_lea.vmem %s1, %s258
        %p260 = pneg %p63
        %p261 = pneg %p60
        %s262 = smul.u32 4, %s16
        %s263 = ssub.s32 7, %s262
        %p264 = scmp.lt.s32.totalorder %s263, 4
        %s265 = scalar_select %p264, %s263, 4
        %s266 = smul.u32 8, %s265
        %p267 = scmp.lt.s32.totalorder %s262, 6
        %s268 = scalar_select %p267, %s262, 6
        %s269 = smul.addr %s268, 8
        %s270 = scalar_lea.vmem %s2, %s269
        %p271 = pneg %p89
        %p272 = pneg %p86
        %p273 = pneg %p110
        %p274 = pneg %p107
        %p275 = pneg %p131
        %p276 = pneg %p128
        %p277 = pneg %p157
        %p278 = pneg %p154
        %s279 = sand.u32 %s144, 1
        %s280 = sand.u32 %s144, 1
        %s281 = smul.addr %s280, 32
        %s282 = scalar_lea.vmem [#allocation2], %s281
        %s283 = smul.u32 4, %s16
        %s284 = ssub.s32 7, %s283
        %p285 = scmp.lt.s32.totalorder %s284, 4
        %s286 = scalar_select %p285, %s284, 4
        %s287 = smul.u32 8, %s286
        %p288 = scmp.lt.s32.totalorder %s283, 6
        %s289 = scalar_select %p288, %s283, 6
        %s290 = smul.addr %s289, 8
        %s291 = scalar_lea.vmem %s0, %s290
        %s292 = smul.u32 4, %s16
        %s293 = ssub.s32 7, %s292
        %p294 = scmp.lt.s32.totalorder %s293, 4
        %s295 = scalar_select %p294, %s293, 4
        %s296 = smul.u32 8, %s295
        %s297 = smul.u32 4, %s16
        %s298 = ssub.s32 7, %s297
        %p299 = scmp.lt.s32.totalorder %s298, 4
        %s300 = scalar_select %p299, %s298, 4
        %s301 = smul.u32 8, %s300
        %p302 = scmp.lt.s32.totalorder %s297, 6
        %s303 = scalar_select %p302, %s297, 6
        %s304 = smul.addr %s303, 8
        %s305 = scalar_lea.vmem %s1, %s304
        %s306 = smul.u32 4, %s16
        %s307 = ssub.s32 7, %s306
        %p308 = scmp.lt.s32.totalorder %s307, 4
        %s309 = scalar_select %p308, %s307, 4
        %s310 = smul.u32 8, %s309
        %s311 = smul.u32 4, %s16
        %s312 = ssub.s32 7, %s311
        %p313 = scmp.lt.s32.totalorder %s312, 4
        %s314 = scalar_select %p313, %s312, 4
        %s315 = smul.u32 8, %s314
        %p316 = scmp.lt.s32.totalorder %s311, 6
        %s317 = scalar_select %p316, %s311, 6
        %s318 = smul.addr %s317, 8
        %s319 = scalar_lea.vmem %s2, %s318
        %s320 = smul.u32 4, %s16
        %s321 = ssub.s32 7, %s320
        %p322 = scmp.lt.s32.totalorder %s321, 4
        %s323 = scalar_select %p322, %s321, 4
        %s324 = smul.u32 8, %s323
        %s325 = smul.u32 4, %s16
        %s326 = ssub.s32 7, %s325
        %p327 = scmp.lt.s32.totalorder %s326, 4
        %s328 = scalar_select %p327, %s326, 4
        %s329 = smul.u32 8, %s328
        %v331 = vld [vmem:[%s291] sm:$0xff]
        %v332 = vld [vmem:[%s291 + $0x8] sm:$0xff]
        %v333 = vld [vmem:[%s291 + $0x10] sm:$0xff]
        %v334 = vld [vmem:[%s291 + $0x18] sm:$0xff]
        %v335 = vpack.c.bf16 %v332, %v331
        %v336 = vpack.c.bf16 %v334, %v333
        %v337 = vld [vmem:[%s3] sm:$0xf]
        %v338 = vld [vmem:[%s3 + $0x4] sm:$0xf]
        %v339 = vld [vmem:[%s4] sm:$0x1]
        %v341 = vperm.slane %v339, 0
        %v345 = vunpack.c.l.b16 %v337
        %v346 = vunpack.c.l.b16 %v338
        %v347 = vpack.c.b16 %v346, %v345
        %vm349 = vcmask 130048
        %v351 = vsel %vm349, %v335, 0
        %v354 = vsel %vm349, %v336, 0
        %356 = vmatpush.bf16.msra.mxu0 0
        %357 = vmatpush.bf16.msra.mxu0 0
        %358 = vmatpush.bf16.msra.mxu0 0
        %359 = vmatpush.bf16.msra.mxu0 0
        %360 = vmatpush.bf16.msra.mxu0 0
        %361 = vmatpush.bf16.msra.mxu0 0
        %362 = vmatpush.bf16.msra.mxu0 0
        %363 = vmatpush.bf16.msra.mxu0 %v347
        %364 = vmatmul.bf16.gmra.mxu0 %v351
        %v365 = vpop.f32.mrf.mxu0
        %v366 = vadd.f32 %v341, %v365
        %v367 = vpop.f32.mrf.mxu0
        %v368 = vadd.f32 %v341, %v367
        %369 = vmatmul.bf16.gmra.mxu0 %v354
        %v370 = vpop.f32.mrf.mxu0
        %v371 = vadd.f32 %v341, %v370
        %v372 = vpop.f32.mrf.mxu0
        %v373 = vadd.f32 %v341, %v372
        %374 = vdwg.mxu0
        %v375 = vld [vmem:[%s319] sm:$0xff]
        %v376 = vld [vmem:[%s319 + $0x8] sm:$0xff]
        %v377 = vld [vmem:[%s319 + $0x10] sm:$0xff]
        %v378 = vld [vmem:[%s319 + $0x18] sm:$0xff]
        %v379 = vmul.f32 %v375, 0.62831855
        %v380 = vmul.f32 %v376, 0.62831855
        %v381 = vmul.f32 %v377, 0.62831855
        %v382 = vmul.f32 %v378, 0.62831855
        %v383 = vand.u32 2147483647, %v379
        %vm384 = vcmp.le.f32.partialorder %v383, 0.7853982
        %vm385 = vcmp.lt.s32.totalorder %v379, 0
        %v386 = vand.u32 %v379, 2139095040
        %v387 = vshrl.u32 %v386, 23
        %v388 = vsub.s32 %v387, 127
        %v389 = vand.u32 2147483647, %v379
        %v390 = vand.u32 %v389, 8388607
        %v391 = vor.u32 %v390, 8388608
        %v392 = vsub.s32 0, %v391
        %v393 = vadd.s32 %v388, 1
        %vm394 = vcmp.gt.s32.totalorder %v393, 0
        %v395 = vsel %vm394, %v393, 0
        %v396 = vshrl.u32 %v395, 5
        %v397 = vand.u32 %v395, 31
        %v398 = vsub.s32 32, %v397
        %v399 = vshrl.u32 683565275, %v398
        %v400 = vshll.u32 683565275, %v397
        %v401 = vshrl.u32 2475754826, %v398
        %v402 = vor.u32 %v400, %v401
        %v403 = vshll.u32 2475754826, %v397
        %v404 = vshrl.u32 2131351028, %v398
        %v405 = vor.u32 %v403, %v404
        %v406 = vshll.u32 2131351028, %v397
        %v407 = vshrl.u32 2102212464, %v398
        %v408 = vor.u32 %v406, %v407
        %v409 = vshll.u32 2102212464, %v397
        %v410 = vshrl.u32 920167782, %v398
        %v411 = vor.u32 %v409, %v410
        %v412 = vshll.u32 920167782, %v397
        %v413 = vshrl.u32 1326507024, %v398
        %v414 = vor.u32 %v412, %v413
        %vm415 = vcmp.lt.s32.totalorder %v396, 1
        %vm416 = vcmp.lt.s32.totalorder %v396, 2
        %vm417 = vcmp.lt.s32.totalorder %v396, 3
        %vm418 = vcmp.lt.s32.totalorder %v396, 4
        %v419 = vsel %vm415, %v399, %v402
        %v420 = vsel %vm418, %v408, 2102212464
        %v421 = vsel %vm417, %v405, %v420
        %v422 = vsel %vm416, %v419, %v421
        %v423 = vsel %vm415, %v402, %v405
        %v424 = vsel %vm418, %v411, 920167782
        %v425 = vsel %vm417, %v408, %v424
        %v426 = vsel %vm416, %v423, %v425
        %v427 = vsel %vm415, %v405, %v408
        %v428 = vsel %vm418, %v414, 1326507024
        %v429 = vsel %vm417, %v411, %v428
        %v430 = vsel %vm416, %v427, %v429
        %v431 = vshll.u32 %v391, 8
        %v432 = vand.u32 %v431, 65535
        %v433 = vshrl.u32 %v431, 16
        %v434 = vand.u32 %v430, 65535
        %v435 = vshrl.u32 %v430, 16
        %v436 = vmul.u32 %v432, %v434
        %v437 = vmul.u32 %v432, %v435
        %v438 = vmul.u32 %v433, %v434
        %v439 = vmul.u32 %v433, %v435
        %v440 = vshll.u32 %v437, 16
        %v441 = vshrl.u32 %v437, 16
        %v442 = vshll.u32 %v438, 16
        %v443 = vshrl.u32 %v438, 16
        %vm444 = vc.u32 %v436, %v440
        %v445 = vsel %vm444, 1, 0
        %v446 = vadd.s32 %v436, %v440
        %v447 = vadd.s32 %v439, %v445
        %vm448 = vc.u32 %v446, %v442
        %v449 = vsel %vm448, 1, 0
        %v450 = vadd.s32 %v446, %v442
        %v451 = vadd.s32 %v447, %v449
        %v452 = vadd.s32 %v451, %v441
        %v453 = vadd.s32 %v452, %v443
        %v454 = vand.u32 %v431, 65535
        %v455 = vshrl.u32 %v431, 16
        %v456 = vand.u32 %v426, 65535
        %v457 = vshrl.u32 %v426, 16
        %v458 = vmul.u32 %v454, %v456
        %v459 = vmul.u32 %v454, %v457
        %v460 = vmul.u32 %v455, %v456
        %v461 = vmul.u32 %v455, %v457
        %v462 = vshll.u32 %v459, 16
        %v463 = vshrl.u32 %v459, 16
        %v464 = vshll.u32 %v460, 16
        %v465 = vshrl.u32 %v460, 16
        %vm466 = vc.u32 %v458, %v462
        %v467 = vsel %vm466, 1, 0
        %v468 = vadd.s32 %v458, %v462
        %v469 = vadd.s32 %v461, %v467
        %vm470 = vc.u32 %v468, %v464
        %v471 = vsel %vm470, 1, 0
        %v472 = vadd.s32 %v468, %v464
        %v473 = vadd.s32 %v469, %v471
        %v474 = vadd.s32 %v473, %v463
        %v475 = vadd.s32 %v474, %v465
        %v476 = vmul.u32 %v431, %v422
        %v477 = vadd.s32 %v453, %v472
        %vm478 = vc.u32 %v453, %v472
        %v479 = vadd.s32 %v475, 1
        %v480 = vsel %vm478, %v479, %v475
        %v481 = vadd.s32 %v476, %v480
        %v482 = vadd.s32 %v481, 536870912
        %v483 = vshrl.u32 %v482, 30
        %v484 = vshll.u32 %v483, 30
        %v485 = vsub.s32 %v481, %v484
        %vm486 = vcmp.lt.s32.totalorder %v485, 0
        %v487 = vsub.s32 0, %v485
        %v488 = vsel %vm486, %v487, %v485
        %v489 = vclz %v488
        %v490 = vsub.s32 %v489, 2
        %vm491 = vcmp.gt.s32.totalorder 0, %v490
        %v492 = vsel %vm491, 0, %v490
        %v493 = vsub.s32 32, %v492
        %v494 = vshll.u32 %v485, %v492
        %v495 = vshrl.u32 %v477, %v493
        %v496 = vor.u32 %v494, %v495
        %v497 = vsub.s32 4294967266, %v492
        %v498 = vadd.s32 %v497, 127
        %v499 = vshll.u32 %v498, 23
        %v500 = vor.u32 4788187, %v499
        %v501 = vand.u32 2147483647, %v500
        %v503 = vcvt.s32.f32 %v496
        %v504 = vmul.f32 %v503, %v501
        %v505 = vxor.u32 %v504, 2147483648
        %v506 = vsel %vm385, %v505, %v504
        %v507 = vsub.s32 4, %v483
        %v508 = vsel %vm385, %v507, %v483
        %v509 = vsel %vm384, %v379, %v506
        %v510 = vsel %vm384, 0, %v508
        %v511 = vmul.f32 %v509, %v509
        %v512 = vmul.f32 %v511, -0.001358992
        %v513 = vadd.f32 %v512, 0.041655596
        %v514 = vmul.f32 %v511, %v513
        %v515 = vadd.f32 %v514, -0.4999988
        %v516 = vmul.f32 %v511, %v515
        %v517 = vadd.f32 1.0, %v516
        %v518 = vmul.f32 %v509, %v509
        %v519 = vmul.f32 %v518, -0.00019511016
        %v520 = vadd.f32 %v519, 0.008332121
        %v521 = vmul.f32 %v518, %v520
        %v522 = vadd.f32 %v521, -0.16666654
        %v523 = vmul.f32 %v518, %v522
        %v524 = vadd.f32 %v523, 1.0
        %v525 = vmul.f32 %v524, %v509
        %vm526 = vweird.f32 %v379
        %v527 = vand.u32 %v510, 3
        %vm528 = vcmp.lt.s32.totalorder %v527, 2
        %vm529 = vcmp.eq.s32.totalorder %v527, 0
        %v530 = vxor.u32 %v525, 2147483648
        %v531 = vsel %vm529, %v517, %v530
        %vm532 = vcmp.eq.s32.totalorder %v527, 2
        %v533 = vxor.u32 %v517, 2147483648
        %v534 = vsel %vm532, %v533, %v525
        %v535 = vsel %vm528, %v531, %v534
        %v536 = vsel %vm526, nan, %v535
        %v537 = vand.u32 2147483647, %v380
        %vm538 = vcmp.le.f32.partialorder %v537, 0.7853982
        %vm539 = vcmp.lt.s32.totalorder %v380, 0
        %v540 = vand.u32 %v380, 2139095040
        %v541 = vshrl.u32 %v540, 23
        %v542 = vsub.s32 %v541, 127
        %v543 = vand.u32 2147483647, %v380
        %v544 = vand.u32 %v543, 8388607
        %v545 = vor.u32 %v544, 8388608
        %v546 = vsub.s32 0, %v545
        %v547 = vadd.s32 %v542, 1
        %vm548 = vcmp.gt.s32.totalorder %v547, 0
        %v549 = vsel %vm548, %v547, 0
        %v550 = vshrl.u32 %v549, 5
        %v551 = vand.u32 %v549, 31
        %v552 = vsub.s32 32, %v551
        %v553 = vshrl.u32 683565275, %v552
        %v554 = vshll.u32 683565275, %v551
        %v555 = vshrl.u32 2475754826, %v552
        %v556 = vor.u32 %v554, %v555
        %v557 = vshll.u32 2475754826, %v551
        %v558 = vshrl.u32 2131351028, %v552
        %v559 = vor.u32 %v557, %v558
        %v560 = vshll.u32 2131351028, %v551
        %v561 = vshrl.u32 2102212464, %v552
        %v562 = vor.u32 %v560, %v561
        %v563 = vshll.u32 2102212464, %v551
        %v564 = vshrl.u32 920167782, %v552
        %v565 = vor.u32 %v563, %v564
        %v566 = vshll.u32 920167782, %v551
        %v567 = vshrl.u32 1326507024, %v552
        %v568 = vor.u32 %v566, %v567
        %vm569 = vcmp.lt.s32.totalorder %v550, 1
        %vm570 = vcmp.lt.s32.totalorder %v550, 2
        %vm571 = vcmp.lt.s32.totalorder %v550, 3
        %vm572 = vcmp.lt.s32.totalorder %v550, 4
        %v573 = vsel %vm569, %v553, %v556
        %v574 = vsel %vm572, %v562, 2102212464
        %v575 = vsel %vm571, %v559, %v574
        %v576 = vsel %vm570, %v573, %v575
        %v577 = vsel %vm569, %v556, %v559
        %v578 = vsel %vm572, %v565, 920167782
        %v579 = vsel %vm571, %v562, %v578
        %v580 = vsel %vm570, %v577, %v579
        %v581 = vsel %vm569, %v559, %v562
        %v582 = vsel %vm572, %v568, 1326507024
        %v583 = vsel %vm571, %v565, %v582
        %v584 = vsel %vm570, %v581, %v583
        %v585 = vshll.u32 %v545, 8
        %v586 = vand.u32 %v585, 65535
        %v587 = vshrl.u32 %v585, 16
        %v588 = vand.u32 %v584, 65535
        %v589 = vshrl.u32 %v584, 16
        %v590 = vmul.u32 %v586, %v588
        %v591 = vmul.u32 %v586, %v589
        %v592 = vmul.u32 %v587, %v588
        %v593 = vmul.u32 %v587, %v589
        %v594 = vshll.u32 %v591, 16
        %v595 = vshrl.u32 %v591, 16
        %v596 = vshll.u32 %v592, 16
        %v597 = vshrl.u32 %v592, 16
        %vm598 = vc.u32 %v590, %v594
        %v599 = vsel %vm598, 1, 0
        %v600 = vadd.s32 %v590, %v594
        %v601 = vadd.s32 %v593, %v599
        %vm602 = vc.u32 %v600, %v596
        %v603 = vsel %vm602, 1, 0
        %v604 = vadd.s32 %v600, %v596
        %v605 = vadd.s32 %v601, %v603
        %v606 = vadd.s32 %v605, %v595
        %v607 = vadd.s32 %v606, %v597
        %v608 = vand.u32 %v585, 65535
        %v609 = vshrl.u32 %v585, 16
        %v610 = vand.u32 %v580, 65535
        %v611 = vshrl.u32 %v580, 16
        %v612 = vmul.u32 %v608, %v610
        %v613 = vmul.u32 %v608, %v611
        %v614 = vmul.u32 %v609, %v610
        %v615 = vmul.u32 %v609, %v611
        %v616 = vshll.u32 %v613, 16
        %v617 = vshrl.u32 %v613, 16
        %v618 = vshll.u32 %v614, 16
        %v619 = vshrl.u32 %v614, 16
        %vm620 = vc.u32 %v612, %v616
        %v621 = vsel %vm620, 1, 0
        %v622 = vadd.s32 %v612, %v616
        %v623 = vadd.s32 %v615, %v621
        %vm624 = vc.u32 %v622, %v618
        %v625 = vsel %vm624, 1, 0
        %v626 = vadd.s32 %v622, %v618
        %v627 = vadd.s32 %v623, %v625
        %v628 = vadd.s32 %v627, %v617
        %v629 = vadd.s32 %v628, %v619
        %v630 = vmul.u32 %v585, %v576
        %v631 = vadd.s32 %v607, %v626
        %vm632 = vc.u32 %v607, %v626
        %v633 = vadd.s32 %v629, 1
        %v634 = vsel %vm632, %v633, %v629
        %v635 = vadd.s32 %v630, %v634
        %v636 = vadd.s32 %v635, 536870912
        %v637 = vshrl.u32 %v636, 30
        %v638 = vshll.u32 %v637, 30
        %v639 = vsub.s32 %v635, %v638
        %vm640 = vcmp.lt.s32.totalorder %v639, 0
        %v641 = vsub.s32 0, %v639
        %v642 = vsel %vm640, %v641, %v639
        %v643 = vclz %v642
        %v644 = vsub.s32 %v643, 2
        %vm645 = vcmp.gt.s32.totalorder 0, %v644
        %v646 = vsel %vm645, 0, %v644
        %v647 = vsub.s32 32, %v646
        %v648 = vshll.u32 %v639, %v646
        %v649 = vshrl.u32 %v631, %v647
        %v650 = vor.u32 %v648, %v649
        %v651 = vsub.s32 4294967266, %v646
        %v652 = vadd.s32 %v651, 127
        %v653 = vshll.u32 %v652, 23
        %v654 = vor.u32 4788187, %v653
        %v655 = vand.u32 2147483647, %v654
        %v657 = vcvt.s32.f32 %v650
        %v658 = vmul.f32 %v657, %v655
        %v659 = vxor.u32 %v658, 2147483648
        %v660 = vsel %vm539, %v659, %v658
        %v661 = vsub.s32 4, %v637
        %v662 = vsel %vm539, %v661, %v637
        %v663 = vsel %vm538, %v380, %v660
        %v664 = vsel %vm538, 0, %v662
        %v665 = vmul.f32 %v663, %v663
        %v666 = vmul.f32 %v665, -0.001358992
        %v667 = vadd.f32 %v666, 0.041655596
        %v668 = vmul.f32 %v665, %v667
        %v669 = vadd.f32 %v668, -0.4999988
        %v670 = vmul.f32 %v665, %v669
        %v671 = vadd.f32 1.0, %v670
        %v672 = vmul.f32 %v663, %v663
        %v673 = vmul.f32 %v672, -0.00019511016
        %v674 = vadd.f32 %v673, 0.008332121
        %v675 = vmul.f32 %v672, %v674
        %v676 = vadd.f32 %v675, -0.16666654
        %v677 = vmul.f32 %v672, %v676
        %v678 = vadd.f32 %v677, 1.0
        %v679 = vmul.f32 %v678, %v663
        %vm680 = vweird.f32 %v380
        %v681 = vand.u32 %v664, 3
        %vm682 = vcmp.lt.s32.totalorder %v681, 2
        %vm683 = vcmp.eq.s32.totalorder %v681, 0
        %v684 = vxor.u32 %v679, 2147483648
        %v685 = vsel %vm683, %v671, %v684
        %vm686 = vcmp.eq.s32.totalorder %v681, 2
        %v687 = vxor.u32 %v671, 2147483648
        %v688 = vsel %vm686, %v687, %v679
        %v689 = vsel %vm682, %v685, %v688
        %v690 = vsel %vm680, nan, %v689
        %v691 = vand.u32 2147483647, %v381
        %vm692 = vcmp.le.f32.partialorder %v691, 0.7853982
        %vm693 = vcmp.lt.s32.totalorder %v381, 0
        %v694 = vand.u32 %v381, 2139095040
        %v695 = vshrl.u32 %v694, 23
        %v696 = vsub.s32 %v695, 127
        %v697 = vand.u32 2147483647, %v381
        %v698 = vand.u32 %v697, 8388607
        %v699 = vor.u32 %v698, 8388608
        %v700 = vsub.s32 0, %v699
        %v701 = vadd.s32 %v696, 1
        %vm702 = vcmp.gt.s32.totalorder %v701, 0
        %v703 = vsel %vm702, %v701, 0
        %v704 = vshrl.u32 %v703, 5
        %v705 = vand.u32 %v703, 31
        %v706 = vsub.s32 32, %v705
        %v707 = vshrl.u32 683565275, %v706
        %v708 = vshll.u32 683565275, %v705
        %v709 = vshrl.u32 2475754826, %v706
        %v710 = vor.u32 %v708, %v709
        %v711 = vshll.u32 2475754826, %v705
        %v712 = vshrl.u32 2131351028, %v706
        %v713 = vor.u32 %v711, %v712
        %v714 = vshll.u32 2131351028, %v705
        %v715 = vshrl.u32 2102212464, %v706
        %v716 = vor.u32 %v714, %v715
        %v717 = vshll.u32 2102212464, %v705
        %v718 = vshrl.u32 920167782, %v706
        %v719 = vor.u32 %v717, %v718
        %v720 = vshll.u32 920167782, %v705
        %v721 = vshrl.u32 1326507024, %v706
        %v722 = vor.u32 %v720, %v721
        %vm723 = vcmp.lt.s32.totalorder %v704, 1
        %vm724 = vcmp.lt.s32.totalorder %v704, 2
        %vm725 = vcmp.lt.s32.totalorder %v704, 3
        %vm726 = vcmp.lt.s32.totalorder %v704, 4
        %v727 = vsel %vm723, %v707, %v710
        %v728 = vsel %vm726, %v716, 2102212464
        %v729 = vsel %vm725, %v713, %v728
        %v730 = vsel %vm724, %v727, %v729
        %v731 = vsel %vm723, %v710, %v713
        %v732 = vsel %vm726, %v719, 920167782
        %v733 = vsel %vm725, %v716, %v732
        %v734 = vsel %vm724, %v731, %v733
        %v735 = vsel %vm723, %v713, %v716
        %v736 = vsel %vm726, %v722, 1326507024
        %v737 = vsel %vm725, %v719, %v736
        %v738 = vsel %vm724, %v735, %v737
        %v739 = vshll.u32 %v699, 8
        %v740 = vand.u32 %v739, 65535
        %v741 = vshrl.u32 %v739, 16
        %v742 = vand.u32 %v738, 65535
        %v743 = vshrl.u32 %v738, 16
        %v744 = vmul.u32 %v740, %v742
        %v745 = vmul.u32 %v740, %v743
        %v746 = vmul.u32 %v741, %v742
        %v747 = vmul.u32 %v741, %v743
        %v748 = vshll.u32 %v745, 16
        %v749 = vshrl.u32 %v745, 16
        %v750 = vshll.u32 %v746, 16
        %v751 = vshrl.u32 %v746, 16
        %vm752 = vc.u32 %v744, %v748
        %v753 = vsel %vm752, 1, 0
        %v754 = vadd.s32 %v744, %v748
        %v755 = vadd.s32 %v747, %v753
        %vm756 = vc.u32 %v754, %v750
        %v757 = vsel %vm756, 1, 0
        %v758 = vadd.s32 %v754, %v750
        %v759 = vadd.s32 %v755, %v757
        %v760 = vadd.s32 %v759, %v749
        %v761 = vadd.s32 %v760, %v751
        %v762 = vand.u32 %v739, 65535
        %v763 = vshrl.u32 %v739, 16
        %v764 = vand.u32 %v734, 65535
        %v765 = vshrl.u32 %v734, 16
        %v766 = vmul.u32 %v762, %v764
        %v767 = vmul.u32 %v762, %v765
        %v768 = vmul.u32 %v763, %v764
        %v769 = vmul.u32 %v763, %v765
        %v770 = vshll.u32 %v767, 16
        %v771 = vshrl.u32 %v767, 16
        %v772 = vshll.u32 %v768, 16
        %v773 = vshrl.u32 %v768, 16
        %vm774 = vc.u32 %v766, %v770
        %v775 = vsel %vm774, 1, 0
        %v776 = vadd.s32 %v766, %v770
        %v777 = vadd.s32 %v769, %v775
        %vm778 = vc.u32 %v776, %v772
        %v779 = vsel %vm778, 1, 0
        %v780 = vadd.s32 %v776, %v772
        %v781 = vadd.s32 %v777, %v779
        %v782 = vadd.s32 %v781, %v771
        %v783 = vadd.s32 %v782, %v773
        %v784 = vmul.u32 %v739, %v730
        %v785 = vadd.s32 %v761, %v780
        %vm786 = vc.u32 %v761, %v780
        %v787 = vadd.s32 %v783, 1
        %v788 = vsel %vm786, %v787, %v783
        %v789 = vadd.s32 %v784, %v788
        %v790 = vadd.s32 %v789, 536870912
        %v791 = vshrl.u32 %v790, 30
        %v792 = vshll.u32 %v791, 30
        %v793 = vsub.s32 %v789, %v792
        %vm794 = vcmp.lt.s32.totalorder %v793, 0
        %v795 = vsub.s32 0, %v793
        %v796 = vsel %vm794, %v795, %v793
        %v797 = vclz %v796
        %v798 = vsub.s32 %v797, 2
        %vm799 = vcmp.gt.s32.totalorder 0, %v798
        %v800 = vsel %vm799, 0, %v798
        %v801 = vsub.s32 32, %v800
        %v802 = vshll.u32 %v793, %v800
        %v803 = vshrl.u32 %v785, %v801
        %v804 = vor.u32 %v802, %v803
        %v805 = vsub.s32 4294967266, %v800
        %v806 = vadd.s32 %v805, 127
        %v807 = vshll.u32 %v806, 23
        %v808 = vor.u32 4788187, %v807
        %v809 = vand.u32 2147483647, %v808
        %v811 = vcvt.s32.f32 %v804
        %v812 = vmul.f32 %v811, %v809
        %v813 = vxor.u32 %v812, 2147483648
        %v814 = vsel %vm693, %v813, %v812
        %v815 = vsub.s32 4, %v791
        %v816 = vsel %vm693, %v815, %v791
        %v817 = vsel %vm692, %v381, %v814
        %v818 = vsel %vm692, 0, %v816
        %v819 = vmul.f32 %v817, %v817
        %v820 = vmul.f32 %v819, -0.001358992
        %v821 = vadd.f32 %v820, 0.041655596
        %v822 = vmul.f32 %v819, %v821
        %v823 = vadd.f32 %v822, -0.4999988
        %v824 = vmul.f32 %v819, %v823
        %v825 = vadd.f32 1.0, %v824
        %v826 = vmul.f32 %v817, %v817
        %v827 = vmul.f32 %v826, -0.00019511016
        %v828 = vadd.f32 %v827, 0.008332121
        %v829 = vmul.f32 %v826, %v828
        %v830 = vadd.f32 %v829, -0.16666654
        %v831 = vmul.f32 %v826, %v830
        %v832 = vadd.f32 %v831, 1.0
        %v833 = vmul.f32 %v832, %v817
        %vm834 = vweird.f32 %v381
        %v835 = vand.u32 %v818, 3
        %vm836 = vcmp.lt.s32.totalorder %v835, 2
        %vm837 = vcmp.eq.s32.totalorder %v835, 0
        %v838 = vxor.u32 %v833, 2147483648
        %v839 = vsel %vm837, %v825, %v838
        %vm840 = vcmp.eq.s32.totalorder %v835, 2
        %v841 = vxor.u32 %v825, 2147483648
        %v842 = vsel %vm840, %v841, %v833
        %v843 = vsel %vm836, %v839, %v842
        %v844 = vsel %vm834, nan, %v843
        %v845 = vand.u32 2147483647, %v382
        %vm846 = vcmp.le.f32.partialorder %v845, 0.7853982
        %vm847 = vcmp.lt.s32.totalorder %v382, 0
        %v848 = vand.u32 %v382, 2139095040
        %v849 = vshrl.u32 %v848, 23
        %v850 = vsub.s32 %v849, 127
        %v851 = vand.u32 2147483647, %v382
        %v852 = vand.u32 %v851, 8388607
        %v853 = vor.u32 %v852, 8388608
        %v854 = vsub.s32 0, %v853
        %v855 = vadd.s32 %v850, 1
        %vm856 = vcmp.gt.s32.totalorder %v855, 0
        %v857 = vsel %vm856, %v855, 0
        %v858 = vshrl.u32 %v857, 5
        %v859 = vand.u32 %v857, 31
        %v860 = vsub.s32 32, %v859
        %v861 = vshrl.u32 683565275, %v860
        %v862 = vshll.u32 683565275, %v859
        %v863 = vshrl.u32 2475754826, %v860
        %v864 = vor.u32 %v862, %v863
        %v865 = vshll.u32 2475754826, %v859
        %v866 = vshrl.u32 2131351028, %v860
        %v867 = vor.u32 %v865, %v866
        %v868 = vshll.u32 2131351028, %v859
        %v869 = vshrl.u32 2102212464, %v860
        %v870 = vor.u32 %v868, %v869
        %v871 = vshll.u32 2102212464, %v859
        %v872 = vshrl.u32 920167782, %v860
        %v873 = vor.u32 %v871, %v872
        %v874 = vshll.u32 920167782, %v859
        %v875 = vshrl.u32 1326507024, %v860
        %v876 = vor.u32 %v874, %v875
        %vm877 = vcmp.lt.s32.totalorder %v858, 1
        %vm878 = vcmp.lt.s32.totalorder %v858, 2
        %vm879 = vcmp.lt.s32.totalorder %v858, 3
        %vm880 = vcmp.lt.s32.totalorder %v858, 4
        %v881 = vsel %vm877, %v861, %v864
        %v882 = vsel %vm880, %v870, 2102212464
        %v883 = vsel %vm879, %v867, %v882
        %v884 = vsel %vm878, %v881, %v883
        %v885 = vsel %vm877, %v864, %v867
        %v886 = vsel %vm880, %v873, 920167782
        %v887 = vsel %vm879, %v870, %v886
        %v888 = vsel %vm878, %v885, %v887
        %v889 = vsel %vm877, %v867, %v870
        %v890 = vsel %vm880, %v876, 1326507024
        %v891 = vsel %vm879, %v873, %v890
        %v892 = vsel %vm878, %v889, %v891
        %v893 = vshll.u32 %v853, 8
        %v894 = vand.u32 %v893, 65535
        %v895 = vshrl.u32 %v893, 16
        %v896 = vand.u32 %v892, 65535
        %v897 = vshrl.u32 %v892, 16
        %v898 = vmul.u32 %v894, %v896
        %v899 = vmul.u32 %v894, %v897
        %v900 = vmul.u32 %v895, %v896
        %v901 = vmul.u32 %v895, %v897
        %v902 = vshll.u32 %v899, 16
        %v903 = vshrl.u32 %v899, 16
        %v904 = vshll.u32 %v900, 16
        %v905 = vshrl.u32 %v900, 16
        %vm906 = vc.u32 %v898, %v902
        %v907 = vsel %vm906, 1, 0
        %v908 = vadd.s32 %v898, %v902
        %v909 = vadd.s32 %v901, %v907
        %vm910 = vc.u32 %v908, %v904
        %v911 = vsel %vm910, 1, 0
        %v912 = vadd.s32 %v908, %v904
        %v913 = vadd.s32 %v909, %v911
        %v914 = vadd.s32 %v913, %v903
        %v915 = vadd.s32 %v914, %v905
        %v916 = vand.u32 %v893, 65535
        %v917 = vshrl.u32 %v893, 16
        %v918 = vand.u32 %v888, 65535
        %v919 = vshrl.u32 %v888, 16
        %v920 = vmul.u32 %v916, %v918
        %v921 = vmul.u32 %v916, %v919
        %v922 = vmul.u32 %v917, %v918
        %v923 = vmul.u32 %v917, %v919
        %v924 = vshll.u32 %v921, 16
        %v925 = vshrl.u32 %v921, 16
        %v926 = vshll.u32 %v922, 16
        %v927 = vshrl.u32 %v922, 16
        %vm928 = vc.u32 %v920, %v924
        %v929 = vsel %vm928, 1, 0
        %v930 = vadd.s32 %v920, %v924
        %v931 = vadd.s32 %v923, %v929
        %vm932 = vc.u32 %v930, %v926
        %v933 = vsel %vm932, 1, 0
        %v934 = vadd.s32 %v930, %v926
        %v935 = vadd.s32 %v931, %v933
        %v936 = vadd.s32 %v935, %v925
        %v937 = vadd.s32 %v936, %v927
        %v938 = vmul.u32 %v893, %v884
        %v939 = vadd.s32 %v915, %v934
        %vm940 = vc.u32 %v915, %v934
        %v941 = vadd.s32 %v937, 1
        %v942 = vsel %vm940, %v941, %v937
        %v943 = vadd.s32 %v938, %v942
        %v944 = vadd.s32 %v943, 536870912
        %v945 = vshrl.u32 %v944, 30
        %v946 = vshll.u32 %v945, 30
        %v947 = vsub.s32 %v943, %v946
        %vm948 = vcmp.lt.s32.totalorder %v947, 0
        %v949 = vsub.s32 0, %v947
        %v950 = vsel %vm948, %v949, %v947
        %v951 = vclz %v950
        %v952 = vsub.s32 %v951, 2
        %vm953 = vcmp.gt.s32.totalorder 0, %v952
        %v954 = vsel %vm953, 0, %v952
        %v955 = vsub.s32 32, %v954
        %v956 = vshll.u32 %v947, %v954
        %v957 = vshrl.u32 %v939, %v955
        %v958 = vor.u32 %v956, %v957
        %v959 = vsub.s32 4294967266, %v954
        %v960 = vadd.s32 %v959, 127
        %v961 = vshll.u32 %v960, 23
        %v962 = vor.u32 4788187, %v961
        %v963 = vand.u32 2147483647, %v962
        %v965 = vcvt.s32.f32 %v958
        %v966 = vmul.f32 %v965, %v963
        %v967 = vxor.u32 %v966, 2147483648
        %v968 = vsel %vm847, %v967, %v966
        %v969 = vsub.s32 4, %v945
        %v970 = vsel %vm847, %v969, %v945
        %v971 = vsel %vm846, %v382, %v968
        %v972 = vsel %vm846, 0, %v970
        %v973 = vmul.f32 %v971, %v971
        %v974 = vmul.f32 %v973, -0.001358992
        %v975 = vadd.f32 %v974, 0.041655596
        %v976 = vmul.f32 %v973, %v975
        %v977 = vadd.f32 %v976, -0.4999988
        %v978 = vmul.f32 %v973, %v977
        %v979 = vadd.f32 1.0, %v978
        %v980 = vmul.f32 %v971, %v971
        %v981 = vmul.f32 %v980, -0.00019511016
        %v982 = vadd.f32 %v981, 0.008332121
        %v983 = vmul.f32 %v980, %v982
        %v984 = vadd.f32 %v983, -0.16666654
        %v985 = vmul.f32 %v980, %v984
        %v986 = vadd.f32 %v985, 1.0
        %v987 = vmul.f32 %v986, %v971
        %vm988 = vweird.f32 %v382
        %v989 = vand.u32 %v972, 3
        %vm990 = vcmp.lt.s32.totalorder %v989, 2
        %vm991 = vcmp.eq.s32.totalorder %v989, 0
        %v992 = vxor.u32 %v987, 2147483648
        %v993 = vsel %vm991, %v979, %v992
        %vm994 = vcmp.eq.s32.totalorder %v989, 2
        %v995 = vxor.u32 %v979, 2147483648
        %v996 = vsel %vm994, %v995, %v987
        %v997 = vsel %vm990, %v993, %v996
        %v998 = vsel %vm988, nan, %v997
        %v999 = vadd.f32 %v536, 1.0
        %v1000 = vadd.f32 %v690, 1.0
        %v1001 = vadd.f32 %v844, 1.0
        %v1002 = vadd.f32 %v998, 1.0
        %v1003 = vmul.f32 %v999, 0.5
        %v1004 = vmul.f32 %v1000, 0.5
        %v1005 = vmul.f32 %v1001, 0.5
        %v1006 = vmul.f32 %v1002, 0.5
        %vm1007 = vcmp.lt.f32.partialorder %v375, 5.0
        %vm1008 = vcmp.lt.f32.partialorder %v376, 5.0
        %vm1009 = vcmp.lt.f32.partialorder %v377, 5.0
        %vm1010 = vcmp.lt.f32.partialorder %v378, 5.0
        %v1011 = vsel %vm1007, %v1003, 0.0
        %v1012 = vsel %vm1008, %v1004, 0.0
        %v1013 = vsel %vm1009, %v1005, 0.0
        %v1014 = vsel %vm1010, %v1006, 0.0
        %1019 = vrot.lane.b32.xlu0 %v375, 127
        %v1020 = vpop.permute.xlu0 %1019
        %1021 = vrot.lane.b32.xlu0 %v376, 127
        %v1022 = vpop.permute.xlu0 %1021
        %1023 = vrot.lane.b32.xlu0 %v377, 127
        %v1024 = vpop.permute.xlu0 %1023
        %1025 = vrot.lane.b32.xlu0 %v378, 127
        %v1026 = vpop.permute.xlu0 %1025
        %v1031 = vmul.f32 %v1011, %v1020
        %v1032 = vmul.f32 %v1012, %v1022
        %v1033 = vmul.f32 %v1013, %v1024
        %v1034 = vmul.f32 %v1014, %v1026
        %v1035 = vld [vmem:[%s305] sm:$0xff]
        %v1036 = vld [vmem:[%s305 + $0x8] sm:$0xff]
        %v1037 = vld [vmem:[%s305 + $0x10] sm:$0xff]
        %v1038 = vld [vmem:[%s305 + $0x18] sm:$0xff]
        %v1039 = vmul.f32 %v1035, %v366
        %v1040 = vmul.f32 %v1036, %v368
        %v1041 = vmul.f32 %v1037, %v371
        %v1042 = vmul.f32 %v1038, %v373
        %1044 = vset.pattern.permute.xlu0 3
        %1045 = vperm.xlu0 %1044, %v1031
        %v1046 = vpop.permute.xlu0 %1045
        %1049 = vset.pattern.permute.xlu0 3
        %1050 = vperm.xlu0 %1049, %v1032
        %v1051 = vpop.permute.xlu0 %1050
        %1054 = vset.pattern.permute.xlu0 3
        %1055 = vperm.xlu0 %1054, %v1033
        %v1056 = vpop.permute.xlu0 %1055
        %1059 = vset.pattern.permute.xlu0 3
        %1060 = vperm.xlu0 %1059, %v1034
        %v1061 = vpop.permute.xlu0 %1060
        %v1063 = vmul.f32 %v1039, %v1046
        %v1064 = vmul.f32 %v1040, %v1051
        %v1065 = vmul.f32 %v1041, %v1056
        %v1066 = vmul.f32 %v1042, %v1061
        %vm1067 = vcmask 261120
        %1068 = vst.msk [vmem:[%s282] sm:$0xff] %vm1067, %v1063
        %1069 = vst.msk [vmem:[%s282 + $0x8] sm:$0xff] %vm1067, %v1064
        %1070 = vst.msk [vmem:[%s282 + $0x10] sm:$0xff] %vm1067, %v1065
        %1071 = vst.msk [vmem:[%s282 + $0x18] sm:$0xff] %vm1067, %v1066
        %s1072 = sand.u32 %s144, 1
        %s1073 = sand.u32 %s144, 1
        %s1074 = smul.addr %s1073, 32
        %s1075 = scalar_lea.vmem [#allocation2], %s1074
        // Predicated region
        $region41: #{model_i_forward.14} parent=39 // pred_check
          %p1076 = pneg %p154
        $region42: #{model_i_forward.14} parent=39 // pred_check_branch
          %1078 = sbr.rel (%p1076) target = $region44
        $region43: #{model_i_forward.14} parent=39 // pred_region
          %s1079 = smul.u32 4, %s16
          %s1080 = ssub.s32 7, %s1079
          %p1081 = scmp.lt.s32.totalorder %s1080, 4
          %s1082 = scalar_select %p1081, %s1080, 4
          %s1083 = smul.u32 8, %s1082
          %p1084 = scmp.ne.s32.totalorder 0, %s1083
          %s1085 = smul.addr %s1079, 8
          %s1086 = scalar_lea.vmem %s5, %s1085
          // Predicated region
          $region45: #{model_i_forward.14} parent=43 // pred_check
            %p1087 = pneg %p1084
          $region46: #{model_i_forward.14} parent=43 // pred_check_branch
            %1089 = sbr.rel (%p1087) target = $region48
          $region47: #{model_i_forward.14} parent=43 // pred_region
            // Predicated region
            $region49: #{model_i_forward.14} parent=47 // pred_check
              _
            $region50: #{model_i_forward.14} parent=47 // pred_check_branch
              %1091 = sbr.rel (0) target = $region52
            $region51: #{model_i_forward.14} parent=47 // pred_region
              // Predicated region
              $region71: #{model_i_forward.14} parent=51 // pred_check
                _
              $region72: #{model_i_forward.14} parent=51 // pred_check_branch
                %1147 = sbr.rel (0) target = $region74
              $region73: #{model_i_forward.14} parent=51 // pred_region
                %s1148 = sshrl.u32 %s1082, 2
                // While loop
                $region75: #{model_i_forward.14} parent=73 // loop_pre_header
                  _
                $region76: #{model_i_forward.14} parent=73 // loop_header
                  %s1150 = sphi 0, %s1152
                  %p1151 = scmp.ge.s32.totalorder %s1150, %s1148
                  %s1155 = sphi 0, %s1168
                  %s1156 = sphi %s1075, %s1171
                  %s1157 = sphi %s1086, %s1172
                $region77: #{model_i_forward.14} parent=73 // loop_header_branch
                  %1154 = sbr.rel (%p1151) target = $region81
                $region78: #{model_i_forward.14} parent=73 // loop_body
                  %v1158 = vld [vmem:[%s1156] sm:$0xff]
                  %1159 = vst [vmem:[%s1157] sm:$0xff] %v1158
                  %v1160 = vld [vmem:[%s1156 + $0x8] sm:$0xff]
                  %1161 = vst [vmem:[%s1157 + $0x8] sm:$0xff] %v1160
                  %v1162 = vld [vmem:[%s1156 + $0x10] sm:$0xff]
                  %1163 = vst [vmem:[%s1157 + $0x10] sm:$0xff] %v1162
                  %v1164 = vld [vmem:[%s1156 + $0x18] sm:$0xff]
                  %1165 = vst [vmem:[%s1157 + $0x18] sm:$0xff] %v1164
                  %s1166 = sadd.s32 1, %s1155
                  %p1167 = scmp.ge.s32.totalorder %s1166, %s1148
                  %s1168 = scalar_select %p1167, 0, %s1166
                  %s1169 = smul.u32 %s1168, 32
                  %s1170 = smul.u32 %s1168, 32
                  %s1171 = scalar_lea.vmem %s1075, %s1169 [#allocation2]
                  %s1172 = scalar_lea.vmem %s1086, %s1170
                $region79: #{model_i_forward.14} parent=73 // loop_footer
                  %s1152 = sadd.s32 %s1150, 1
                $region80: #{model_i_forward.14} parent=73 // loop_footer_branch
                  %1149 = sbr.rel target = $region76
                $region81: #{model_i_forward.14} parent=73 // loop_exit
                  _
                %s1173 = sshrl.u32 %s1082, 2
                %s1174 = sand.u32 %s1082, 3
                %s1175 = smul.u32 %s1173, 4
                %s1176 = smul.u32 8, %s1175
                %s1177 = scalar_lea.vmem %s1075, %s1176 [#allocation2]
                %s1178 = smul.u32 8, %s1175
                %s1179 = scalar_lea.vmem %s1086, %s1178
                // While loop
                $region82: #{model_i_forward.14} parent=73 // loop_pre_header
                  _
                $region83: #{model_i_forward.14} parent=73 // loop_header
                  %s1181 = sphi 0, %s1183
                  %p1182 = scmp.ge.s32.totalorder %s1181, %s1174
                  %s1186 = sphi 0, %s1193
                  %s1187 = sphi %s1177, %s1196
                  %s1188 = sphi %s1179, %s1197
                $region84: #{model_i_forward.14} parent=73 // loop_header_branch
                  %1185 = sbr.rel (%p1182) target = $region88
                $region85: #{model_i_forward.14} parent=73 // loop_body
                  %v1189 = vld [vmem:[%s1187] sm:$0xff]
                  %1190 = vst [vmem:[%s1188] sm:$0xff] %v1189
                  %s1191 = sadd.s32 1, %s1186
                  %p1192 = scmp.ge.s32.totalorder %s1191, %s1174
                  %s1193 = scalar_select %p1192, 0, %s1191
                  %s1194 = smul.u32 %s1193, 8
                  %s1195 = smul.u32 %s1193, 8
                  %s1196 = scalar_lea.vmem %s1177, %s1194 [#allocation2]
                  %s1197 = scalar_lea.vmem %s1179, %s1195
                $region86: #{model_i_forward.14} parent=73 // loop_footer
                  %s1183 = sadd.s32 %s1181, 1
                $region87: #{model_i_forward.14} parent=73 // loop_footer_branch
                  %1180 = sbr.rel target = $region83
                $region88: #{model_i_forward.14} parent=73 // loop_exit
                  _
              $region74: #{model_i_forward.14} parent=51 // pred_fallthru
                _
              // Predicated region
              $region89: #{model_i_forward.14} parent=51 // pred_check
                _
              $region90: #{model_i_forward.14} parent=51 // pred_check_branch
                %1199 = sbr.rel target = $region92
              $region91: #{model_i_forward.14} parent=51 // pred_region
                _
              $region92: #{model_i_forward.14} parent=51 // pred_fallthru
                _
            $region52: #{model_i_forward.14} parent=47 // pred_fallthru
              _
            // Predicated region
            $region53: #{model_i_forward.14} parent=47 // pred_check
              _
            $region54: #{model_i_forward.14} parent=47 // pred_check_branch
              %1093 = sbr.rel target = $region56
            $region55: #{model_i_forward.14} parent=47 // pred_region
              %s1095 = ssub.s32 256, 1
              %s1096 = sshrl.u32 %s1082, 2
              // While loop
              $region57: #{model_i_forward.14} parent=55 // loop_pre_header
                _
              $region58: #{model_i_forward.14} parent=55 // loop_header
                %s1098 = sphi 0, %s1100
                %p1099 = scmp.ge.s32.totalorder %s1098, %s1096
                %s1103 = sphi 0, %s1116
                %s1104 = sphi %s1075, %s1119
                %s1105 = sphi %s1086, %s1120
              $region59: #{model_i_forward.14} parent=55 // loop_header_branch
                %1102 = sbr.rel (%p1099) target = $region63
              $region60: #{model_i_forward.14} parent=55 // loop_body
                %v1106 = vld [vmem:[%s1104] sm:%s1095]
                %1107 = vst [vmem:[%s1105] sm:%s1095] %v1106
                %v1108 = vld [vmem:[%s1104 + $0x8] sm:%s1095]
                %1109 = vst [vmem:[%s1105 + $0x8] sm:%s1095] %v1108
                %v1110 = vld [vmem:[%s1104 + $0x10] sm:%s1095]
                %1111 = vst [vmem:[%s1105 + $0x10] sm:%s1095] %v1110
                %v1112 = vld [vmem:[%s1104 + $0x18] sm:%s1095]
                %1113 = vst [vmem:[%s1105 + $0x18] sm:%s1095] %v1112
                %s1114 = sadd.s32 1, %s1103
                %p1115 = scmp.ge.s32.totalorder %s1114, %s1096
                %s1116 = scalar_select %p1115, 0, %s1114
                %s1117 = smul.u32 %s1116, 32
                %s1118 = smul.u32 %s1116, 32
                %s1119 = scalar_lea.vmem %s1075, %s1117 [#allocation2]
                %s1120 = scalar_lea.vmem %s1086, %s1118
              $region61: #{model_i_forward.14} parent=55 // loop_footer
                %s1100 = sadd.s32 %s1098, 1
              $region62: #{model_i_forward.14} parent=55 // loop_footer_branch
                %1097 = sbr.rel target = $region58
              $region63: #{model_i_forward.14} parent=55 // loop_exit
                _
              %s1121 = sshrl.u32 %s1082, 2
              %s1122 = sand.u32 %s1082, 3
              %s1123 = smul.u32 %s1121, 4
              %s1124 = smul.u32 8, %s1123
              %s1125 = scalar_lea.vmem %s1075, %s1124 [#allocation2]
              %s1126 = smul.u32 8, %s1123
              %s1127 = scalar_lea.vmem %s1086, %s1126
              // While loop
              $region64: #{model_i_forward.14} parent=55 // loop_pre_header
                _
              $region65: #{model_i_forward.14} parent=55 // loop_header
                %s1129 = sphi 0, %s1131
                %p1130 = scmp.ge.s32.totalorder %s1129, %s1122
                %s1134 = sphi 0, %s1141
                %s1135 = sphi %s1125, %s1144
                %s1136 = sphi %s1127, %s1145
              $region66: #{model_i_forward.14} parent=55 // loop_header_branch
                %1133 = sbr.rel (%p1130) target = $region70
              $region67: #{model_i_forward.14} parent=55 // loop_body
                %v1137 = vld [vmem:[%s1135] sm:%s1095]
                %1138 = vst [vmem:[%s1136] sm:%s1095] %v1137
                %s1139 = sadd.s32 1, %s1134
                %p1140 = scmp.ge.s32.totalorder %s1139, %s1122
                %s1141 = scalar_select %p1140, 0, %s1139
                %s1142 = smul.u32 %s1141, 8
                %s1143 = smul.u32 %s1141, 8
                %s1144 = scalar_lea.vmem %s1125, %s1142 [#allocation2]
                %s1145 = scalar_lea.vmem %s1127, %s1143
              $region68: #{model_i_forward.14} parent=55 // loop_footer
                %s1131 = sadd.s32 %s1129, 1
              $region69: #{model_i_forward.14} parent=55 // loop_footer_branch
                %1128 = sbr.rel target = $region65
              $region70: #{model_i_forward.14} parent=55 // loop_exit
                _
            $region56: #{model_i_forward.14} parent=47 // pred_fallthru
              _
          $region48: #{model_i_forward.14} parent=43 // pred_fallthru
            _
          %1200 = vnop
        $region44: #{model_i_forward.14} parent=39 // pred_fallthru
          _
      $region40: #{model_i_forward.14} parent=5 // pred_fallthru
        _
      %p1201 = scmp.le.s32.totalorder 2, %s11
      // Predicated region
      $region93: #{model_i_forward.14} parent=5 // pred_check
        %p1202 = pneg %p1201
      $region94: #{model_i_forward.14} parent=5 // pred_check_branch
        %1204 = sbr.rel (%p1202) target = $region96
      $region95: #{model_i_forward.14} parent=5 // pred_region
        %s1205 = ssub.s32 %s11, 2
        // Predicated region
        $region97: #{model_i_forward.14} parent=95 // pred_check
          %p1206 = pneg %p160
        $region98: #{model_i_forward.14} parent=95 // pred_check_branch
          %1208 = sbr.rel (%p1206) target = $region100
        $region99: #{model_i_forward.14} parent=95 // pred_region
          %s1209 = sand.u32 %s145, 1
          %s1210 = sand.u32 %s145, 1
          %s1211 = smul.addr %s1210, 32
          %s1212 = scalar_lea.vmem [#allocation2], %s1211
        $region100: #{model_i_forward.14} parent=95 // pred_fallthru
          _
      $region96: #{model_i_forward.14} parent=5 // pred_fallthru
        _
    $region6: #{model_i_forward.14} parent=1 // loop_footer
      %s15 = sadd.s32 1, %s11
    $region7: #{model_i_forward.14} parent=1 // loop_footer_branch
      %10 = sbr.rel target = $region3
    $region8: #{model_i_forward.14} parent=1 // loop_exit
      _

// kernel: model_i_forward.18
$region0: #{model_i_forward.18}
  #allocation0 [shape = 'u32[]', space=smem, size = 0x4, offset = 0x4, fixed_abs, tag = 'smem constant byte address 0x4 - core index']
  #allocation1 [shape = 'u32[72,128]{1,0:T(1,128)}', space=vmem, size = 0x9000, scoped, tag = 'internal scratch']
  %s0 = inlined_call_operand.vmem [shape: f32[56,16], index: 0, kind: input, shape index: {}]
  %s1 = inlined_call_operand.vmem [shape: bf16[16,128], index: 1, kind: input, shape index: {}]
  %s2 = inlined_call_operand.vmem [shape: f32[1,128], index: 2, kind: input, shape index: {}]
  %s3 = inlined_call_operand.vmem [shape: f32[56,128], index: 3, kind: output, shape index: {}]
  %s4 = sld [smem:[#allocation0]]
  $region93: #{model_i_forward.18} parent=0
    _
  %s6 = ssub.s32 1, %s4
  %s7 = scalar_select 0, %s6, %s4
  $region1: #{model_i_forward.18} parent=0
    #allocation2 [shape = 'u8[32768]{0}', space=vmem, size = 0x8000, scoped, tag = 'output window, operand 0']
    loop: start=0, step=1, limit=4
    $region2: #{model_i_forward.18} parent=1 // loop_pre_header
      _
    $region3: #{model_i_forward.18} parent=1 // loop_header
      %s9 = sphi 0, %s13
      %p10 = scmp.ge.s32.totalorder %s9, 4
      %s19 = sphi 0, %s21
      %s22 = sphi 0, %s19
      %s23 = sphi 0, %s22
      %s39 = sphi 0, %s23
      %s43 = sphi 0, %s43
      %s45 = sphi 0, %s43
      %s46 = sphi 0, %s45
      %s60 = sphi 0, %s46
      %s64 = sphi 0, %s64
      %s66 = sphi 0, %s64
      %s67 = sphi 0, %s66
      %s81 = sphi 0, %s67
      %s87 = sphi 0, %s89
      %s90 = sphi 0, %s87
      %s91 = sphi 0, %s90
      %s107 = sphi 0, %s91
    $region4: #{model_i_forward.18} parent=1 // loop_header_branch
      %12 = sbr.rel (%p10) target = $region8
    $region5: #{model_i_forward.18} parent=1 // loop_body
      %s14 = ssub.s32 %s9, 1
      %s15 = ssub.s32 %s9, 2
      %s16 = sadd.s32 %s9, 1
      %s17 = ssub.s32 %s9, %s16
      %p18 = scmp.eq.s32.totalorder %s17, 0
      %s20 = sadd.s32 %s19, 1
      %s21 = scalar_select %p18, %s19, %s20
      %p24 = pneg %p18
      %p25 = scmp.eq.s32.totalorder %s9, 1
      %p26 = por %p24, %p25
      %p27 = scmp.ne.s32.totalorder %s19, %s22
      %p28 = scmp.eq.s32.totalorder %s9, 0
      %p29 = por %p27, %p28
      %p30 = scmp.ne.s32.totalorder %s19, %s22
      %p31 = scmp.eq.s32.totalorder %s14, 1
      %p32 = por %p30, %p31
      %p33 = scmp.ne.s32.totalorder %s22, %s23
      %p34 = scmp.eq.s32.totalorder %s14, 0
      %p35 = por %p33, %p34
      %p36 = scmp.ne.s32.totalorder %s22, %s23
      %p37 = scmp.eq.s32.totalorder %s15, 1
      %p38 = por %p36, %p37
      %p40 = scmp.ne.s32.totalorder %s23, %s39
      %p41 = scmp.eq.s32.totalorder %s15, 0
      %p42 = por %p40, %p41
      %s44 = sadd.s32 %s43, 1
      %p47 = scmp.eq.s32.totalorder %s9, 1
      %p48 = scmp.ne.s32.totalorder %s43, %s45
      %p49 = scmp.eq.s32.totalorder %s9, 0
      %p50 = por %p48, %p49
      %p51 = scmp.ne.s32.totalorder %s43, %s45
      %p52 = scmp.eq.s32.totalorder %s14, 1
      %p53 = por %p51, %p52
      %p54 = scmp.ne.s32.totalorder %s45, %s46
      %p55 = scmp.eq.s32.totalorder %s14, 0
      %p56 = por %p54, %p55
      %p57 = scmp.ne.s32.totalorder %s45, %s46
      %p58 = scmp.eq.s32.totalorder %s15, 1
      %p59 = por %p57, %p58
      %p61 = scmp.ne.s32.totalorder %s46, %s60
      %p62 = scmp.eq.s32.totalorder %s15, 0
      %p63 = por %p61, %p62
      %s65 = sadd.s32 %s64, 1
      %p68 = scmp.eq.s32.totalorder %s9, 1
      %p69 = scmp.ne.s32.totalorder %s64, %s66
      %p70 = scmp.eq.s32.totalorder %s9, 0
      %p71 = por %p69, %p70
      %p72 = scmp.ne.s32.totalorder %s64, %s66
      %p73 = scmp.eq.s32.totalorder %s14, 1
      %p74 = por %p72, %p73
      %p75 = scmp.ne.s32.totalorder %s66, %s67
      %p76 = scmp.eq.s32.totalorder %s14, 0
      %p77 = por %p75, %p76
      %p78 = scmp.ne.s32.totalorder %s66, %s67
      %p79 = scmp.eq.s32.totalorder %s15, 1
      %p80 = por %p78, %p79
      %p82 = scmp.ne.s32.totalorder %s67, %s81
      %p83 = scmp.eq.s32.totalorder %s15, 0
      %p84 = por %p82, %p83
      %s85 = ssub.s32 %s9, %s16
      %p86 = scmp.eq.s32.totalorder %s85, 0
      %s88 = sadd.s32 %s87, 1
      %s89 = scalar_select %p86, %s87, %s88
      %p92 = pneg %p86
      %p93 = scmp.eq.s32.totalorder %s9, 1
      %p94 = por %p92, %p93
      %p95 = scmp.ne.s32.totalorder %s87, %s90
      %p96 = scmp.eq.s32.totalorder %s9, 0
      %p97 = por %p95, %p96
      %p98 = scmp.ne.s32.totalorder %s87, %s90
      %p99 = scmp.eq.s32.totalorder %s14, 1
      %p100 = por %p98, %p99
      %p101 = scmp.ne.s32.totalorder %s90, %s91
      %p102 = scmp.eq.s32.totalorder %s14, 0
      %p103 = por %p101, %p102
      %p104 = scmp.ne.s32.totalorder %s90, %s91
      %p105 = scmp.eq.s32.totalorder %s15, 1
      %p106 = por %p104, %p105
      %p108 = scmp.ne.s32.totalorder %s91, %s107
      %p109 = scmp.eq.s32.totalorder %s15, 0
      %p110 = por %p108, %p109
      %p111 = scmp.le.s32.totalorder 1, %s9
      %p112 = scmp.lt.s32.totalorder %s9, 3
      %p113 = pnand %p111, %p112
      %p114 = pneg %p113
      // Predicated region
      $region9: #{model_i_forward.18} parent=5 // pred_check
        _
      $region10: #{model_i_forward.18} parent=5 // pred_check_branch
        %116 = sbr.rel (%p113) target = $region12
      $region11: #{model_i_forward.18} parent=5 // pred_region
        %s117 = ssub.s32 %s9, 1
        // Predicated region
        $region13: #{model_i_forward.18} parent=11 // pred_check
          %p118 = pneg %p56
        $region14: #{model_i_forward.18} parent=11 // pred_check_branch
          %120 = sbr.rel (%p118) target = $region16
        $region15: #{model_i_forward.18} parent=11 // pred_region
          _
        $region16: #{model_i_forward.18} parent=11 // pred_fallthru
          _
        // Predicated region
        $region17: #{model_i_forward.18} parent=11 // pred_check
          %p121 = pneg %p77
        $region18: #{model_i_forward.18} parent=11 // pred_check_branch
          %123 = sbr.rel (%p121) target = $region20
        $region19: #{model_i_forward.18} parent=11 // pred_region
          _
        $region20: #{model_i_forward.18} parent=11 // pred_fallthru
          _
      $region12: #{model_i_forward.18} parent=5 // pred_fallthru
        _
      %p124 = scmp.lt.s32.totalorder %s9, 2
      // Predicated region
      $region21: #{model_i_forward.18} parent=5 // pred_check
        %p125 = pneg %p124
      $region22: #{model_i_forward.18} parent=5 // pred_check_branch
        %127 = sbr.rel (%p125) target = $region24
      $region23: #{model_i_forward.18} parent=5 // pred_region
        // Predicated region
        $region25: #{model_i_forward.18} parent=23 // pred_check
          %p128 = pneg %p29
        $region26: #{model_i_forward.18} parent=23 // pred_check_branch
          %130 = sbr.rel (%p128) target = $region28
        $region27: #{model_i_forward.18} parent=23 // pred_region
          %s131 = smul.u32 4, %s9
          %s132 = ssub.s32 7, %s131
          %p133 = scmp.lt.s32.totalorder %s132, 4
          %s134 = scalar_select %p133, %s132, 4
          %s135 = smul.u32 8, %s134
          %p136 = scmp.lt.s32.totalorder %s131, 6
          %s137 = scalar_select %p136, %s131, 6
          %s138 = smul.addr %s137, 8
          %s139 = scalar_lea.vmem %s0, %s138
          %s140 = smul.u32 4, %s9
          %s141 = ssub.s32 7, %s140
          %p142 = scmp.lt.s32.totalorder %s141, 4
          %s143 = scalar_select %p142, %s141, 4
          %s144 = smul.u32 8, %s143
        $region28: #{model_i_forward.18} parent=23 // pred_fallthru
          _
      $region24: #{model_i_forward.18} parent=5 // pred_fallthru
        _
      %p145 = scmp.le.s32.totalorder 1, %s9
      %p146 = scmp.lt.s32.totalorder %s9, 3
      %p147 = pnand %p145, %p146
      %p148 = pneg %p147
      // Predicated region
      $region29: #{model_i_forward.18} parent=5 // pred_check
        _
      $region30: #{model_i_forward.18} parent=5 // pred_check_branch
        %150 = sbr.rel (%p147) target = $region32
      $region31: #{model_i_forward.18} parent=5 // pred_region
        %s151 = ssub.s32 %s9, 1
        %s152 = smul.u32 4, %s14
        %s153 = ssub.s32 7, %s152
        %p154 = scmp.lt.s32.totalorder %s153, 4
        %s155 = scalar_select %p154, %s153, 4
        %s156 = smul.u32 8, %s155
        %p157 = scmp.lt.s32.totalorder %s152, 6
        %s158 = scalar_select %p157, %s152, 6
        %s159 = smul.addr %s158, 8
        %s160 = scalar_lea.vmem %s0, %s159
        %p161 = pneg %p35
        %p162 = pneg %p32
        %p163 = pneg %p56
        %p164 = pneg %p53
        %p165 = pneg %p77
        %p166 = pneg %p74
        %p167 = pneg %p103
        %p168 = pneg %p100
        %s169 = sand.u32 %s90, 1
        %s170 = sand.u32 %s90, 1
        %s171 = smul.addr %s170, 32
        %s172 = scalar_lea.vmem [#allocation2], %s171
        %s173 = smul.u32 4, %s14
        %s174 = ssub.s32 7, %s173
        %p175 = scmp.lt.s32.totalorder %s174, 4
        %s176 = scalar_select %p175, %s174, 4
        %s177 = smul.u32 8, %s176
        %p178 = scmp.lt.s32.totalorder %s173, 6
        %s179 = scalar_select %p178, %s173, 6
        %s180 = smul.addr %s179, 8
        %s181 = scalar_lea.vmem %s0, %s180
        %s182 = smul.u32 4, %s14
        %s183 = ssub.s32 7, %s182
        %p184 = scmp.lt.s32.totalorder %s183, 4
        %s185 = scalar_select %p184, %s183, 4
        %s186 = smul.u32 8, %s185
        %s187 = smul.u32 4, %s14
        %s188 = ssub.s32 7, %s187
        %p189 = scmp.lt.s32.totalorder %s188, 4
        %s190 = scalar_select %p189, %s188, 4
        %s191 = smul.u32 8, %s190
        %v193 = vld [vmem:[%s181] sm:$0xff]
        %v194 = vld [vmem:[%s181 + $0x8] sm:$0xff]
        %v195 = vld [vmem:[%s181 + $0x10] sm:$0xff]
        %v196 = vld [vmem:[%s181 + $0x18] sm:$0xff]
        %v197 = vpack.c.bf16 %v194, %v193
        %v198 = vpack.c.bf16 %v196, %v195
        %v199 = vld [vmem:[%s1] sm:$0xf]
        %v200 = vld [vmem:[%s1 + $0x4] sm:$0xf]
        %v201 = vld [vmem:[%s2] sm:$0x1]
        %v203 = vperm.slane %v201, 0
        %v207 = vunpack.c.l.b16 %v199
        %v208 = vunpack.c.l.b16 %v200
        %v209 = vpack.c.b16 %v208, %v207
        %vm211 = vcmask 130048
        %v213 = vsel %vm211, %v197, 0
        %v216 = vsel %vm211, %v198, 0
        %218 = vmatpush.bf16.msra.mxu0 0
        %219 = vmatpush.bf16.msra.mxu0 0
        %220 = vmatpush.bf16.msra.mxu0 0
        %221 = vmatpush.bf16.msra.mxu0 0
        %222 = vmatpush.bf16.msra.mxu0 0
        %223 = vmatpush.bf16.msra.mxu0 0
        %224 = vmatpush.bf16.msra.mxu0 0
        %225 = vmatpush.bf16.msra.mxu0 %v209
        %226 = vmatmul.bf16.gmra.mxu0 %v213
        %v227 = vpop.f32.mrf.mxu0
        %v228 = vadd.f32 %v203, %v227
        %v229 = vpop.f32.mrf.mxu0
        %v230 = vadd.f32 %v203, %v229
        %231 = vmatmul.bf16.gmra.mxu0 %v216
        %v232 = vpop.f32.mrf.mxu0
        %v233 = vadd.f32 %v203, %v232
        %v234 = vpop.f32.mrf.mxu0
        %v235 = vadd.f32 %v203, %v234
        %236 = vdwg.mxu0
        %v237 = vxor.u32 %v228, 2147483648
        %v238 = vxor.u32 %v230, 2147483648
        %v239 = vxor.u32 %v233, 2147483648
        %v240 = vxor.u32 %v235, 2147483648
        %v241 = vmul.f32 %v237, 1.442695
        %v242 = vpow.pop %v241
        %v243 = vmul.f32 %v238, 1.442695
        %v244 = vpow.pop %v243
        %v245 = vmul.f32 %v239, 1.442695
        %v246 = vpow.pop %v245
        %v247 = vmul.f32 %v240, 1.442695
        %v248 = vpow.pop %v247
        %v249 = vadd.f32 %v242, 1.0
        %v250 = vadd.f32 %v244, 1.0
        %v251 = vadd.f32 %v246, 1.0
        %v252 = vadd.f32 %v248, 1.0
        %v253 = vrcp.pop %v249
        %v254 = vmul.f32 %v249, %v253
        %v255 = vsub.f32 1.0, %v254
        %v256 = vmul.f32 %v253, %v255
        %v257 = vadd.f32 %v253, %v256
        %vm258 = vweird.f32 %v249
        %vm259 = vweird.f32 %v253
        %vm260 = vmor %vm258, %vm259
        %v261 = vsel %vm260, %v253, %v257
        %v262 = vand.u32 2147483647, %v249
        %vm263 = vcmp.eq.f32.partialorder %v262, 8.507059e+37
        %v264 = vand.u32 %v249, 2147483648
        %v265 = vor.u32 1.1754944e-38, %v264
        %v266 = vsel %vm263, %v265, %v261
        %v267 = vmul.f32 1.0, %v266
        %v268 = vrcp.pop %v250
        %v269 = vmul.f32 %v250, %v268
        %v270 = vsub.f32 1.0, %v269
        %v271 = vmul.f32 %v268, %v270
        %v272 = vadd.f32 %v268, %v271
        %vm273 = vweird.f32 %v250
        %vm274 = vweird.f32 %v268
        %vm275 = vmor %vm273, %vm274
        %v276 = vsel %vm275, %v268, %v272
        %v277 = vand.u32 2147483647, %v250
        %vm278 = vcmp.eq.f32.partialorder %v277, 8.507059e+37
        %v279 = vand.u32 %v250, 2147483648
        %v280 = vor.u32 1.1754944e-38, %v279
        %v281 = vsel %vm278, %v280, %v276
        %v282 = vmul.f32 1.0, %v281
        %v283 = vrcp.pop %v251
        %v284 = vmul.f32 %v251, %v283
        %v285 = vsub.f32 1.0, %v284
        %v286 = vmul.f32 %v283, %v285
        %v287 = vadd.f32 %v283, %v286
        %vm288 = vweird.f32 %v251
        %vm289 = vweird.f32 %v283
        %vm290 = vmor %vm288, %vm289
        %v291 = vsel %vm290, %v283, %v287
        %v292 = vand.u32 2147483647, %v251
        %vm293 = vcmp.eq.f32.partialorder %v292, 8.507059e+37
        %v294 = vand.u32 %v251, 2147483648
        %v295 = vor.u32 1.1754944e-38, %v294
        %v296 = vsel %vm293, %v295, %v291
        %v297 = vmul.f32 1.0, %v296
        %v298 = vrcp.pop %v252
        %v299 = vmul.f32 %v252, %v298
        %v300 = vsub.f32 1.0, %v299
        %v301 = vmul.f32 %v298, %v300
        %v302 = vadd.f32 %v298, %v301
        %vm303 = vweird.f32 %v252
        %vm304 = vweird.f32 %v298
        %vm305 = vmor %vm303, %vm304
        %v306 = vsel %vm305, %v298, %v302
        %v307 = vand.u32 2147483647, %v252
        %vm308 = vcmp.eq.f32.partialorder %v307, 8.507059e+37
        %v309 = vand.u32 %v252, 2147483648
        %v310 = vor.u32 1.1754944e-38, %v309
        %v311 = vsel %vm308, %v310, %v306
        %v312 = vmul.f32 1.0, %v311
        %v313 = vmul.f32 %v228, %v267
        %v314 = vmul.f32 %v230, %v282
        %v315 = vmul.f32 %v233, %v297
        %v316 = vmul.f32 %v235, %v312
        %317 = vst [vmem:[%s172] sm:$0xff] %v313
        %318 = vst [vmem:[%s172 + $0x8] sm:$0xff] %v314
        %319 = vst [vmem:[%s172 + $0x10] sm:$0xff] %v315
        %320 = vst [vmem:[%s172 + $0x18] sm:$0xff] %v316
        %s321 = sand.u32 %s90, 1
        %s322 = sand.u32 %s90, 1
        %s323 = smul.addr %s322, 32
        %s324 = scalar_lea.vmem [#allocation2], %s323
        // Predicated region
        $region33: #{model_i_forward.18} parent=31 // pred_check
          %p325 = pneg %p100
        $region34: #{model_i_forward.18} parent=31 // pred_check_branch
          %327 = sbr.rel (%p325) target = $region36
        $region35: #{model_i_forward.18} parent=31 // pred_region
          %s328 = smul.u32 4, %s14
          %s329 = ssub.s32 7, %s328
          %p330 = scmp.lt.s32.totalorder %s329, 4
          %s331 = scalar_select %p330, %s329, 4
          %s332 = smul.u32 8, %s331
          %p333 = scmp.ne.s32.totalorder 0, %s332
          %s334 = smul.addr %s328, 8
          %s335 = scalar_lea.vmem %s3, %s334
          // Predicated region
          $region37: #{model_i_forward.18} parent=35 // pred_check
            %p336 = pneg %p333
          $region38: #{model_i_forward.18} parent=35 // pred_check_branch
            %338 = sbr.rel (%p336) target = $region40
          $region39: #{model_i_forward.18} parent=35 // pred_region
            // Predicated region
            $region41: #{model_i_forward.18} parent=39 // pred_check
              _
            $region42: #{model_i_forward.18} parent=39 // pred_check_branch
              %340 = sbr.rel (0) target = $region44
            $region43: #{model_i_forward.18} parent=39 // pred_region
              // Predicated region
              $region63: #{model_i_forward.18} parent=43 // pred_check
                _
              $region64: #{model_i_forward.18} parent=43 // pred_check_branch
                %396 = sbr.rel (0) target = $region66
              $region65: #{model_i_forward.18} parent=43 // pred_region
                %s397 = sshrl.u32 %s331, 2
                // While loop
                $region67: #{model_i_forward.18} parent=65 // loop_pre_header
                  _
                $region68: #{model_i_forward.18} parent=65 // loop_header
                  %s399 = sphi 0, %s401
                  %p400 = scmp.ge.s32.totalorder %s399, %s397
                  %s404 = sphi 0, %s417
                  %s405 = sphi %s324, %s420
                  %s406 = sphi %s335, %s421
                $region69: #{model_i_forward.18} parent=65 // loop_header_branch
                  %403 = sbr.rel (%p400) target = $region73
                $region70: #{model_i_forward.18} parent=65 // loop_body
                  %v407 = vld [vmem:[%s405] sm:$0xff]
                  %408 = vst [vmem:[%s406] sm:$0xff] %v407
                  %v409 = vld [vmem:[%s405 + $0x8] sm:$0xff]
                  %410 = vst [vmem:[%s406 + $0x8] sm:$0xff] %v409
                  %v411 = vld [vmem:[%s405 + $0x10] sm:$0xff]
                  %412 = vst [vmem:[%s406 + $0x10] sm:$0xff] %v411
                  %v413 = vld [vmem:[%s405 + $0x18] sm:$0xff]
                  %414 = vst [vmem:[%s406 + $0x18] sm:$0xff] %v413
                  %s415 = sadd.s32 1, %s404
                  %p416 = scmp.ge.s32.totalorder %s415, %s397
                  %s417 = scalar_select %p416, 0, %s415
                  %s418 = smul.u32 %s417, 32
                  %s419 = smul.u32 %s417, 32
                  %s420 = scalar_lea.vmem %s324, %s418 [#allocation2]
                  %s421 = scalar_lea.vmem %s335, %s419
                $region71: #{model_i_forward.18} parent=65 // loop_footer
                  %s401 = sadd.s32 %s399, 1
                $region72: #{model_i_forward.18} parent=65 // loop_footer_branch
                  %398 = sbr.rel target = $region68
                $region73: #{model_i_forward.18} parent=65 // loop_exit
                  _
                %s422 = sshrl.u32 %s331, 2
                %s423 = sand.u32 %s331, 3
                %s424 = smul.u32 %s422, 4
                %s425 = smul.u32 8, %s424
                %s426 = scalar_lea.vmem %s324, %s425 [#allocation2]
                %s427 = smul.u32 8, %s424
                %s428 = scalar_lea.vmem %s335, %s427
                // While loop
                $region74: #{model_i_forward.18} parent=65 // loop_pre_header
                  _
                $region75: #{model_i_forward.18} parent=65 // loop_header
                  %s430 = sphi 0, %s432
                  %p431 = scmp.ge.s32.totalorder %s430, %s423
                  %s435 = sphi 0, %s442
                  %s436 = sphi %s426, %s445
                  %s437 = sphi %s428, %s446
                $region76: #{model_i_forward.18} parent=65 // loop_header_branch
                  %434 = sbr.rel (%p431) target = $region80
                $region77: #{model_i_forward.18} parent=65 // loop_body
                  %v438 = vld [vmem:[%s436] sm:$0xff]
                  %439 = vst [vmem:[%s437] sm:$0xff] %v438
                  %s440 = sadd.s32 1, %s435
                  %p441 = scmp.ge.s32.totalorder %s440, %s423
                  %s442 = scalar_select %p441, 0, %s440
                  %s443 = smul.u32 %s442, 8
                  %s444 = smul.u32 %s442, 8
                  %s445 = scalar_lea.vmem %s426, %s443 [#allocation2]
                  %s446 = scalar_lea.vmem %s428, %s444
                $region78: #{model_i_forward.18} parent=65 // loop_footer
                  %s432 = sadd.s32 %s430, 1
                $region79: #{model_i_forward.18} parent=65 // loop_footer_branch
                  %429 = sbr.rel target = $region75
                $region80: #{model_i_forward.18} parent=65 // loop_exit
                  _
              $region66: #{model_i_forward.18} parent=43 // pred_fallthru
                _
              // Predicated region
              $region81: #{model_i_forward.18} parent=43 // pred_check
                _
              $region82: #{model_i_forward.18} parent=43 // pred_check_branch
                %448 = sbr.rel target = $region84
              $region83: #{model_i_forward.18} parent=43 // pred_region
                _
              $region84: #{model_i_forward.18} parent=43 // pred_fallthru
                _
            $region44: #{model_i_forward.18} parent=39 // pred_fallthru
              _
            // Predicated region
            $region45: #{model_i_forward.18} parent=39 // pred_check
              _
            $region46: #{model_i_forward.18} parent=39 // pred_check_branch
              %342 = sbr.rel target = $region48
            $region47: #{model_i_forward.18} parent=39 // pred_region
              %s344 = ssub.s32 256, 1
              %s345 = sshrl.u32 %s331, 2
              // While loop
              $region49: #{model_i_forward.18} parent=47 // loop_pre_header
                _
              $region50: #{model_i_forward.18} parent=47 // loop_header
                %s347 = sphi 0, %s349
                %p348 = scmp.ge.s32.totalorder %s347, %s345
                %s352 = sphi 0, %s365
                %s353 = sphi %s324, %s368
                %s354 = sphi %s335, %s369
              $region51: #{model_i_forward.18} parent=47 // loop_header_branch
                %351 = sbr.rel (%p348) target = $region55
              $region52: #{model_i_forward.18} parent=47 // loop_body
                %v355 = vld [vmem:[%s353] sm:%s344]
                %356 = vst [vmem:[%s354] sm:%s344] %v355
                %v357 = vld [vmem:[%s353 + $0x8] sm:%s344]
                %358 = vst [vmem:[%s354 + $0x8] sm:%s344] %v357
                %v359 = vld [vmem:[%s353 + $0x10] sm:%s344]
                %360 = vst [vmem:[%s354 + $0x10] sm:%s344] %v359
                %v361 = vld [vmem:[%s353 + $0x18] sm:%s344]
                %362 = vst [vmem:[%s354 + $0x18] sm:%s344] %v361
                %s363 = sadd.s32 1, %s352
                %p364 = scmp.ge.s32.totalorder %s363, %s345
                %s365 = scalar_select %p364, 0, %s363
                %s366 = smul.u32 %s365, 32
                %s367 = smul.u32 %s365, 32
                %s368 = scalar_lea.vmem %s324, %s366 [#allocation2]
                %s369 = scalar_lea.vmem %s335, %s367
              $region53: #{model_i_forward.18} parent=47 // loop_footer
                %s349 = sadd.s32 %s347, 1
              $region54: #{model_i_forward.18} parent=47 // loop_footer_branch
                %346 = sbr.rel target = $region50
              $region55: #{model_i_forward.18} parent=47 // loop_exit
                _
              %s370 = sshrl.u32 %s331, 2
              %s371 = sand.u32 %s331, 3
              %s372 = smul.u32 %s370, 4
              %s373 = smul.u32 8, %s372
              %s374 = scalar_lea.vmem %s324, %s373 [#allocation2]
              %s375 = smul.u32 8, %s372
              %s376 = scalar_lea.vmem %s335, %s375
              // While loop
              $region56: #{model_i_forward.18} parent=47 // loop_pre_header
                _
              $region57: #{model_i_forward.18} parent=47 // loop_header
                %s378 = sphi 0, %s380
                %p379 = scmp.ge.s32.totalorder %s378, %s371
                %s383 = sphi 0, %s390
                %s384 = sphi %s374, %s393
                %s385 = sphi %s376, %s394
              $region58: #{model_i_forward.18} parent=47 // loop_header_branch
                %382 = sbr.rel (%p379) target = $region62
              $region59: #{model_i_forward.18} parent=47 // loop_body
                %v386 = vld [vmem:[%s384] sm:%s344]
                %387 = vst [vmem:[%s385] sm:%s344] %v386
                %s388 = sadd.s32 1, %s383
                %p389 = scmp.ge.s32.totalorder %s388, %s371
                %s390 = scalar_select %p389, 0, %s388
                %s391 = smul.u32 %s390, 8
                %s392 = smul.u32 %s390, 8
                %s393 = scalar_lea.vmem %s374, %s391 [#allocation2]
                %s394 = scalar_lea.vmem %s376, %s392
              $region60: #{model_i_forward.18} parent=47 // loop_footer
                %s380 = sadd.s32 %s378, 1
              $region61: #{model_i_forward.18} parent=47 // loop_footer_branch
                %377 = sbr.rel target = $region57
              $region62: #{model_i_forward.18} parent=47 // loop_exit
                _
            $region48: #{model_i_forward.18} parent=39 // pred_fallthru
              _
          $region40: #{model_i_forward.18} parent=35 // pred_fallthru
            _
          %449 = vnop
        $region36: #{model_i_forward.18} parent=31 // pred_fallthru
          _
      $region32: #{model_i_forward.18} parent=5 // pred_fallthru
        _
      %p450 = scmp.le.s32.totalorder 2, %s9
      // Predicated region
      $region85: #{model_i_forward.18} parent=5 // pred_check
        %p451 = pneg %p450
      $region86: #{model_i_forward.18} parent=5 // pred_check_branch
        %453 = sbr.rel (%p451) target = $region88
      $region87: #{model_i_forward.18} parent=5 // pred_region
        %s454 = ssub.s32 %s9, 2
        // Predicated region
        $region89: #{model_i_forward.18} parent=87 // pred_check
          %p455 = pneg %p106
        $region90: #{model_i_forward.18} parent=87 // pred_check_branch
          %457 = sbr.rel (%p455) target = $region92
        $region91: #{model_i_forward.18} parent=87 // pred_region
          %s458 = sand.u32 %s91, 1
          %s459 = sand.u32 %s91, 1
          %s460 = smul.addr %s459, 32
          %s461 = scalar_lea.vmem [#allocation2], %s460
        $region92: #{model_i_forward.18} parent=87 // pred_fallthru
          _
      $region88: #{model_i_forward.18} parent=5 // pred_fallthru
        _
    $region6: #{model_i_forward.18} parent=1 // loop_footer
      %s13 = sadd.s32 1, %s9
    $region7: #{model_i_forward.18} parent=1 // loop_footer_branch
      %8 = sbr.rel target = $region3
    $region8: #{model_i_forward.18} parent=1 // loop_exit
      _

// kernel: model_i_forward.19
$region0: #{model_i_forward.19}
  #allocation0 [shape = 'u32[]', space=smem, size = 0x4, offset = 0x4, fixed_abs, tag = 'smem constant byte address 0x4 - core index']
  #allocation1 [shape = 'u32[72,128]{1,0:T(1,128)}', space=vmem, size = 0x9000, scoped, tag = 'internal scratch']
  %s0 = inlined_call_operand.vmem [shape: f32[56,32], index: 0, kind: input, shape index: {}]
  %s1 = inlined_call_operand.vmem [shape: f32[56,224], index: 1, kind: input, shape index: {}]
  %s2 = inlined_call_operand.vmem [shape: f32[56,128], index: 2, kind: input, shape index: {}]
  %s3 = inlined_call_operand.vmem [shape: f32[56,5], index: 3, kind: input, shape index: {}]
  %s4 = inlined_call_operand.vmem [shape: bf16[32,32], index: 4, kind: input, shape index: {}]
  %s5 = inlined_call_operand.vmem [shape: f32[56,128], index: 5, kind: output, shape index: {}]
  %s6 = sld [smem:[#allocation0]]
  $region101: #{model_i_forward.19} parent=0
    _
  %s8 = ssub.s32 1, %s6
  %s9 = scalar_select 0, %s8, %s6
  $region1: #{model_i_forward.19} parent=0
    #allocation2 [shape = 'u8[32768]{0}', space=vmem, size = 0x8000, scoped, tag = 'output window, operand 0']
    loop: start=0, step=1, limit=4
    $region2: #{model_i_forward.19} parent=1 // loop_pre_header
      _
    $region3: #{model_i_forward.19} parent=1 // loop_header
      %s11 = sphi 0, %s15
      %p12 = scmp.ge.s32.totalorder %s11, 4
      %s21 = sphi 0, %s23
      %s24 = sphi 0, %s21
      %s25 = sphi 0, %s24
      %s41 = sphi 0, %s25
      %s47 = sphi 0, %s49
      %s50 = sphi 0, %s47
      %s51 = sphi 0, %s50
      %s67 = sphi 0, %s51
      %s73 = sphi 0, %s75
      %s76 = sphi 0, %s73
      %s77 = sphi 0, %s76
      %s93 = sphi 0, %s77
      %s99 = sphi 0, %s101
      %s102 = sphi 0, %s99
      %s103 = sphi 0, %s102
      %s119 = sphi 0, %s103
      %s123 = sphi 0, %s123
      %s125 = sphi 0, %s123
      %s126 = sphi 0, %s125
      %s140 = sphi 0, %s126
      %s146 = sphi 0, %s148
      %s149 = sphi 0, %s146
      %s150 = sphi 0, %s149
      %s166 = sphi 0, %s150
    $region4: #{model_i_forward.19} parent=1 // loop_header_branch
      %14 = sbr.rel (%p12) target = $region8
    $region5: #{model_i_forward.19} parent=1 // loop_body
      %s16 = ssub.s32 %s11, 1
      %s17 = ssub.s32 %s11, 2
      %s18 = sadd.s32 %s11, 1
      %s19 = ssub.s32 %s11, %s18
      %p20 = scmp.eq.s32.totalorder %s19, 0
      %s22 = sadd.s32 %s21, 1
      %s23 = scalar_select %p20, %s21, %s22
      %p26 = pneg %p20
      %p27 = scmp.eq.s32.totalorder %s11, 1
      %p28 = por %p26, %p27
      %p29 = scmp.ne.s32.totalorder %s21, %s24
      %p30 = scmp.eq.s32.totalorder %s11, 0
      %p31 = por %p29, %p30
      %p32 = scmp.ne.s32.totalorder %s21, %s24
      %p33 = scmp.eq.s32.totalorder %s16, 1
      %p34 = por %p32, %p33
      %p35 = scmp.ne.s32.totalorder %s24, %s25
      %p36 = scmp.eq.s32.totalorder %s16, 0
      %p37 = por %p35, %p36
      %p38 = scmp.ne.s32.totalorder %s24, %s25
      %p39 = scmp.eq.s32.totalorder %s17, 1
      %p40 = por %p38, %p39
      %p42 = scmp.ne.s32.totalorder %s25, %s41
      %p43 = scmp.eq.s32.totalorder %s17, 0
      %p44 = por %p42, %p43
      %s45 = ssub.s32 %s11, %s18
      %p46 = scmp.eq.s32.totalorder %s45, 0
      %s48 = sadd.s32 %s47, 1
      %s49 = scalar_select %p46, %s47, %s48
      %p52 = pneg %p46
      %p53 = scmp.eq.s32.totalorder %s11, 1
      %p54 = por %p52, %p53
      %p55 = scmp.ne.s32.totalorder %s47, %s50
      %p56 = scmp.eq.s32.totalorder %s11, 0
      %p57 = por %p55, %p56
      %p58 = scmp.ne.s32.totalorder %s47, %s50
      %p59 = scmp.eq.s32.totalorder %s16, 1
      %p60 = por %p58, %p59
      %p61 = scmp.ne.s32.totalorder %s50, %s51
      %p62 = scmp.eq.s32.totalorder %s16, 0
      %p63 = por %p61, %p62
      %p64 = scmp.ne.s32.totalorder %s50, %s51
      %p65 = scmp.eq.s32.totalorder %s17, 1
      %p66 = por %p64, %p65
      %p68 = scmp.ne.s32.totalorder %s51, %s67
      %p69 = scmp.eq.s32.totalorder %s17, 0
      %p70 = por %p68, %p69
      %s71 = ssub.s32 %s11, %s18
      %p72 = scmp.eq.s32.totalorder %s71, 0
      %s74 = sadd.s32 %s73, 1
      %s75 = scalar_select %p72, %s73, %s74
      %p78 = pneg %p72
      %p79 = scmp.eq.s32.totalorder %s11, 1
      %p80 = por %p78, %p79
      %p81 = scmp.ne.s32.totalorder %s73, %s76
      %p82 = scmp.eq.s32.totalorder %s11, 0
      %p83 = por %p81, %p82
      %p84 = scmp.ne.s32.totalorder %s73, %s76
      %p85 = scmp.eq.s32.totalorder %s16, 1
      %p86 = por %p84, %p85
      %p87 = scmp.ne.s32.totalorder %s76, %s77
      %p88 = scmp.eq.s32.totalorder %s16, 0
      %p89 = por %p87, %p88
      %p90 = scmp.ne.s32.totalorder %s76, %s77
      %p91 = scmp.eq.s32.totalorder %s17, 1
      %p92 = por %p90, %p91
      %p94 = scmp.ne.s32.totalorder %s77, %s93
      %p95 = scmp.eq.s32.totalorder %s17, 0
      %p96 = por %p94, %p95
      %s97 = ssub.s32 %s11, %s18
      %p98 = scmp.eq.s32.totalorder %s97, 0
      %s100 = sadd.s32 %s99, 1
      %s101 = scalar_select %p98, %s99, %s100
      %p104 = pneg %p98
      %p105 = scmp.eq.s32.totalorder %s11, 1
      %p106 = por %p104, %p105
      %p107 = scmp.ne.s32.totalorder %s99, %s102
      %p108 = scmp.eq.s32.totalorder %s11, 0
      %p109 = por %p107, %p108
      %p110 = scmp.ne.s32.totalorder %s99, %s102
      %p111 = scmp.eq.s32.totalorder %s16, 1
      %p112 = por %p110, %p111
      %p113 = scmp.ne.s32.totalorder %s102, %s103
      %p114 = scmp.eq.s32.totalorder %s16, 0
      %p115 = por %p113, %p114
      %p116 = scmp.ne.s32.totalorder %s102, %s103
      %p117 = scmp.eq.s32.totalorder %s17, 1
      %p118 = por %p116, %p117
      %p120 = scmp.ne.s32.totalorder %s103, %s119
      %p121 = scmp.eq.s32.totalorder %s17, 0
      %p122 = por %p120, %p121
      %s124 = sadd.s32 %s123, 1
      %p127 = scmp.eq.s32.totalorder %s11, 1
      %p128 = scmp.ne.s32.totalorder %s123, %s125
      %p129 = scmp.eq.s32.totalorder %s11, 0
      %p130 = por %p128, %p129
      %p131 = scmp.ne.s32.totalorder %s123, %s125
      %p132 = scmp.eq.s32.totalorder %s16, 1
      %p133 = por %p131, %p132
      %p134 = scmp.ne.s32.totalorder %s125, %s126
      %p135 = scmp.eq.s32.totalorder %s16, 0
      %p136 = por %p134, %p135
      %p137 = scmp.ne.s32.totalorder %s125, %s126
      %p138 = scmp.eq.s32.totalorder %s17, 1
      %p139 = por %p137, %p138
      %p141 = scmp.ne.s32.totalorder %s126, %s140
      %p142 = scmp.eq.s32.totalorder %s17, 0
      %p143 = por %p141, %p142
      %s144 = ssub.s32 %s11, %s18
      %p145 = scmp.eq.s32.totalorder %s144, 0
      %s147 = sadd.s32 %s146, 1
      %s148 = scalar_select %p145, %s146, %s147
      %p151 = pneg %p145
      %p152 = scmp.eq.s32.totalorder %s11, 1
      %p153 = por %p151, %p152
      %p154 = scmp.ne.s32.totalorder %s146, %s149
      %p155 = scmp.eq.s32.totalorder %s11, 0
      %p156 = por %p154, %p155
      %p157 = scmp.ne.s32.totalorder %s146, %s149
      %p158 = scmp.eq.s32.totalorder %s16, 1
      %p159 = por %p157, %p158
      %p160 = scmp.ne.s32.totalorder %s149, %s150
      %p161 = scmp.eq.s32.totalorder %s16, 0
      %p162 = por %p160, %p161
      %p163 = scmp.ne.s32.totalorder %s149, %s150
      %p164 = scmp.eq.s32.totalorder %s17, 1
      %p165 = por %p163, %p164
      %p167 = scmp.ne.s32.totalorder %s150, %s166
      %p168 = scmp.eq.s32.totalorder %s17, 0
      %p169 = por %p167, %p168
      %p170 = scmp.le.s32.totalorder 1, %s11
      %p171 = scmp.lt.s32.totalorder %s11, 3
      %p172 = pnand %p170, %p171
      %p173 = pneg %p172
      // Predicated region
      $region9: #{model_i_forward.19} parent=5 // pred_check
        _
      $region10: #{model_i_forward.19} parent=5 // pred_check_branch
        %175 = sbr.rel (%p172) target = $region12
      $region11: #{model_i_forward.19} parent=5 // pred_region
        %s176 = ssub.s32 %s11, 1
        // Predicated region
        $region13: #{model_i_forward.19} parent=11 // pred_check
          %p177 = pneg %p136
        $region14: #{model_i_forward.19} parent=11 // pred_check_branch
          %179 = sbr.rel (%p177) target = $region16
        $region15: #{model_i_forward.19} parent=11 // pred_region
          _
        $region16: #{model_i_forward.19} parent=11 // pred_fallthru
          _
      $region12: #{model_i_forward.19} parent=5 // pred_fallthru
        _
      %p180 = scmp.lt.s32.totalorder %s11, 2
      // Predicated region
      $region17: #{model_i_forward.19} parent=5 // pred_check
        %p181 = pneg %p180
      $region18: #{model_i_forward.19} parent=5 // pred_check_branch
        %183 = sbr.rel (%p181) target = $region20
      $region19: #{model_i_forward.19} parent=5 // pred_region
        // Predicated region
        $region21: #{model_i_forward.19} parent=19 // pred_check
          %p184 = pneg %p31
        $region22: #{model_i_forward.19} parent=19 // pred_check_branch
          %186 = sbr.rel (%p184) target = $region24
        $region23: #{model_i_forward.19} parent=19 // pred_region
          %s187 = smul.u32 4, %s11
          %s188 = ssub.s32 7, %s187
          %p189 = scmp.lt.s32.totalorder %s188, 4
          %s190 = scalar_select %p189, %s188, 4
          %s191 = smul.u32 8, %s190
          %p192 = scmp.lt.s32.totalorder %s187, 6
          %s193 = scalar_select %p192, %s187, 6
          %s194 = smul.addr %s193, 8
          %s195 = scalar_lea.vmem %s0, %s194
          %s196 = smul.u32 4, %s11
          %s197 = ssub.s32 7, %s196
          %p198 = scmp.lt.s32.totalorder %s197, 4
          %s199 = scalar_select %p198, %s197, 4
          %s200 = smul.u32 8, %s199
        $region24: #{model_i_forward.19} parent=19 // pred_fallthru
          _
        // Predicated region
        $region25: #{model_i_forward.19} parent=19 // pred_check
          %p201 = pneg %p57
        $region26: #{model_i_forward.19} parent=19 // pred_check_branch
          %203 = sbr.rel (%p201) target = $region28
        $region27: #{model_i_forward.19} parent=19 // pred_region
          %s204 = smul.u32 4, %s11
          %s205 = ssub.s32 7, %s204
          %p206 = scmp.lt.s32.totalorder %s205, 4
          %s207 = scalar_select %p206, %s205, 4
          %s208 = smul.u32 8, %s207
          %s209 = smul.u32 %s208, 2
          %p210 = scmp.lt.s32.totalorder %s204, 6
          %s211 = scalar_select %p210, %s204, 6
          %s212 = smul.addr %s211, 2
          %s213 = smul.addr %s212, 8
          %s214 = scalar_lea.vmem %s1, %s213
          %s215 = smul.u32 4, %s11
          %s216 = ssub.s32 7, %s215
          %p217 = scmp.lt.s32.totalorder %s216, 4
          %s218 = scalar_select %p217, %s216, 4
          %s219 = smul.u32 8, %s218
          %s220 = smul.u32 %s219, 2
        $region28: #{model_i_forward.19} parent=19 // pred_fallthru
          _
        // Predicated region
        $region29: #{model_i_forward.19} parent=19 // pred_check
          %p221 = pneg %p83
        $region30: #{model_i_forward.19} parent=19 // pred_check_branch
          %223 = sbr.rel (%p221) target = $region32
        $region31: #{model_i_forward.19} parent=19 // pred_region
          %s224 = smul.u32 4, %s11
          %s225 = ssub.s32 7, %s224
          %p226 = scmp.lt.s32.totalorder %s225, 4
          %s227 = scalar_select %p226, %s225, 4
          %s228 = smul.u32 8, %s227
          %p229 = scmp.lt.s32.totalorder %s224, 6
          %s230 = scalar_select %p229, %s224, 6
          %s231 = smul.addr %s230, 8
          %s232 = scalar_lea.vmem %s2, %s231
          %s233 = smul.u32 4, %s11
          %s234 = ssub.s32 7, %s233
          %p235 = scmp.lt.s32.totalorder %s234, 4
          %s236 = scalar_select %p235, %s234, 4
          %s237 = smul.u32 8, %s236
        $region32: #{model_i_forward.19} parent=19 // pred_fallthru
          _
        // Predicated region
        $region33: #{model_i_forward.19} parent=19 // pred_check
          %p238 = pneg %p109
        $region34: #{model_i_forward.19} parent=19 // pred_check_branch
          %240 = sbr.rel (%p238) target = $region36
        $region35: #{model_i_forward.19} parent=19 // pred_region
          %s241 = smul.u32 4, %s11
          %s242 = ssub.s32 7, %s241
          %p243 = scmp.lt.s32.totalorder %s242, 4
          %s244 = scalar_select %p243, %s242, 4
          %s245 = smul.u32 8, %s244
          %p246 = scmp.lt.s32.totalorder %s241, 6
          %s247 = scalar_select %p246, %s241, 6
          %s248 = smul.addr %s247, 8
          %s249 = scalar_lea.vmem %s3, %s248
          %s250 = smul.u32 4, %s11
          %s251 = ssub.s32 7, %s250
          %p252 = scmp.lt.s32.totalorder %s251, 4
          %s253 = scalar_select %p252, %s251, 4
          %s254 = smul.u32 8, %s253
        $region36: #{model_i_forward.19} parent=19 // pred_fallthru
          _
      $region20: #{model_i_forward.19} parent=5 // pred_fallthru
        _
      %p255 = scmp.le.s32.totalorder 1, %s11
      %p256 = scmp.lt.s32.totalorder %s11, 3
      %p257 = pnand %p255, %p256
      %p258 = pneg %p257
      // Predicated region
      $region37: #{model_i_forward.19} parent=5 // pred_check
        _
      $region38: #{model_i_forward.19} parent=5 // pred_check_branch
        %260 = sbr.rel (%p257) target = $region40
      $region39: #{model_i_forward.19} parent=5 // pred_region
        %s261 = ssub.s32 %s11, 1
        %s262 = smul.u32 4, %s16
        %s263 = ssub.s32 7, %s262
        %p264 = scmp.lt.s32.totalorder %s263, 4
        %s265 = scalar_select %p264, %s263, 4
        %s266 = smul.u32 8, %s265
        %p267 = scmp.lt.s32.totalorder %s262, 6
        %s268 = scalar_select %p267, %s262, 6
        %s269 = smul.addr %s268, 8
        %s270 = scalar_lea.vmem %s0, %s269
        %p271 = pneg %p37
        %p272 = pneg %p34
        %s273 = smul.u32 4, %s16
        %s274 = ssub.s32 7, %s273
        %p275 = scmp.lt.s32.totalorder %s274, 4
        %s276 = scalar_select %p275, %s274, 4
        %s277 = smul.u32 8, %s276
        %s278 = smul.u32 %s277, 2
        %p279 = scmp.lt.s32.totalorder %s273, 6
        %s280 = scalar_select %p279, %s273, 6
        %s281 = smul.addr %s280, 2
        %s282 = smul.addr %s281, 8
        %s283 = scalar_lea.vmem %s1, %s282
        %p284 = pneg %p63
        %p285 = pneg %p60
        %s286 = smul.u32 4, %s16
        %s287 = ssub.s32 7, %s286
        %p288 = scmp.lt.s32.totalorder %s287, 4
        %s289 = scalar_select %p288, %s287, 4
        %s290 = smul.u32 8, %s289
        %p291 = scmp.lt.s32.totalorder %s286, 6
        %s292 = scalar_select %p291, %s286, 6
        %s293 = smul.addr %s292, 8
        %s294 = scalar_lea.vmem %s2, %s293
        %p295 = pneg %p89
        %p296 = pneg %p86
        %s297 = smul.u32 4, %s16
        %s298 = ssub.s32 7, %s297
        %p299 = scmp.lt.s32.totalorder %s298, 4
        %s300 = scalar_select %p299, %s298, 4
        %s301 = smul.u32 8, %s300
        %p302 = scmp.lt.s32.totalorder %s297, 6
        %s303 = scalar_select %p302, %s297, 6
        %s304 = smul.addr %s303, 8
        %s305 = scalar_lea.vmem %s3, %s304
        %p306 = pneg %p115
        %p307 = pneg %p112
        %p308 = pneg %p136
        %p309 = pneg %p133
        %p310 = pneg %p162
        %p311 = pneg %p159
        %s312 = sand.u32 %s149, 1
        %s313 = sand.u32 %s149, 1
        %s314 = smul.addr %s313, 32
        %s315 = scalar_lea.vmem [#allocation2], %s314
        %s316 = smul.u32 4, %s16
        %s317 = ssub.s32 7, %s316
        %p318 = scmp.lt.s32.totalorder %s317, 4
        %s319 = scalar_select %p318, %s317, 4
        %s320 = smul.u32 8, %s319
        %p321 = scmp.lt.s32.totalorder %s316, 6
        %s322 = scalar_select %p321, %s316, 6
        %s323 = smul.addr %s322, 8
        %s324 = scalar_lea.vmem %s0, %s323
        %s325 = smul.u32 4, %s16
        %s326 = ssub.s32 7, %s325
        %p327 = scmp.lt.s32.totalorder %s326, 4
        %s328 = scalar_select %p327, %s326, 4
        %s329 = smul.u32 8, %s328
        %s330 = smul.u32 4, %s16
        %s331 = ssub.s32 7, %s330
        %p332 = scmp.lt.s32.totalorder %s331, 4
        %s333 = scalar_select %p332, %s331, 4
        %s334 = smul.u32 8, %s333
        %s335 = smul.u32 %s334, 2
        %p336 = scmp.lt.s32.totalorder %s330, 6
        %s337 = scalar_select %p336, %s330, 6
        %s338 = smul.addr %s337, 2
        %s339 = smul.addr %s338, 8
        %s340 = scalar_lea.vmem %s1, %s339
        %s341 = smul.u32 4, %s16
        %s342 = ssub.s32 7, %s341
        %p343 = scmp.lt.s32.totalorder %s342, 4
        %s344 = scalar_select %p343, %s342, 4
        %s345 = smul.u32 8, %s344
        %s346 = smul.u32 %s345, 2
        %s347 = smul.u32 4, %s16
        %s348 = ssub.s32 7, %s347
        %p349 = scmp.lt.s32.totalorder %s348, 4
        %s350 = scalar_select %p349, %s348, 4
        %s351 = smul.u32 8, %s350
        %p352 = scmp.lt.s32.totalorder %s347, 6
        %s353 = scalar_select %p352, %s347, 6
        %s354 = smul.addr %s353, 8
        %s355 = scalar_lea.vmem %s2, %s354
        %s356 = smul.u32 4, %s16
        %s357 = ssub.s32 7, %s356
        %p358 = scmp.lt.s32.totalorder %s357, 4
        %s359 = scalar_select %p358, %s357, 4
        %s360 = smul.u32 8, %s359
        %s361 = smul.u32 4, %s16
        %s362 = ssub.s32 7, %s361
        %p363 = scmp.lt.s32.totalorder %s362, 4
        %s364 = scalar_select %p363, %s362, 4
        %s365 = smul.u32 8, %s364
        %p366 = scmp.lt.s32.totalorder %s361, 6
        %s367 = scalar_select %p366, %s361, 6
        %s368 = smul.addr %s367, 8
        %s369 = scalar_lea.vmem %s3, %s368
        %s370 = smul.u32 4, %s16
        %s371 = ssub.s32 7, %s370
        %p372 = scmp.lt.s32.totalorder %s371, 4
        %s373 = scalar_select %p372, %s371, 4
        %s374 = smul.u32 8, %s373
        %s375 = smul.u32 4, %s16
        %s376 = ssub.s32 7, %s375
        %p377 = scmp.lt.s32.totalorder %s376, 4
        %s378 = scalar_select %p377, %s376, 4
        %s379 = smul.u32 8, %s378
        %v381 = vld [vmem:[%s340] sm:$0xff]
        %v382 = vld [vmem:[%s340 + $0x8] sm:$0xff]
        %v383 = vld [vmem:[%s340 + $0x10] sm:$0xff]
        %v384 = vld [vmem:[%s340 + $0x18] sm:$0xff]
        %v385 = vld [vmem:[%s340 + $0x20] sm:$0xff]
        %v386 = vld [vmem:[%s340 + $0x28] sm:$0xff]
        %v387 = vld [vmem:[%s340 + $0x30] sm:$0xff]
        %v388 = vld [vmem:[%s340 + $0x38] sm:$0xff]
        %v389 = vld [vmem:[%s355] sm:$0xff]
        %v390 = vld [vmem:[%s355 + $0x8] sm:$0xff]
        %v391 = vld [vmem:[%s355 + $0x10] sm:$0xff]
        %v392 = vld [vmem:[%s355 + $0x18] sm:$0xff]
        %v393 = vld [vmem:[%s324] sm:$0xff]
        %v394 = vld [vmem:[%s324 + $0x8] sm:$0xff]
        %v395 = vld [vmem:[%s324 + $0x10] sm:$0xff]
        %v396 = vld [vmem:[%s324 + $0x18] sm:$0xff]
        %v397 = vmul.f32 %v393, %v381
        %v398 = vmul.f32 %v394, %v383
        %v399 = vmul.f32 %v395, %v385
        %v400 = vmul.f32 %v396, %v387
        %v401 = vmul.f32 %v397, %v389
        %v402 = vmul.f32 %v398, %v390
        %v403 = vmul.f32 %v399, %v391
        %v404 = vmul.f32 %v400, %v392
        %v405 = vpack.c.bf16 %v402, %v401
        %v406 = vpack.c.bf16 %v404, %v403
        %v407 = vld [vmem:[%s4] sm:$0xf]
        %v408 = vld [vmem:[%s4 + $0x4] sm:$0xf]
        %v409 = vld [vmem:[%s4 + $0x8] sm:$0xf]
        %v410 = vld [vmem:[%s4 + $0xc] sm:$0xf]
        %v415 = vunpack.c.l.b16 %v407
        %v416 = vunpack.c.l.b16 %v408
        %v417 = vunpack.c.l.b16 %v409
        %v418 = vunpack.c.l.b16 %v410
        %v419 = vpack.c.b16 %v416, %v415
        %v420 = vpack.c.b16 %v418, %v417
        %vm423 = vcmask 261120
        %v425 = vsel %vm423, %v405, 0
        %v428 = vsel %vm423, %v406, 0
        %430 = vmatpush.bf16.msra.mxu0 0
        %431 = vmatpush.bf16.msra.mxu0 0
        %432 = vmatpush.bf16.msra.mxu0 0
        %433 = vmatpush.bf16.msra.mxu0 0
        %434 = vmatpush.bf16.msra.mxu0 0
        %435 = vmatpush.bf16.msra.mxu0 0
        %436 = vmatpush.bf16.msra.mxu0 %v420
        %437 = vmatpush.bf16.msra.mxu0 %v419
        %438 = vmatmul.bf16.gmra.mxu0 %v425
        %v439 = vpop.f32.mrf.mxu0
        %v440 = vadd.f32 0.0, %v439
        %v441 = vpop.f32.mrf.mxu0
        %v442 = vadd.f32 0.0, %v441
        %443 = vmatmul.bf16.gmra.mxu0 %v428
        %v444 = vpop.f32.mrf.mxu0
        %v445 = vadd.f32 0.0, %v444
        %v446 = vpop.f32.mrf.mxu0
        %v447 = vadd.f32 0.0, %v446
        %448 = vdwg.mxu0
        %v449 = vxor.u32 %v440, 2147483648
        %v450 = vxor.u32 %v442, 2147483648
        %v451 = vxor.u32 %v445, 2147483648
        %v452 = vxor.u32 %v447, 2147483648
        %v453 = vmul.f32 %v449, 1.442695
        %v454 = vpow.pop %v453
        %v455 = vmul.f32 %v450, 1.442695
        %v456 = vpow.pop %v455
        %v457 = vmul.f32 %v451, 1.442695
        %v458 = vpow.pop %v457
        %v459 = vmul.f32 %v452, 1.442695
        %v460 = vpow.pop %v459
        %v461 = vadd.f32 %v454, 1.0
        %v462 = vadd.f32 %v456, 1.0
        %v463 = vadd.f32 %v458, 1.0
        %v464 = vadd.f32 %v460, 1.0
        %v465 = vrcp.pop %v461
        %v466 = vmul.f32 %v461, %v465
        %v467 = vsub.f32 1.0, %v466
        %v468 = vmul.f32 %v465, %v467
        %v469 = vadd.f32 %v465, %v468
        %vm470 = vweird.f32 %v461
        %vm471 = vweird.f32 %v465
        %vm472 = vmor %vm470, %vm471
        %v473 = vsel %vm472, %v465, %v469
        %v474 = vand.u32 2147483647, %v461
        %vm475 = vcmp.eq.f32.partialorder %v474, 8.507059e+37
        %v476 = vand.u32 %v461, 2147483648
        %v477 = vor.u32 1.1754944e-38, %v476
        %v478 = vsel %vm475, %v477, %v473
        %v479 = vmul.f32 1.0, %v478
        %v480 = vrcp.pop %v462
        %v481 = vmul.f32 %v462, %v480
        %v482 = vsub.f32 1.0, %v481
        %v483 = vmul.f32 %v480, %v482
        %v484 = vadd.f32 %v480, %v483
        %vm485 = vweird.f32 %v462
        %vm486 = vweird.f32 %v480
        %vm487 = vmor %vm485, %vm486
        %v488 = vsel %vm487, %v480, %v484
        %v489 = vand.u32 2147483647, %v462
        %vm490 = vcmp.eq.f32.partialorder %v489, 8.507059e+37
        %v491 = vand.u32 %v462, 2147483648
        %v492 = vor.u32 1.1754944e-38, %v491
        %v493 = vsel %vm490, %v492, %v488
        %v494 = vmul.f32 1.0, %v493
        %v495 = vrcp.pop %v463
        %v496 = vmul.f32 %v463, %v495
        %v497 = vsub.f32 1.0, %v496
        %v498 = vmul.f32 %v495, %v497
        %v499 = vadd.f32 %v495, %v498
        %vm500 = vweird.f32 %v463
        %vm501 = vweird.f32 %v495
        %vm502 = vmor %vm500, %vm501
        %v503 = vsel %vm502, %v495, %v499
        %v504 = vand.u32 2147483647, %v463
        %vm505 = vcmp.eq.f32.partialorder %v504, 8.507059e+37
        %v506 = vand.u32 %v463, 2147483648
        %v507 = vor.u32 1.1754944e-38, %v506
        %v508 = vsel %vm505, %v507, %v503
        %v509 = vmul.f32 1.0, %v508
        %v510 = vrcp.pop %v464
        %v511 = vmul.f32 %v464, %v510
        %v512 = vsub.f32 1.0, %v511
        %v513 = vmul.f32 %v510, %v512
        %v514 = vadd.f32 %v510, %v513
        %vm515 = vweird.f32 %v464
        %vm516 = vweird.f32 %v510
        %vm517 = vmor %vm515, %vm516
        %v518 = vsel %vm517, %v510, %v514
        %v519 = vand.u32 2147483647, %v464
        %vm520 = vcmp.eq.f32.partialorder %v519, 8.507059e+37
        %v521 = vand.u32 %v464, 2147483648
        %v522 = vor.u32 1.1754944e-38, %v521
        %v523 = vsel %vm520, %v522, %v518
        %v524 = vmul.f32 1.0, %v523
        %v525 = vmul.f32 %v440, %v479
        %v526 = vmul.f32 %v442, %v494
        %v527 = vmul.f32 %v445, %v509
        %v528 = vmul.f32 %v447, %v524
        %v529 = vld [vmem:[%s369] sm:$0xff]
        %v530 = vld [vmem:[%s369 + $0x8] sm:$0xff]
        %v531 = vld [vmem:[%s369 + $0x10] sm:$0xff]
        %v532 = vld [vmem:[%s369 + $0x18] sm:$0xff]
        %v533 = vmul.f32 %v529, 0.62831855
        %v534 = vmul.f32 %v530, 0.62831855
        %v535 = vmul.f32 %v531, 0.62831855
        %v536 = vmul.f32 %v532, 0.62831855
        %v537 = vand.u32 2147483647, %v533
        %vm538 = vcmp.le.f32.partialorder %v537, 0.7853982
        %vm539 = vcmp.lt.s32.totalorder %v533, 0
        %v540 = vand.u32 %v533, 2139095040
        %v541 = vshrl.u32 %v540, 23
        %v542 = vsub.s32 %v541, 127
        %v543 = vand.u32 2147483647, %v533
        %v544 = vand.u32 %v543, 8388607
        %v545 = vor.u32 %v544, 8388608
        %v546 = vsub.s32 0, %v545
        %v547 = vadd.s32 %v542, 1
        %vm548 = vcmp.gt.s32.totalorder %v547, 0
        %v549 = vsel %vm548, %v547, 0
        %v550 = vshrl.u32 %v549, 5
        %v551 = vand.u32 %v549, 31
        %v552 = vsub.s32 32, %v551
        %v553 = vshrl.u32 683565275, %v552
        %v554 = vshll.u32 683565275, %v551
        %v555 = vshrl.u32 2475754826, %v552
        %v556 = vor.u32 %v554, %v555
        %v557 = vshll.u32 2475754826, %v551
        %v558 = vshrl.u32 2131351028, %v552
        %v559 = vor.u32 %v557, %v558
        %v560 = vshll.u32 2131351028, %v551
        %v561 = vshrl.u32 2102212464, %v552
        %v562 = vor.u32 %v560, %v561
        %v563 = vshll.u32 2102212464, %v551
        %v564 = vshrl.u32 920167782, %v552
        %v565 = vor.u32 %v563, %v564
        %v566 = vshll.u32 920167782, %v551
        %v567 = vshrl.u32 1326507024, %v552
        %v568 = vor.u32 %v566, %v567
        %vm569 = vcmp.lt.s32.totalorder %v550, 1
        %vm570 = vcmp.lt.s32.totalorder %v550, 2
        %vm571 = vcmp.lt.s32.totalorder %v550, 3
        %vm572 = vcmp.lt.s32.totalorder %v550, 4
        %v573 = vsel %vm569, %v553, %v556
        %v574 = vsel %vm572, %v562, 2102212464
        %v575 = vsel %vm571, %v559, %v574
        %v576 = vsel %vm570, %v573, %v575
        %v577 = vsel %vm569, %v556, %v559
        %v578 = vsel %vm572, %v565, 920167782
        %v579 = vsel %vm571, %v562, %v578
        %v580 = vsel %vm570, %v577, %v579
        %v581 = vsel %vm569, %v559, %v562
        %v582 = vsel %vm572, %v568, 1326507024
        %v583 = vsel %vm571, %v565, %v582
        %v584 = vsel %vm570, %v581, %v583
        %v585 = vshll.u32 %v545, 8
        %v586 = vand.u32 %v585, 65535
        %v587 = vshrl.u32 %v585, 16
        %v588 = vand.u32 %v584, 65535
        %v589 = vshrl.u32 %v584, 16
        %v590 = vmul.u32 %v586, %v588
        %v591 = vmul.u32 %v586, %v589
        %v592 = vmul.u32 %v587, %v588
        %v593 = vmul.u32 %v587, %v589
        %v594 = vshll.u32 %v591, 16
        %v595 = vshrl.u32 %v591, 16
        %v596 = vshll.u32 %v592, 16
        %v597 = vshrl.u32 %v592, 16
        %vm598 = vc.u32 %v590, %v594
        %v599 = vsel %vm598, 1, 0
        %v600 = vadd.s32 %v590, %v594
        %v601 = vadd.s32 %v593, %v599
        %vm602 = vc.u32 %v600, %v596
        %v603 = vsel %vm602, 1, 0
        %v604 = vadd.s32 %v600, %v596
        %v605 = vadd.s32 %v601, %v603
        %v606 = vadd.s32 %v605, %v595
        %v607 = vadd.s32 %v606, %v597
        %v608 = vand.u32 %v585, 65535
        %v609 = vshrl.u32 %v585, 16
        %v610 = vand.u32 %v580, 65535
        %v611 = vshrl.u32 %v580, 16
        %v612 = vmul.u32 %v608, %v610
        %v613 = vmul.u32 %v608, %v611
        %v614 = vmul.u32 %v609, %v610
        %v615 = vmul.u32 %v609, %v611
        %v616 = vshll.u32 %v613, 16
        %v617 = vshrl.u32 %v613, 16
        %v618 = vshll.u32 %v614, 16
        %v619 = vshrl.u32 %v614, 16
        %vm620 = vc.u32 %v612, %v616
        %v621 = vsel %vm620, 1, 0
        %v622 = vadd.s32 %v612, %v616
        %v623 = vadd.s32 %v615, %v621
        %vm624 = vc.u32 %v622, %v618
        %v625 = vsel %vm624, 1, 0
        %v626 = vadd.s32 %v622, %v618
        %v627 = vadd.s32 %v623, %v625
        %v628 = vadd.s32 %v627, %v617
        %v629 = vadd.s32 %v628, %v619
        %v630 = vmul.u32 %v585, %v576
        %v631 = vadd.s32 %v607, %v626
        %vm632 = vc.u32 %v607, %v626
        %v633 = vadd.s32 %v629, 1
        %v634 = vsel %vm632, %v633, %v629
        %v635 = vadd.s32 %v630, %v634
        %v636 = vadd.s32 %v635, 536870912
        %v637 = vshrl.u32 %v636, 30
        %v638 = vshll.u32 %v637, 30
        %v639 = vsub.s32 %v635, %v638
        %vm640 = vcmp.lt.s32.totalorder %v639, 0
        %v641 = vsub.s32 0, %v639
        %v642 = vsel %vm640, %v641, %v639
        %v643 = vclz %v642
        %v644 = vsub.s32 %v643, 2
        %vm645 = vcmp.gt.s32.totalorder 0, %v644
        %v646 = vsel %vm645, 0, %v644
        %v647 = vsub.s32 32, %v646
        %v648 = vshll.u32 %v639, %v646
        %v649 = vshrl.u32 %v631, %v647
        %v650 = vor.u32 %v648, %v649
        %v651 = vsub.s32 4294967266, %v646
        %v652 = vadd.s32 %v651, 127
        %v653 = vshll.u32 %v652, 23
        %v654 = vor.u32 4788187, %v653
        %v655 = vand.u32 2147483647, %v654
        %v657 = vcvt.s32.f32 %v650
        %v658 = vmul.f32 %v657, %v655
        %v659 = vxor.u32 %v658, 2147483648
        %v660 = vsel %vm539, %v659, %v658
        %v661 = vsub.s32 4, %v637
        %v662 = vsel %vm539, %v661, %v637
        %v663 = vsel %vm538, %v533, %v660
        %v664 = vsel %vm538, 0, %v662
        %v665 = vmul.f32 %v663, %v663
        %v666 = vmul.f32 %v665, -0.001358992
        %v667 = vadd.f32 %v666, 0.041655596
        %v668 = vmul.f32 %v665, %v667
        %v669 = vadd.f32 %v668, -0.4999988
        %v670 = vmul.f32 %v665, %v669
        %v671 = vadd.f32 1.0, %v670
        %v672 = vmul.f32 %v663, %v663
        %v673 = vmul.f32 %v672, -0.00019511016
        %v674 = vadd.f32 %v673, 0.008332121
        %v675 = vmul.f32 %v672, %v674
        %v676 = vadd.f32 %v675, -0.16666654
        %v677 = vmul.f32 %v672, %v676
        %v678 = vadd.f32 %v677, 1.0
        %v679 = vmul.f32 %v678, %v663
        %vm680 = vweird.f32 %v533
        %v681 = vand.u32 %v664, 3
        %vm682 = vcmp.lt.s32.totalorder %v681, 2
        %vm683 = vcmp.eq.s32.totalorder %v681, 0
        %v684 = vxor.u32 %v679, 2147483648
        %v685 = vsel %vm683, %v671, %v684
        %vm686 = vcmp.eq.s32.totalorder %v681, 2
        %v687 = vxor.u32 %v671, 2147483648
        %v688 = vsel %vm686, %v687, %v679
        %v689 = vsel %vm682, %v685, %v688
        %v690 = vsel %vm680, nan, %v689
        %v691 = vand.u32 2147483647, %v534
        %vm692 = vcmp.le.f32.partialorder %v691, 0.7853982
        %vm693 = vcmp.lt.s32.totalorder %v534, 0
        %v694 = vand.u32 %v534, 2139095040
        %v695 = vshrl.u32 %v694, 23
        %v696 = vsub.s32 %v695, 127
        %v697 = vand.u32 2147483647, %v534
        %v698 = vand.u32 %v697, 8388607
        %v699 = vor.u32 %v698, 8388608
        %v700 = vsub.s32 0, %v699
        %v701 = vadd.s32 %v696, 1
        %vm702 = vcmp.gt.s32.totalorder %v701, 0
        %v703 = vsel %vm702, %v701, 0
        %v704 = vshrl.u32 %v703, 5
        %v705 = vand.u32 %v703, 31
        %v706 = vsub.s32 32, %v705
        %v707 = vshrl.u32 683565275, %v706
        %v708 = vshll.u32 683565275, %v705
        %v709 = vshrl.u32 2475754826, %v706
        %v710 = vor.u32 %v708, %v709
        %v711 = vshll.u32 2475754826, %v705
        %v712 = vshrl.u32 2131351028, %v706
        %v713 = vor.u32 %v711, %v712
        %v714 = vshll.u32 2131351028, %v705
        %v715 = vshrl.u32 2102212464, %v706
        %v716 = vor.u32 %v714, %v715
        %v717 = vshll.u32 2102212464, %v705
        %v718 = vshrl.u32 920167782, %v706
        %v719 = vor.u32 %v717, %v718
        %v720 = vshll.u32 920167782, %v705
        %v721 = vshrl.u32 1326507024, %v706
        %v722 = vor.u32 %v720, %v721
        %vm723 = vcmp.lt.s32.totalorder %v704, 1
        %vm724 = vcmp.lt.s32.totalorder %v704, 2
        %vm725 = vcmp.lt.s32.totalorder %v704, 3
        %vm726 = vcmp.lt.s32.totalorder %v704, 4
        %v727 = vsel %vm723, %v707, %v710
        %v728 = vsel %vm726, %v716, 2102212464
        %v729 = vsel %vm725, %v713, %v728
        %v730 = vsel %vm724, %v727, %v729
        %v731 = vsel %vm723, %v710, %v713
        %v732 = vsel %vm726, %v719, 920167782
        %v733 = vsel %vm725, %v716, %v732
        %v734 = vsel %vm724, %v731, %v733
        %v735 = vsel %vm723, %v713, %v716
        %v736 = vsel %vm726, %v722, 1326507024
        %v737 = vsel %vm725, %v719, %v736
        %v738 = vsel %vm724, %v735, %v737
        %v739 = vshll.u32 %v699, 8
        %v740 = vand.u32 %v739, 65535
        %v741 = vshrl.u32 %v739, 16
        %v742 = vand.u32 %v738, 65535
        %v743 = vshrl.u32 %v738, 16
        %v744 = vmul.u32 %v740, %v742
        %v745 = vmul.u32 %v740, %v743
        %v746 = vmul.u32 %v741, %v742
        %v747 = vmul.u32 %v741, %v743
        %v748 = vshll.u32 %v745, 16
        %v749 = vshrl.u32 %v745, 16
        %v750 = vshll.u32 %v746, 16
        %v751 = vshrl.u32 %v746, 16
        %vm752 = vc.u32 %v744, %v748
        %v753 = vsel %vm752, 1, 0
        %v754 = vadd.s32 %v744, %v748
        %v755 = vadd.s32 %v747, %v753
        %vm756 = vc.u32 %v754, %v750
        %v757 = vsel %vm756, 1, 0
        %v758 = vadd.s32 %v754, %v750
        %v759 = vadd.s32 %v755, %v757
        %v760 = vadd.s32 %v759, %v749
        %v761 = vadd.s32 %v760, %v751
        %v762 = vand.u32 %v739, 65535
        %v763 = vshrl.u32 %v739, 16
        %v764 = vand.u32 %v734, 65535
        %v765 = vshrl.u32 %v734, 16
        %v766 = vmul.u32 %v762, %v764
        %v767 = vmul.u32 %v762, %v765
        %v768 = vmul.u32 %v763, %v764
        %v769 = vmul.u32 %v763, %v765
        %v770 = vshll.u32 %v767, 16
        %v771 = vshrl.u32 %v767, 16
        %v772 = vshll.u32 %v768, 16
        %v773 = vshrl.u32 %v768, 16
        %vm774 = vc.u32 %v766, %v770
        %v775 = vsel %vm774, 1, 0
        %v776 = vadd.s32 %v766, %v770
        %v777 = vadd.s32 %v769, %v775
        %vm778 = vc.u32 %v776, %v772
        %v779 = vsel %vm778, 1, 0
        %v780 = vadd.s32 %v776, %v772
        %v781 = vadd.s32 %v777, %v779
        %v782 = vadd.s32 %v781, %v771
        %v783 = vadd.s32 %v782, %v773
        %v784 = vmul.u32 %v739, %v730
        %v785 = vadd.s32 %v761, %v780
        %vm786 = vc.u32 %v761, %v780
        %v787 = vadd.s32 %v783, 1
        %v788 = vsel %vm786, %v787, %v783
        %v789 = vadd.s32 %v784, %v788
        %v790 = vadd.s32 %v789, 536870912
        %v791 = vshrl.u32 %v790, 30
        %v792 = vshll.u32 %v791, 30
        %v793 = vsub.s32 %v789, %v792
        %vm794 = vcmp.lt.s32.totalorder %v793, 0
        %v795 = vsub.s32 0, %v793
        %v796 = vsel %vm794, %v795, %v793
        %v797 = vclz %v796
        %v798 = vsub.s32 %v797, 2
        %vm799 = vcmp.gt.s32.totalorder 0, %v798
        %v800 = vsel %vm799, 0, %v798
        %v801 = vsub.s32 32, %v800
        %v802 = vshll.u32 %v793, %v800
        %v803 = vshrl.u32 %v785, %v801
        %v804 = vor.u32 %v802, %v803
        %v805 = vsub.s32 4294967266, %v800
        %v806 = vadd.s32 %v805, 127
        %v807 = vshll.u32 %v806, 23
        %v808 = vor.u32 4788187, %v807
        %v809 = vand.u32 2147483647, %v808
        %v811 = vcvt.s32.f32 %v804
        %v812 = vmul.f32 %v811, %v809
        %v813 = vxor.u32 %v812, 2147483648
        %v814 = vsel %vm693, %v813, %v812
        %v815 = vsub.s32 4, %v791
        %v816 = vsel %vm693, %v815, %v791
        %v817 = vsel %vm692, %v534, %v814
        %v818 = vsel %vm692, 0, %v816
        %v819 = vmul.f32 %v817, %v817
        %v820 = vmul.f32 %v819, -0.001358992
        %v821 = vadd.f32 %v820, 0.041655596
        %v822 = vmul.f32 %v819, %v821
        %v823 = vadd.f32 %v822, -0.4999988
        %v824 = vmul.f32 %v819, %v823
        %v825 = vadd.f32 1.0, %v824
        %v826 = vmul.f32 %v817, %v817
        %v827 = vmul.f32 %v826, -0.00019511016
        %v828 = vadd.f32 %v827, 0.008332121
        %v829 = vmul.f32 %v826, %v828
        %v830 = vadd.f32 %v829, -0.16666654
        %v831 = vmul.f32 %v826, %v830
        %v832 = vadd.f32 %v831, 1.0
        %v833 = vmul.f32 %v832, %v817
        %vm834 = vweird.f32 %v534
        %v835 = vand.u32 %v818, 3
        %vm836 = vcmp.lt.s32.totalorder %v835, 2
        %vm837 = vcmp.eq.s32.totalorder %v835, 0
        %v838 = vxor.u32 %v833, 2147483648
        %v839 = vsel %vm837, %v825, %v838
        %vm840 = vcmp.eq.s32.totalorder %v835, 2
        %v841 = vxor.u32 %v825, 2147483648
        %v842 = vsel %vm840, %v841, %v833
        %v843 = vsel %vm836, %v839, %v842
        %v844 = vsel %vm834, nan, %v843
        %v845 = vand.u32 2147483647, %v535
        %vm846 = vcmp.le.f32.partialorder %v845, 0.7853982
        %vm847 = vcmp.lt.s32.totalorder %v535, 0
        %v848 = vand.u32 %v535, 2139095040
        %v849 = vshrl.u32 %v848, 23
        %v850 = vsub.s32 %v849, 127
        %v851 = vand.u32 2147483647, %v535
        %v852 = vand.u32 %v851, 8388607
        %v853 = vor.u32 %v852, 8388608
        %v854 = vsub.s32 0, %v853
        %v855 = vadd.s32 %v850, 1
        %vm856 = vcmp.gt.s32.totalorder %v855, 0
        %v857 = vsel %vm856, %v855, 0
        %v858 = vshrl.u32 %v857, 5
        %v859 = vand.u32 %v857, 31
        %v860 = vsub.s32 32, %v859
        %v861 = vshrl.u32 683565275, %v860
        %v862 = vshll.u32 683565275, %v859
        %v863 = vshrl.u32 2475754826, %v860
        %v864 = vor.u32 %v862, %v863
        %v865 = vshll.u32 2475754826, %v859
        %v866 = vshrl.u32 2131351028, %v860
        %v867 = vor.u32 %v865, %v866
        %v868 = vshll.u32 2131351028, %v859
        %v869 = vshrl.u32 2102212464, %v860
        %v870 = vor.u32 %v868, %v869
        %v871 = vshll.u32 2102212464, %v859
        %v872 = vshrl.u32 920167782, %v860
        %v873 = vor.u32 %v871, %v872
        %v874 = vshll.u32 920167782, %v859
        %v875 = vshrl.u32 1326507024, %v860
        %v876 = vor.u32 %v874, %v875
        %vm877 = vcmp.lt.s32.totalorder %v858, 1
        %vm878 = vcmp.lt.s32.totalorder %v858, 2
        %vm879 = vcmp.lt.s32.totalorder %v858, 3
        %vm880 = vcmp.lt.s32.totalorder %v858, 4
        %v881 = vsel %vm877, %v861, %v864
        %v882 = vsel %vm880, %v870, 2102212464
        %v883 = vsel %vm879, %v867, %v882
        %v884 = vsel %vm878, %v881, %v883
        %v885 = vsel %vm877, %v864, %v867
        %v886 = vsel %vm880, %v873, 920167782
        %v887 = vsel %vm879, %v870, %v886
        %v888 = vsel %vm878, %v885, %v887
        %v889 = vsel %vm877, %v867, %v870
        %v890 = vsel %vm880, %v876, 1326507024
        %v891 = vsel %vm879, %v873, %v890
        %v892 = vsel %vm878, %v889, %v891
        %v893 = vshll.u32 %v853, 8
        %v894 = vand.u32 %v893, 65535
        %v895 = vshrl.u32 %v893, 16
        %v896 = vand.u32 %v892, 65535
        %v897 = vshrl.u32 %v892, 16
        %v898 = vmul.u32 %v894, %v896
        %v899 = vmul.u32 %v894, %v897
        %v900 = vmul.u32 %v895, %v896
        %v901 = vmul.u32 %v895, %v897
        %v902 = vshll.u32 %v899, 16
        %v903 = vshrl.u32 %v899, 16
        %v904 = vshll.u32 %v900, 16
        %v905 = vshrl.u32 %v900, 16
        %vm906 = vc.u32 %v898, %v902
        %v907 = vsel %vm906, 1, 0
        %v908 = vadd.s32 %v898, %v902
        %v909 = vadd.s32 %v901, %v907
        %vm910 = vc.u32 %v908, %v904
        %v911 = vsel %vm910, 1, 0
        %v912 = vadd.s32 %v908, %v904
        %v913 = vadd.s32 %v909, %v911
        %v914 = vadd.s32 %v913, %v903
        %v915 = vadd.s32 %v914, %v905
        %v916 = vand.u32 %v893, 65535
        %v917 = vshrl.u32 %v893, 16
        %v918 = vand.u32 %v888, 65535
        %v919 = vshrl.u32 %v888, 16
        %v920 = vmul.u32 %v916, %v918
        %v921 = vmul.u32 %v916, %v919
        %v922 = vmul.u32 %v917, %v918
        %v923 = vmul.u32 %v917, %v919
        %v924 = vshll.u32 %v921, 16
        %v925 = vshrl.u32 %v921, 16
        %v926 = vshll.u32 %v922, 16
        %v927 = vshrl.u32 %v922, 16
        %vm928 = vc.u32 %v920, %v924
        %v929 = vsel %vm928, 1, 0
        %v930 = vadd.s32 %v920, %v924
        %v931 = vadd.s32 %v923, %v929
        %vm932 = vc.u32 %v930, %v926
        %v933 = vsel %vm932, 1, 0
        %v934 = vadd.s32 %v930, %v926
        %v935 = vadd.s32 %v931, %v933
        %v936 = vadd.s32 %v935, %v925
        %v937 = vadd.s32 %v936, %v927
        %v938 = vmul.u32 %v893, %v884
        %v939 = vadd.s32 %v915, %v934
        %vm940 = vc.u32 %v915, %v934
        %v941 = vadd.s32 %v937, 1
        %v942 = vsel %vm940, %v941, %v937
        %v943 = vadd.s32 %v938, %v942
        %v944 = vadd.s32 %v943, 536870912
        %v945 = vshrl.u32 %v944, 30
        %v946 = vshll.u32 %v945, 30
        %v947 = vsub.s32 %v943, %v946
        %vm948 = vcmp.lt.s32.totalorder %v947, 0
        %v949 = vsub.s32 0, %v947
        %v950 = vsel %vm948, %v949, %v947
        %v951 = vclz %v950
        %v952 = vsub.s32 %v951, 2
        %vm953 = vcmp.gt.s32.totalorder 0, %v952
        %v954 = vsel %vm953, 0, %v952
        %v955 = vsub.s32 32, %v954
        %v956 = vshll.u32 %v947, %v954
        %v957 = vshrl.u32 %v939, %v955
        %v958 = vor.u32 %v956, %v957
        %v959 = vsub.s32 4294967266, %v954
        %v960 = vadd.s32 %v959, 127
        %v961 = vshll.u32 %v960, 23
        %v962 = vor.u32 4788187, %v961
        %v963 = vand.u32 2147483647, %v962
        %v965 = vcvt.s32.f32 %v958
        %v966 = vmul.f32 %v965, %v963
        %v967 = vxor.u32 %v966, 2147483648
        %v968 = vsel %vm847, %v967, %v966
        %v969 = vsub.s32 4, %v945
        %v970 = vsel %vm847, %v969, %v945
        %v971 = vsel %vm846, %v535, %v968
        %v972 = vsel %vm846, 0, %v970
        %v973 = vmul.f32 %v971, %v971
        %v974 = vmul.f32 %v973, -0.001358992
        %v975 = vadd.f32 %v974, 0.041655596
        %v976 = vmul.f32 %v973, %v975
        %v977 = vadd.f32 %v976, -0.4999988
        %v978 = vmul.f32 %v973, %v977
        %v979 = vadd.f32 1.0, %v978
        %v980 = vmul.f32 %v971, %v971
        %v981 = vmul.f32 %v980, -0.00019511016
        %v982 = vadd.f32 %v981, 0.008332121
        %v983 = vmul.f32 %v980, %v982
        %v984 = vadd.f32 %v983, -0.16666654
        %v985 = vmul.f32 %v980, %v984
        %v986 = vadd.f32 %v985, 1.0
        %v987 = vmul.f32 %v986, %v971
        %vm988 = vweird.f32 %v535
        %v989 = vand.u32 %v972, 3
        %vm990 = vcmp.lt.s32.totalorder %v989, 2
        %vm991 = vcmp.eq.s32.totalorder %v989, 0
        %v992 = vxor.u32 %v987, 2147483648
        %v993 = vsel %vm991, %v979, %v992
        %vm994 = vcmp.eq.s32.totalorder %v989, 2
        %v995 = vxor.u32 %v979, 2147483648
        %v996 = vsel %vm994, %v995, %v987
        %v997 = vsel %vm990, %v993, %v996
        %v998 = vsel %vm988, nan, %v997
        %v999 = vand.u32 2147483647, %v536
        %vm1000 = vcmp.le.f32.partialorder %v999, 0.7853982
        %vm1001 = vcmp.lt.s32.totalorder %v536, 0
        %v1002 = vand.u32 %v536, 2139095040
        %v1003 = vshrl.u32 %v1002, 23
        %v1004 = vsub.s32 %v1003, 127
        %v1005 = vand.u32 2147483647, %v536
        %v1006 = vand.u32 %v1005, 8388607
        %v1007 = vor.u32 %v1006, 8388608
        %v1008 = vsub.s32 0, %v1007
        %v1009 = vadd.s32 %v1004, 1
        %vm1010 = vcmp.gt.s32.totalorder %v1009, 0
        %v1011 = vsel %vm1010, %v1009, 0
        %v1012 = vshrl.u32 %v1011, 5
        %v1013 = vand.u32 %v1011, 31
        %v1014 = vsub.s32 32, %v1013
        %v1015 = vshrl.u32 683565275, %v1014
        %v1016 = vshll.u32 683565275, %v1013
        %v1017 = vshrl.u32 2475754826, %v1014
        %v1018 = vor.u32 %v1016, %v1017
        %v1019 = vshll.u32 2475754826, %v1013
        %v1020 = vshrl.u32 2131351028, %v1014
        %v1021 = vor.u32 %v1019, %v1020
        %v1022 = vshll.u32 2131351028, %v1013
        %v1023 = vshrl.u32 2102212464, %v1014
        %v1024 = vor.u32 %v1022, %v1023
        %v1025 = vshll.u32 2102212464, %v1013
        %v1026 = vshrl.u32 920167782, %v1014
        %v1027 = vor.u32 %v1025, %v1026
        %v1028 = vshll.u32 920167782, %v1013
        %v1029 = vshrl.u32 1326507024, %v1014
        %v1030 = vor.u32 %v1028, %v1029
        %vm1031 = vcmp.lt.s32.totalorder %v1012, 1
        %vm1032 = vcmp.lt.s32.totalorder %v1012, 2
        %vm1033 = vcmp.lt.s32.totalorder %v1012, 3
        %vm1034 = vcmp.lt.s32.totalorder %v1012, 4
        %v1035 = vsel %vm1031, %v1015, %v1018
        %v1036 = vsel %vm1034, %v1024, 2102212464
        %v1037 = vsel %vm1033, %v1021, %v1036
        %v1038 = vsel %vm1032, %v1035, %v1037
        %v1039 = vsel %vm1031, %v1018, %v1021
        %v1040 = vsel %vm1034, %v1027, 920167782
        %v1041 = vsel %vm1033, %v1024, %v1040
        %v1042 = vsel %vm1032, %v1039, %v1041
        %v1043 = vsel %vm1031, %v1021, %v1024
        %v1044 = vsel %vm1034, %v1030, 1326507024
        %v1045 = vsel %vm1033, %v1027, %v1044
        %v1046 = vsel %vm1032, %v1043, %v1045
        %v1047 = vshll.u32 %v1007, 8
        %v1048 = vand.u32 %v1047, 65535
        %v1049 = vshrl.u32 %v1047, 16
        %v1050 = vand.u32 %v1046, 65535
        %v1051 = vshrl.u32 %v1046, 16
        %v1052 = vmul.u32 %v1048, %v1050
        %v1053 = vmul.u32 %v1048, %v1051
        %v1054 = vmul.u32 %v1049, %v1050
        %v1055 = vmul.u32 %v1049, %v1051
        %v1056 = vshll.u32 %v1053, 16
        %v1057 = vshrl.u32 %v1053, 16
        %v1058 = vshll.u32 %v1054, 16
        %v1059 = vshrl.u32 %v1054, 16
        %vm1060 = vc.u32 %v1052, %v1056
        %v1061 = vsel %vm1060, 1, 0
        %v1062 = vadd.s32 %v1052, %v1056
        %v1063 = vadd.s32 %v1055, %v1061
        %vm1064 = vc.u32 %v1062, %v1058
        %v1065 = vsel %vm1064, 1, 0
        %v1066 = vadd.s32 %v1062, %v1058
        %v1067 = vadd.s32 %v1063, %v1065
        %v1068 = vadd.s32 %v1067, %v1057
        %v1069 = vadd.s32 %v1068, %v1059
        %v1070 = vand.u32 %v1047, 65535
        %v1071 = vshrl.u32 %v1047, 16
        %v1072 = vand.u32 %v1042, 65535
        %v1073 = vshrl.u32 %v1042, 16
        %v1074 = vmul.u32 %v1070, %v1072
        %v1075 = vmul.u32 %v1070, %v1073
        %v1076 = vmul.u32 %v1071, %v1072
        %v1077 = vmul.u32 %v1071, %v1073
        %v1078 = vshll.u32 %v1075, 16
        %v1079 = vshrl.u32 %v1075, 16
        %v1080 = vshll.u32 %v1076, 16
        %v1081 = vshrl.u32 %v1076, 16
        %vm1082 = vc.u32 %v1074, %v1078
        %v1083 = vsel %vm1082, 1, 0
        %v1084 = vadd.s32 %v1074, %v1078
        %v1085 = vadd.s32 %v1077, %v1083
        %vm1086 = vc.u32 %v1084, %v1080
        %v1087 = vsel %vm1086, 1, 0
        %v1088 = vadd.s32 %v1084, %v1080
        %v1089 = vadd.s32 %v1085, %v1087
        %v1090 = vadd.s32 %v1089, %v1079
        %v1091 = vadd.s32 %v1090, %v1081
        %v1092 = vmul.u32 %v1047, %v1038
        %v1093 = vadd.s32 %v1069, %v1088
        %vm1094 = vc.u32 %v1069, %v1088
        %v1095 = vadd.s32 %v1091, 1
        %v1096 = vsel %vm1094, %v1095, %v1091
        %v1097 = vadd.s32 %v1092, %v1096
        %v1098 = vadd.s32 %v1097, 536870912
        %v1099 = vshrl.u32 %v1098, 30
        %v1100 = vshll.u32 %v1099, 30
        %v1101 = vsub.s32 %v1097, %v1100
        %vm1102 = vcmp.lt.s32.totalorder %v1101, 0
        %v1103 = vsub.s32 0, %v1101
        %v1104 = vsel %vm1102, %v1103, %v1101
        %v1105 = vclz %v1104
        %v1106 = vsub.s32 %v1105, 2
        %vm1107 = vcmp.gt.s32.totalorder 0, %v1106
        %v1108 = vsel %vm1107, 0, %v1106
        %v1109 = vsub.s32 32, %v1108
        %v1110 = vshll.u32 %v1101, %v1108
        %v1111 = vshrl.u32 %v1093, %v1109
        %v1112 = vor.u32 %v1110, %v1111
        %v1113 = vsub.s32 4294967266, %v1108
        %v1114 = vadd.s32 %v1113, 127
        %v1115 = vshll.u32 %v1114, 23
        %v1116 = vor.u32 4788187, %v1115
        %v1117 = vand.u32 2147483647, %v1116
        %v1119 = vcvt.s32.f32 %v1112
        %v1120 = vmul.f32 %v1119, %v1117
        %v1121 = vxor.u32 %v1120, 2147483648
        %v1122 = vsel %vm1001, %v1121, %v1120
        %v1123 = vsub.s32 4, %v1099
        %v1124 = vsel %vm1001, %v1123, %v1099
        %v1125 = vsel %vm1000, %v536, %v1122
        %v1126 = vsel %vm1000, 0, %v1124
        %v1127 = vmul.f32 %v1125, %v1125
        %v1128 = vmul.f32 %v1127, -0.001358992
        %v1129 = vadd.f32 %v1128, 0.041655596
        %v1130 = vmul.f32 %v1127, %v1129
        %v1131 = vadd.f32 %v1130, -0.4999988
        %v1132 = vmul.f32 %v1127, %v1131
        %v1133 = vadd.f32 1.0, %v1132
        %v1134 = vmul.f32 %v1125, %v1125
        %v1135 = vmul.f32 %v1134, -0.00019511016
        %v1136 = vadd.f32 %v1135, 0.008332121
        %v1137 = vmul.f32 %v1134, %v1136
        %v1138 = vadd.f32 %v1137, -0.16666654
        %v1139 = vmul.f32 %v1134, %v1138
        %v1140 = vadd.f32 %v1139, 1.0
        %v1141 = vmul.f32 %v1140, %v1125
        %vm1142 = vweird.f32 %v536
        %v1143 = vand.u32 %v1126, 3
        %vm1144 = vcmp.lt.s32.totalorder %v1143, 2
        %vm1145 = vcmp.eq.s32.totalorder %v1143, 0
        %v1146 = vxor.u32 %v1141, 2147483648
        %v1147 = vsel %vm1145, %v1133, %v1146
        %vm1148 = vcmp.eq.s32.totalorder %v1143, 2
        %v1149 = vxor.u32 %v1133, 2147483648
        %v1150 = vsel %vm1148, %v1149, %v1141
        %v1151 = vsel %vm1144, %v1147, %v1150
        %v1152 = vsel %vm1142, nan, %v1151
        %v1153 = vadd.f32 %v690, 1.0
        %v1154 = vadd.f32 %v844, 1.0
        %v1155 = vadd.f32 %v998, 1.0
        %v1156 = vadd.f32 %v1152, 1.0
        %v1157 = vmul.f32 %v1153, 0.5
        %v1158 = vmul.f32 %v1154, 0.5
        %v1159 = vmul.f32 %v1155, 0.5
        %v1160 = vmul.f32 %v1156, 0.5
        %vm1161 = vcmp.lt.f32.partialorder %v529, 5.0
        %vm1162 = vcmp.lt.f32.partialorder %v530, 5.0
        %vm1163 = vcmp.lt.f32.partialorder %v531, 5.0
        %vm1164 = vcmp.lt.f32.partialorder %v532, 5.0
        %v1165 = vsel %vm1161, %v1157, 0.0
        %v1166 = vsel %vm1162, %v1158, 0.0
        %v1167 = vsel %vm1163, %v1159, 0.0
        %v1168 = vsel %vm1164, %v1160, 0.0
        %1170 = vset.pattern.permute.xlu0 3
        %1171 = vperm.xlu0 %1170, %v1165
        %v1172 = vpop.permute.xlu0 %1171
        %1175 = vset.pattern.permute.xlu0 3
        %1176 = vperm.xlu0 %1175, %v1166
        %v1177 = vpop.permute.xlu0 %1176
        %1180 = vset.pattern.permute.xlu0 3
        %1181 = vperm.xlu0 %1180, %v1167
        %v1182 = vpop.permute.xlu0 %1181
        %1185 = vset.pattern.permute.xlu0 3
        %1186 = vperm.xlu0 %1185, %v1168
        %v1187 = vpop.permute.xlu0 %1186
        %v1189 = vmul.f32 %v525, %v1172
        %v1190 = vmul.f32 %v526, %v1177
        %v1191 = vmul.f32 %v527, %v1182
        %v1192 = vmul.f32 %v528, %v1187
        %v1193 = vmul.f32 %v381, %v389
        %v1194 = vmul.f32 %v383, %v390
        %v1195 = vmul.f32 %v385, %v391
        %v1196 = vmul.f32 %v387, %v392
        %1201 = vrot.lane.b32.xlu0 %v1189, 32
        %v1202 = vpop.permute.xlu0 %1201
        %1203 = vrot.lane.b32.xlu0 %v1190, 32
        %v1204 = vpop.permute.xlu0 %1203
        %1205 = vrot.lane.b32.xlu0 %v1191, 32
        %v1206 = vpop.permute.xlu0 %1205
        %1207 = vrot.lane.b32.xlu0 %v1192, 32
        %v1208 = vpop.permute.xlu0 %1207
        %v1213 = vmul.f32 %v1193, %v1202
        %v1214 = vmul.f32 %v1194, %v1204
        %v1215 = vmul.f32 %v1195, %v1206
        %v1216 = vmul.f32 %v1196, %v1208
        %1221 = vrot.lane.b32.xlu0 %v1193, 64
        %v1222 = vpop.permute.xlu0 %1221
        %1223 = vrot.lane.b32.xlu0 %v1194, 64
        %v1224 = vpop.permute.xlu0 %1223
        %1225 = vrot.lane.b32.xlu0 %v1195, 64
        %v1226 = vpop.permute.xlu0 %1225
        %1227 = vrot.lane.b32.xlu0 %v1196, 64
        %v1228 = vpop.permute.xlu0 %1227
        %v1233 = vmul.f32 %v382, %v1222
        %v1234 = vmul.f32 %v384, %v1224
        %v1235 = vmul.f32 %v386, %v1226
        %v1236 = vmul.f32 %v388, %v1228
        %1238 = vset.pattern.permute.xlu0 0
        %1239 = vperm.xlu0 %1238, %v529
        %v1240 = vpop.permute.xlu0 %1239
        %1243 = vset.pattern.permute.xlu0 0
        %1244 = vperm.xlu0 %1243, %v530
        %v1245 = vpop.permute.xlu0 %1244
        %1248 = vset.pattern.permute.xlu0 0
        %1249 = vperm.xlu0 %1248, %v531
        %v1250 = vpop.permute.xlu0 %1249
        %1253 = vset.pattern.permute.xlu0 0
        %1254 = vperm.xlu0 %1253, %v532
        %v1255 = vpop.permute.xlu0 %1254
        %v1257 = vmul.f32 %v1193, %v1240
        %v1258 = vmul.f32 %v1194, %v1245
        %v1259 = vmul.f32 %v1195, %v1250
        %v1260 = vmul.f32 %v1196, %v1255
        %1265 = vrot.lane.b32.xlu0 %v1257, 32
        %v1266 = vpop.permute.xlu0 %1265
        %1267 = vrot.lane.b32.xlu0 %v1258, 32
        %v1268 = vpop.permute.xlu0 %1267
        %1269 = vrot.lane.b32.xlu0 %v1259, 32
        %v1270 = vpop.permute.xlu0 %1269
        %1271 = vrot.lane.b32.xlu0 %v1260, 32
        %v1272 = vpop.permute.xlu0 %1271
        %v1277 = vadd.f32 %v1233, %v1266
        %v1278 = vadd.f32 %v1234, %v1268
        %v1279 = vadd.f32 %v1235, %v1270
        %v1280 = vadd.f32 %v1236, %v1272
        %1281 = vrot.lane.b32.xlu0 %v1193, 96
        %v1282 = vpop.permute.xlu0 %1281
        %1283 = vrot.lane.b32.xlu0 %v1194, 96
        %v1284 = vpop.permute.xlu0 %1283
        %1285 = vrot.lane.b32.xlu0 %v1195, 96
        %v1286 = vpop.permute.xlu0 %1285
        %1287 = vrot.lane.b32.xlu0 %v1196, 96
        %v1288 = vpop.permute.xlu0 %1287
        %v1293 = vmul.f32 %v382, %v1282
        %v1294 = vmul.f32 %v384, %v1284
        %v1295 = vmul.f32 %v386, %v1286
        %v1296 = vmul.f32 %v388, %v1288
        %1297 = vset.pattern.permute.xlu0 1
        %1298 = vperm.xlu0 %1297, %v529
        %v1299 = vpop.permute.xlu0 %1298
        %1301 = vset.pattern.permute.xlu0 1
        %1302 = vperm.xlu0 %1301, %v530
        %v1303 = vpop.permute.xlu0 %1302
        %1305 = vset.pattern.permute.xlu0 1
        %1306 = vperm.xlu0 %1305, %v531
        %v1307 = vpop.permute.xlu0 %1306
        %1309 = vset.pattern.permute.xlu0 1
        %1310 = vperm.xlu0 %1309, %v532
        %v1311 = vpop.permute.xlu0 %1310
        %v1313 = vmul.f32 %v1193, %v1299
        %v1314 = vmul.f32 %v1194, %v1303
        %v1315 = vmul.f32 %v1195, %v1307
        %v1316 = vmul.f32 %v1196, %v1311
        %1321 = vrot.lane.b32.xlu0 %v1313, 64
        %v1322 = vpop.permute.xlu0 %1321
        %1323 = vrot.lane.b32.xlu0 %v1314, 64
        %v1324 = vpop.permute.xlu0 %1323
        %1325 = vrot.lane.b32.xlu0 %v1315, 64
        %v1326 = vpop.permute.xlu0 %1325
        %1327 = vrot.lane.b32.xlu0 %v1316, 64
        %v1328 = vpop.permute.xlu0 %1327
        %v1333 = vadd.f32 %v1293, %v1322
        %v1334 = vadd.f32 %v1294, %v1324
        %v1335 = vadd.f32 %v1295, %v1326
        %v1336 = vadd.f32 %v1296, %v1328
        %v1337 = vmul.f32 %v382, %v1193
        %v1338 = vmul.f32 %v384, %v1194
        %v1339 = vmul.f32 %v386, %v1195
        %v1340 = vmul.f32 %v388, %v1196
        %1341 = vset.pattern.permute.xlu0 2
        %1342 = vperm.xlu0 %1341, %v529
        %v1343 = vpop.permute.xlu0 %1342
        %1345 = vset.pattern.permute.xlu0 2
        %1346 = vperm.xlu0 %1345, %v530
        %v1347 = vpop.permute.xlu0 %1346
        %1349 = vset.pattern.permute.xlu0 2
        %1350 = vperm.xlu0 %1349, %v531
        %v1351 = vpop.permute.xlu0 %1350
        %1353 = vset.pattern.permute.xlu0 2
        %1354 = vperm.xlu0 %1353, %v532
        %v1355 = vpop.permute.xlu0 %1354
        %v1357 = vmul.f32 %v1193, %v1343
        %v1358 = vmul.f32 %v1194, %v1347
        %v1359 = vmul.f32 %v1195, %v1351
        %v1360 = vmul.f32 %v1196, %v1355
        %1365 = vrot.lane.b32.xlu0 %v1357, 96
        %v1366 = vpop.permute.xlu0 %1365
        %1367 = vrot.lane.b32.xlu0 %v1358, 96
        %v1368 = vpop.permute.xlu0 %1367
        %1369 = vrot.lane.b32.xlu0 %v1359, 96
        %v1370 = vpop.permute.xlu0 %1369
        %1371 = vrot.lane.b32.xlu0 %v1360, 96
        %v1372 = vpop.permute.xlu0 %1371
        %v1377 = vadd.f32 %v1337, %v1366
        %v1378 = vadd.f32 %v1338, %v1368
        %v1379 = vadd.f32 %v1339, %v1370
        %v1380 = vadd.f32 %v1340, %v1372
        %1385 = vrot.lane.b32.xlu0 %v1213, 96
        %v1386 = vpop.permute.xlu0 %1385
        %1387 = vrot.lane.b32.xlu0 %v1214, 96
        %v1388 = vpop.permute.xlu0 %1387
        %1389 = vrot.lane.b32.xlu0 %v1215, 96
        %v1390 = vpop.permute.xlu0 %1389
        %1391 = vrot.lane.b32.xlu0 %v1216, 96
        %v1392 = vpop.permute.xlu0 %1391
        %1401 = vrot.lane.b32.xlu0 %v1277, 32
        %v1402 = vpop.permute.xlu0 %1401
        %1403 = vrot.lane.b32.xlu0 %v1278, 32
        %v1404 = vpop.permute.xlu0 %1403
        %1405 = vrot.lane.b32.xlu0 %v1279, 32
        %v1406 = vpop.permute.xlu0 %1405
        %1407 = vrot.lane.b32.xlu0 %v1280, 32
        %v1408 = vpop.permute.xlu0 %1407
        %1417 = vrot.lane.b32.xlu0 %v1333, 32
        %v1418 = vpop.permute.xlu0 %1417
        %1419 = vrot.lane.b32.xlu0 %v1334, 32
        %v1420 = vpop.permute.xlu0 %1419
        %1421 = vrot.lane.b32.xlu0 %v1335, 32
        %v1422 = vpop.permute.xlu0 %1421
        %1423 = vrot.lane.b32.xlu0 %v1336, 32
        %v1424 = vpop.permute.xlu0 %1423
        %1433 = vrot.lane.b32.xlu0 %v1377, 32
        %v1434 = vpop.permute.xlu0 %1433
        %1435 = vrot.lane.b32.xlu0 %v1378, 32
        %v1436 = vpop.permute.xlu0 %1435
        %1437 = vrot.lane.b32.xlu0 %v1379, 32
        %v1438 = vpop.permute.xlu0 %1437
        %1439 = vrot.lane.b32.xlu0 %v1380, 32
        %v1440 = vpop.permute.xlu0 %1439
        %v1445 = vsel %vm423, %v1386, %v1402
        %v1446 = vsel %vm423, %v1388, %v1404
        %v1447 = vsel %vm423, %v1390, %v1406
        %v1448 = vsel %vm423, %v1392, %v1408
        %vm1449 = vcmask 523264
        %v1450 = vsel %vm1449, %v1445, %v1418
        %v1451 = vsel %vm1449, %v1446, %v1420
        %v1452 = vsel %vm1449, %v1447, %v1422
        %v1453 = vsel %vm1449, %v1448, %v1424
        %vm1454 = vcmask 785408
        %v1455 = vsel %vm1454, %v1450, %v1434
        %v1456 = vsel %vm1454, %v1451, %v1436
        %v1457 = vsel %vm1454, %v1452, %v1438
        %v1458 = vsel %vm1454, %v1453, %v1440
        %1459 = vst [vmem:[%s315] sm:$0xff] %v1455
        %1460 = vst [vmem:[%s315 + $0x8] sm:$0xff] %v1456
        %1461 = vst [vmem:[%s315 + $0x10] sm:$0xff] %v1457
        %1462 = vst [vmem:[%s315 + $0x18] sm:$0xff] %v1458
        %s1463 = sand.u32 %s149, 1
        %s1464 = sand.u32 %s149, 1
        %s1465 = smul.addr %s1464, 32
        %s1466 = scalar_lea.vmem [#allocation2], %s1465
        // Predicated region
        $region41: #{model_i_forward.19} parent=39 // pred_check
          %p1467 = pneg %p159
        $region42: #{model_i_forward.19} parent=39 // pred_check_branch
          %1469 = sbr.rel (%p1467) target = $region44
        $region43: #{model_i_forward.19} parent=39 // pred_region
          %s1470 = smul.u32 4, %s16
          %s1471 = ssub.s32 7, %s1470
          %p1472 = scmp.lt.s32.totalorder %s1471, 4
          %s1473 = scalar_select %p1472, %s1471, 4
          %s1474 = smul.u32 8, %s1473
          %p1475 = scmp.ne.s32.totalorder 0, %s1474
          %s1476 = smul.addr %s1470, 8
          %s1477 = scalar_lea.vmem %s5, %s1476
          // Predicated region
          $region45: #{model_i_forward.19} parent=43 // pred_check
            %p1478 = pneg %p1475
          $region46: #{model_i_forward.19} parent=43 // pred_check_branch
            %1480 = sbr.rel (%p1478) target = $region48
          $region47: #{model_i_forward.19} parent=43 // pred_region
            // Predicated region
            $region49: #{model_i_forward.19} parent=47 // pred_check
              _
            $region50: #{model_i_forward.19} parent=47 // pred_check_branch
              %1482 = sbr.rel (0) target = $region52
            $region51: #{model_i_forward.19} parent=47 // pred_region
              // Predicated region
              $region71: #{model_i_forward.19} parent=51 // pred_check
                _
              $region72: #{model_i_forward.19} parent=51 // pred_check_branch
                %1538 = sbr.rel (0) target = $region74
              $region73: #{model_i_forward.19} parent=51 // pred_region
                %s1539 = sshrl.u32 %s1473, 2
                // While loop
                $region75: #{model_i_forward.19} parent=73 // loop_pre_header
                  _
                $region76: #{model_i_forward.19} parent=73 // loop_header
                  %s1541 = sphi 0, %s1543
                  %p1542 = scmp.ge.s32.totalorder %s1541, %s1539
                  %s1546 = sphi 0, %s1559
                  %s1547 = sphi %s1466, %s1562
                  %s1548 = sphi %s1477, %s1563
                $region77: #{model_i_forward.19} parent=73 // loop_header_branch
                  %1545 = sbr.rel (%p1542) target = $region81
                $region78: #{model_i_forward.19} parent=73 // loop_body
                  %v1549 = vld [vmem:[%s1547] sm:$0xff]
                  %1550 = vst [vmem:[%s1548] sm:$0xff] %v1549
                  %v1551 = vld [vmem:[%s1547 + $0x8] sm:$0xff]
                  %1552 = vst [vmem:[%s1548 + $0x8] sm:$0xff] %v1551
                  %v1553 = vld [vmem:[%s1547 + $0x10] sm:$0xff]
                  %1554 = vst [vmem:[%s1548 + $0x10] sm:$0xff] %v1553
                  %v1555 = vld [vmem:[%s1547 + $0x18] sm:$0xff]
                  %1556 = vst [vmem:[%s1548 + $0x18] sm:$0xff] %v1555
                  %s1557 = sadd.s32 1, %s1546
                  %p1558 = scmp.ge.s32.totalorder %s1557, %s1539
                  %s1559 = scalar_select %p1558, 0, %s1557
                  %s1560 = smul.u32 %s1559, 32
                  %s1561 = smul.u32 %s1559, 32
                  %s1562 = scalar_lea.vmem %s1466, %s1560 [#allocation2]
                  %s1563 = scalar_lea.vmem %s1477, %s1561
                $region79: #{model_i_forward.19} parent=73 // loop_footer
                  %s1543 = sadd.s32 %s1541, 1
                $region80: #{model_i_forward.19} parent=73 // loop_footer_branch
                  %1540 = sbr.rel target = $region76
                $region81: #{model_i_forward.19} parent=73 // loop_exit
                  _
                %s1564 = sshrl.u32 %s1473, 2
                %s1565 = sand.u32 %s1473, 3
                %s1566 = smul.u32 %s1564, 4
                %s1567 = smul.u32 8, %s1566
                %s1568 = scalar_lea.vmem %s1466, %s1567 [#allocation2]
                %s1569 = smul.u32 8, %s1566
                %s1570 = scalar_lea.vmem %s1477, %s1569
                // While loop
                $region82: #{model_i_forward.19} parent=73 // loop_pre_header
                  _
                $region83: #{model_i_forward.19} parent=73 // loop_header
                  %s1572 = sphi 0, %s1574
                  %p1573 = scmp.ge.s32.totalorder %s1572, %s1565
                  %s1577 = sphi 0, %s1584
                  %s1578 = sphi %s1568, %s1587
                  %s1579 = sphi %s1570, %s1588
                $region84: #{model_i_forward.19} parent=73 // loop_header_branch
                  %1576 = sbr.rel (%p1573) target = $region88
                $region85: #{model_i_forward.19} parent=73 // loop_body
                  %v1580 = vld [vmem:[%s1578] sm:$0xff]
                  %1581 = vst [vmem:[%s1579] sm:$0xff] %v1580
                  %s1582 = sadd.s32 1, %s1577
                  %p1583 = scmp.ge.s32.totalorder %s1582, %s1565
                  %s1584 = scalar_select %p1583, 0, %s1582
                  %s1585 = smul.u32 %s1584, 8
                  %s1586 = smul.u32 %s1584, 8
                  %s1587 = scalar_lea.vmem %s1568, %s1585 [#allocation2]
                  %s1588 = scalar_lea.vmem %s1570, %s1586
                $region86: #{model_i_forward.19} parent=73 // loop_footer
                  %s1574 = sadd.s32 %s1572, 1
                $region87: #{model_i_forward.19} parent=73 // loop_footer_branch
                  %1571 = sbr.rel target = $region83
                $region88: #{model_i_forward.19} parent=73 // loop_exit
                  _
              $region74: #{model_i_forward.19} parent=51 // pred_fallthru
                _
              // Predicated region
              $region89: #{model_i_forward.19} parent=51 // pred_check
                _
              $region90: #{model_i_forward.19} parent=51 // pred_check_branch
                %1590 = sbr.rel target = $region92
              $region91: #{model_i_forward.19} parent=51 // pred_region
                _
              $region92: #{model_i_forward.19} parent=51 // pred_fallthru
                _
            $region52: #{model_i_forward.19} parent=47 // pred_fallthru
              _
            // Predicated region
            $region53: #{model_i_forward.19} parent=47 // pred_check
              _
            $region54: #{model_i_forward.19} parent=47 // pred_check_branch
              %1484 = sbr.rel target = $region56
            $region55: #{model_i_forward.19} parent=47 // pred_region
              %s1486 = ssub.s32 256, 1
              %s1487 = sshrl.u32 %s1473, 2
              // While loop
              $region57: #{model_i_forward.19} parent=55 // loop_pre_header
                _
              $region58: #{model_i_forward.19} parent=55 // loop_header
                %s1489 = sphi 0, %s1491
                %p1490 = scmp.ge.s32.totalorder %s1489, %s1487
                %s1494 = sphi 0, %s1507
                %s1495 = sphi %s1466, %s1510
                %s1496 = sphi %s1477, %s1511
              $region59: #{model_i_forward.19} parent=55 // loop_header_branch
                %1493 = sbr.rel (%p1490) target = $region63
              $region60: #{model_i_forward.19} parent=55 // loop_body
                %v1497 = vld [vmem:[%s1495] sm:%s1486]
                %1498 = vst [vmem:[%s1496] sm:%s1486] %v1497
                %v1499 = vld [vmem:[%s1495 + $0x8] sm:%s1486]
                %1500 = vst [vmem:[%s1496 + $0x8] sm:%s1486] %v1499
                %v1501 = vld [vmem:[%s1495 + $0x10] sm:%s1486]
                %1502 = vst [vmem:[%s1496 + $0x10] sm:%s1486] %v1501
                %v1503 = vld [vmem:[%s1495 + $0x18] sm:%s1486]
                %1504 = vst [vmem:[%s1496 + $0x18] sm:%s1486] %v1503
                %s1505 = sadd.s32 1, %s1494
                %p1506 = scmp.ge.s32.totalorder %s1505, %s1487
                %s1507 = scalar_select %p1506, 0, %s1505
                %s1508 = smul.u32 %s1507, 32
                %s1509 = smul.u32 %s1507, 32
                %s1510 = scalar_lea.vmem %s1466, %s1508 [#allocation2]
                %s1511 = scalar_lea.vmem %s1477, %s1509
              $region61: #{model_i_forward.19} parent=55 // loop_footer
                %s1491 = sadd.s32 %s1489, 1
              $region62: #{model_i_forward.19} parent=55 // loop_footer_branch
                %1488 = sbr.rel target = $region58
              $region63: #{model_i_forward.19} parent=55 // loop_exit
                _
              %s1512 = sshrl.u32 %s1473, 2
              %s1513 = sand.u32 %s1473, 3
              %s1514 = smul.u32 %s1512, 4
              %s1515 = smul.u32 8, %s1514
              %s1516 = scalar_lea.vmem %s1466, %s1515 [#allocation2]
              %s1517 = smul.u32 8, %s1514
              %s1518 = scalar_lea.vmem %s1477, %s1517
              // While loop
              $region64: #{model_i_forward.19} parent=55 // loop_pre_header
                _
              $region65: #{model_i_forward.19} parent=55 // loop_header
                %s1520 = sphi 0, %s1522
                %p1521 = scmp.ge.s32.totalorder %s1520, %s1513
                %s1525 = sphi 0, %s1532
                %s1526 = sphi %s1516, %s1535
                %s1527 = sphi %s1518, %s1536
              $region66: #{model_i_forward.19} parent=55 // loop_header_branch
                %1524 = sbr.rel (%p1521) target = $region70
              $region67: #{model_i_forward.19} parent=55 // loop_body
                %v1528 = vld [vmem:[%s1526] sm:%s1486]
                %1529 = vst [vmem:[%s1527] sm:%s1486] %v1528
                %s1530 = sadd.s32 1, %s1525
                %p1531 = scmp.ge.s32.totalorder %s1530, %s1513
                %s1532 = scalar_select %p1531, 0, %s1530
                %s1533 = smul.u32 %s1532, 8
                %s1534 = smul.u32 %s1532, 8
                %s1535 = scalar_lea.vmem %s1516, %s1533 [#allocation2]
                %s1536 = scalar_lea.vmem %s1518, %s1534
              $region68: #{model_i_forward.19} parent=55 // loop_footer
                %s1522 = sadd.s32 %s1520, 1
              $region69: #{model_i_forward.19} parent=55 // loop_footer_branch
                %1519 = sbr.rel target = $region65
              $region70: #{model_i_forward.19} parent=55 // loop_exit
                _
            $region56: #{model_i_forward.19} parent=47 // pred_fallthru
              _
          $region48: #{model_i_forward.19} parent=43 // pred_fallthru
            _
          %1591 = vnop
        $region44: #{model_i_forward.19} parent=39 // pred_fallthru
          _
      $region40: #{model_i_forward.19} parent=5 // pred_fallthru
        _
      %p1592 = scmp.le.s32.totalorder 2, %s11
      // Predicated region
      $region93: #{model_i_forward.19} parent=5 // pred_check
        %p1593 = pneg %p1592
      $region94: #{model_i_forward.19} parent=5 // pred_check_branch
        %1595 = sbr.rel (%p1593) target = $region96
      $region95: #{model_i_forward.19} parent=5 // pred_region
        %s1596 = ssub.s32 %s11, 2
        // Predicated region
        $region97: #{model_i_forward.19} parent=95 // pred_check
          %p1597 = pneg %p165
        $region98: #{model_i_forward.19} parent=95 // pred_check_branch
          %1599 = sbr.rel (%p1597) target = $region100
        $region99: #{model_i_forward.19} parent=95 // pred_region
          %s1600 = sand.u32 %s150, 1
          %s1601 = sand.u32 %s150, 1
          %s1602 = smul.addr %s1601, 32
          %s1603 = scalar_lea.vmem [#allocation2], %s1602
        $region100: #{model_i_forward.19} parent=95 // pred_fallthru
          _
      $region96: #{model_i_forward.19} parent=5 // pred_fallthru
        _
    $region6: #{model_i_forward.19} parent=1 // loop_footer
      %s15 = sadd.s32 1, %s11
    $region7: #{model_i_forward.19} parent=1 // loop_footer_branch
      %10 = sbr.rel target = $region3
    $region8: #{model_i_forward.19} parent=1 // loop_exit
      _

// kernel: model_i_forward.20
$region0: #{model_i_forward.20}
  #allocation0 [shape = 'u32[]', space=smem, size = 0x4, offset = 0x4, fixed_abs, tag = 'smem constant byte address 0x4 - core index']
  #allocation1 [shape = 'u32[72,128]{1,0:T(1,128)}', space=vmem, size = 0x9000, scoped, tag = 'internal scratch']
  #allocation2 [shape = 'f32[8,128]{1,0:T(8,128)}', space=vmem, size = 0x1000, scoped, tag = 'scratch operand']
  %s0 = inlined_call_operand.vmem [shape: s32[1,56], index: 0, kind: input, shape index: {}]
  %s1 = inlined_call_operand.vmem [shape: f32[56,128], index: 1, kind: input, shape index: {}]
  %s2 = inlined_call_operand.vmem [shape: f32[8,128], index: 2, kind: output, shape index: {}]
  %s3 = sld [smem:[#allocation0]]
  $region26: #{model_i_forward.20} parent=0
    _
  %s5 = ssub.s32 1, %s3
  %s6 = scalar_select 0, %s5, %s3
  // Predicated region
  $region2: #{model_i_forward.20} parent=0 // pred_check
    _
  $region3: #{model_i_forward.20} parent=0 // pred_check_branch
    %8 = sbr.rel (0) target = $region5
  $region4: #{model_i_forward.20} parent=0 // pred_region
    _
  $region5: #{model_i_forward.20} parent=0 // pred_fallthru
    _
  // Predicated region
  $region6: #{model_i_forward.20} parent=0 // pred_check
    _
  $region7: #{model_i_forward.20} parent=0 // pred_check_branch
    %10 = sbr.rel (0) target = $region9
  $region8: #{model_i_forward.20} parent=0 // pred_region
    _
  $region9: #{model_i_forward.20} parent=0 // pred_fallthru
    _
  %p12 = scmp.eq.s32.totalorder 0, 0
  // Predicated region
  $region10: #{model_i_forward.20} parent=0 // pred_check
    %p13 = pneg %p12
  $region11: #{model_i_forward.20} parent=0 // pred_check_branch
    %15 = sbr.rel (%p13) target = $region13
  $region12: #{model_i_forward.20} parent=0 // pred_region
    %16 = vst [vmem:[#allocation2] sm:$0xff] 0.0
  $region13: #{model_i_forward.20} parent=0 // pred_fallthru
    _
  %s17 = smul.u32 0, 8
  %v18 = vlaneseq
  %v19 = vshrl.u32 %v18, 7
  %v20 = vstv %s17
  %v21 = vadd.s32 %v20, %v19
  %v22 = vld [vmem:[%s0] sm:$0x1]
  %v23 = vperm.slane %v22, 0
  %vm24 = vcmp.eq.s32.totalorder %v21, %v23
  %v25 = vsel %vm24, 1.0, 0.0
  %v26 = vpack.c.bf16 %v25, %v25
  %v27 = vld [vmem:[%s1] sm:$0xff]
  %v28 = vld [vmem:[%s1 + $0x8] sm:$0xff]
  %v29 = vld [vmem:[%s1 + $0x10] sm:$0xff]
  %v30 = vld [vmem:[%s1 + $0x18] sm:$0xff]
  %v31 = vld [vmem:[%s1 + $0x20] sm:$0xff]
  %v32 = vld [vmem:[%s1 + $0x28] sm:$0xff]
  %v33 = vld [vmem:[%s1 + $0x30] sm:$0xff]
  %v34 = vld [vmem:[#allocation2] sm:$0xff]
  %v35 = vpack.c.bf16 %v28, %v27
  %v36 = vpack.c.bf16 %v30, %v29
  %v37 = vpack.c.bf16 %v32, %v31
  %v38 = vpack.c.bf16 %v33, %v33
  %vm39 = vcmask 457728
  %v41 = vsel %vm39, %v26, 0
  %vm43 = vcmask 1043456
  %v45 = vsel %vm43, %v38, 0
  %47 = vmatpush.bf16.msra.mxu0 0
  %48 = vmatpush.bf16.msra.mxu0 0
  %49 = vmatpush.bf16.msra.mxu0 0
  %50 = vmatpush.bf16.msra.mxu0 0
  %51 = vmatpush.bf16.msra.mxu0 %v45
  %52 = vmatpush.bf16.msra.mxu0 %v37
  %53 = vmatpush.bf16.msra.mxu0 %v36
  %54 = vmatpush.bf16.msra.mxu0 %v35
  %55 = vmatmul.bf16.gmra.mxu0 %v41
  %v56 = vpop.f32.mrf.mxu0
  %v57 = vadd.f32 0.0, %v56
  %v58 = vpop.f32.mrf.mxu0
  %59 = vdwg.mxu0
  %v60 = vadd.f32 %v34, %v57
  %61 = vst [vmem:[#allocation2] sm:$0xff] %v60
  // Predicated region
  $region14: #{model_i_forward.20} parent=0 // pred_check
    %p62 = pneg %p12
  $region15: #{model_i_forward.20} parent=0 // pred_check_branch
    %64 = sbr.rel (%p62) target = $region17
  $region16: #{model_i_forward.20} parent=0 // pred_region
    %v65 = vld [vmem:[#allocation2] sm:$0xff]
    %66 = vst [vmem:[%s2] sm:$0xff] %v65
  $region17: #{model_i_forward.20} parent=0 // pred_fallthru
    _
  // Predicated region
  $region18: #{model_i_forward.20} parent=0 // pred_check
    _
  $region19: #{model_i_forward.20} parent=0 // pred_check_branch
    %68 = sbr.rel (0) target = $region21
  $region20: #{model_i_forward.20} parent=0 // pred_region
    _
  $region21: #{model_i_forward.20} parent=0 // pred_fallthru
    _
  // Predicated region
  $region22: #{model_i_forward.20} parent=0 // pred_check
    _
  $region23: #{model_i_forward.20} parent=0 // pred_check_branch
    %70 = sbr.rel (0) target = $region25
  $region24: #{model_i_forward.20} parent=0 // pred_region
    _
  $region25: #{model_i_forward.20} parent=0 // pred_fallthru
    _

// kernel: model_i_forward.21
$region0: #{model_i_forward.21}
  #allocation0 [shape = 'u32[]', space=smem, size = 0x4, offset = 0x4, fixed_abs, tag = 'smem constant byte address 0x4 - core index']
  #allocation1 [shape = 'u32[72,128]{1,0:T(1,128)}', space=vmem, size = 0x9000, scoped, tag = 'internal scratch']
  %s0 = inlined_call_operand.vmem [shape: f32[8,128], index: 0, kind: input, shape index: {}]
  %s1 = inlined_call_operand.vmem [shape: f32[8,128], index: 1, kind: input, shape index: {}]
  %s2 = inlined_call_operand.vmem [shape: bf16[32,96], index: 2, kind: input, shape index: {}]
  %s3 = inlined_call_operand.vmem [shape: f32[1,96], index: 3, kind: input, shape index: {}]
  %s4 = inlined_call_operand.vmem [shape: bf16[32,96], index: 4, kind: input, shape index: {}]
  %s5 = inlined_call_operand.vmem [shape: f32[8,128], index: 5, kind: output, shape index: {}]
  %s6 = sld [smem:[#allocation0]]
  $region30: #{model_i_forward.21} parent=0
    _
  %s8 = ssub.s32 1, %s6
  %s9 = scalar_select 0, %s8, %s6
  // Predicated region
  $region2: #{model_i_forward.21} parent=0 // pred_check
    _
  $region3: #{model_i_forward.21} parent=0 // pred_check_branch
    %11 = sbr.rel (0) target = $region5
  $region4: #{model_i_forward.21} parent=0 // pred_region
    _
  $region5: #{model_i_forward.21} parent=0 // pred_fallthru
    _
  // Predicated region
  $region6: #{model_i_forward.21} parent=0 // pred_check
    _
  $region7: #{model_i_forward.21} parent=0 // pred_check_branch
    %13 = sbr.rel (0) target = $region9
  $region8: #{model_i_forward.21} parent=0 // pred_region
    _
  $region9: #{model_i_forward.21} parent=0 // pred_fallthru
    _
  // Predicated region
  $region10: #{model_i_forward.21} parent=0 // pred_check
    _
  $region11: #{model_i_forward.21} parent=0 // pred_check_branch
    %15 = sbr.rel (0) target = $region13
  $region12: #{model_i_forward.21} parent=0 // pred_region
    _
  $region13: #{model_i_forward.21} parent=0 // pred_fallthru
    _
  // Predicated region
  $region14: #{model_i_forward.21} parent=0 // pred_check
    _
  $region15: #{model_i_forward.21} parent=0 // pred_check_branch
    %17 = sbr.rel (0) target = $region17
  $region16: #{model_i_forward.21} parent=0 // pred_region
    _
  $region17: #{model_i_forward.21} parent=0 // pred_fallthru
    _
  // Predicated region
  $region18: #{model_i_forward.21} parent=0 // pred_check
    _
  $region19: #{model_i_forward.21} parent=0 // pred_check_branch
    %19 = sbr.rel (0) target = $region21
  $region20: #{model_i_forward.21} parent=0 // pred_region
    _
  $region21: #{model_i_forward.21} parent=0 // pred_fallthru
    _
  %v21 = vld [vmem:[%s0] sm:$0xff]
  %v22 = vld [vmem:[%s1] sm:$0xff]
  %v23 = vpack.c.bf16 %v21, %v21
  %v24 = vld [vmem:[%s2] sm:$0xf]
  %v25 = vld [vmem:[%s2 + $0x4] sm:$0xf]
  %v26 = vld [vmem:[%s2 + $0x8] sm:$0xf]
  %v27 = vld [vmem:[%s2 + $0xc] sm:$0xf]
  %v28 = vld [vmem:[%s3] sm:$0x1]
  %v30 = vperm.slane %v28, 0
  %v36 = vunpack.c.l.b16 %v24
  %v37 = vunpack.c.l.b16 %v25
  %v38 = vunpack.c.l.b16 %v26
  %v39 = vunpack.c.l.b16 %v27
  %v40 = vpack.c.b16 %v37, %v36
  %v41 = vpack.c.b16 %v39, %v38
  %vm44 = vcmask 261120
  %v46 = vsel %vm44, %v23, 0
  %48 = vmatpush.bf16.msra.mxu0 0
  %49 = vmatpush.bf16.msra.mxu0 0
  %50 = vmatpush.bf16.msra.mxu0 0
  %51 = vmatpush.bf16.msra.mxu0 0
  %52 = vmatpush.bf16.msra.mxu0 0
  %53 = vmatpush.bf16.msra.mxu0 0
  %54 = vmatpush.bf16.msra.mxu0 %v41
  %55 = vmatpush.bf16.msra.mxu0 %v40
  %56 = vmatmul.bf16.gmra.mxu0 %v46
  %v57 = vpop.f32.mrf.mxu0
  %v58 = vadd.f32 %v30, %v57
  %v59 = vpop.f32.mrf.mxu0
  %60 = vdwg.mxu0
  %v61 = vpack.c.bf16 %v22, %v22
  %v62 = vld [vmem:[%s4] sm:$0xf]
  %v63 = vld [vmem:[%s4 + $0x4] sm:$0xf]
  %v64 = vld [vmem:[%s4 + $0x8] sm:$0xf]
  %v65 = vld [vmem:[%s4 + $0xc] sm:$0xf]
  %67 = vrot.lane.b32.xlu0 %v61, 96
  %v68 = vpop.permute.xlu0 %67
  %v73 = vunpack.c.l.b16 %v62
  %v74 = vunpack.c.l.b16 %v63
  %v75 = vunpack.c.l.b16 %v64
  %v76 = vunpack.c.l.b16 %v65
  %v77 = vpack.c.b16 %v74, %v73
  %v78 = vpack.c.b16 %v76, %v75
  %v82 = vsel %vm44, %v68, 0
  %84 = vmatpush.bf16.msra.mxu0 0
  %85 = vmatpush.bf16.msra.mxu0 0
  %86 = vmatpush.bf16.msra.mxu0 0
  %87 = vmatpush.bf16.msra.mxu0 0
  %88 = vmatpush.bf16.msra.mxu0 0
  %89 = vmatpush.bf16.msra.mxu0 0
  %90 = vmatpush.bf16.msra.mxu0 %v78
  %91 = vmatpush.bf16.msra.mxu0 %v77
  %92 = vmatmul.bf16.gmra.mxu0 %v82
  %v93 = vpop.f32.mrf.mxu0
  %v94 = vadd.f32 0.0, %v93
  %v95 = vpop.f32.mrf.mxu0
  %96 = vdwg.mxu0
  %98 = vrot.lane.b32.xlu0 %v94, 96
  %v99 = vpop.permute.xlu0 %98
  %v101 = vmul.f32 %v94, %v99
  %v102 = vadd.f32 %v101, 0.0
  %104 = vrot.lane.b32.xlu0 %v58, 64
  %v105 = vpop.permute.xlu0 %104
  %v107 = vmul.f32 %v94, %v105
  %109 = vrot.lane.b32.xlu0 %v107, 96
  %v110 = vpop.permute.xlu0 %109
  %v112 = vadd.f32 %v22, %v110
  %v113 = vadd.f32 %v112, %v21
  %114 = vrot.lane.b32.xlu0 %v61, 64
  %v115 = vpop.permute.xlu0 %114
  %v117 = vsel %vm44, %v115, 0
  %119 = vmatpush.bf16.msra.mxu0 0
  %120 = vmatpush.bf16.msra.mxu0 0
  %121 = vmatpush.bf16.msra.mxu0 0
  %122 = vmatpush.bf16.msra.mxu0 0
  %123 = vmatpush.bf16.msra.mxu0 0
  %124 = vmatpush.bf16.msra.mxu0 0
  %125 = vmatpush.bf16.msra.mxu0 %v78
  %126 = vmatpush.bf16.msra.mxu0 %v77
  %127 = vmatmul.bf16.gmra.mxu0 %v117
  %v128 = vpop.f32.mrf.mxu0
  %v129 = vadd.f32 0.0, %v128
  %v130 = vpop.f32.mrf.mxu0
  %131 = vdwg.mxu0
  %133 = vrot.lane.b32.xlu0 %v129, 96
  %v134 = vpop.permute.xlu0 %133
  %v136 = vmul.f32 %v129, %v134
  %v137 = vadd.f32 %v102, %v136
  %v138 = vmul.f32 %v129, %v105
  %v139 = vadd.f32 %v22, %v138
  %v140 = vadd.f32 %v139, %v21
  %141 = vrot.lane.b32.xlu0 %v61, 32
  %v142 = vpop.permute.xlu0 %141
  %v144 = vsel %vm44, %v142, 0
  %146 = vmatpush.bf16.msra.mxu0 0
  %147 = vmatpush.bf16.msra.mxu0 0
  %148 = vmatpush.bf16.msra.mxu0 0
  %149 = vmatpush.bf16.msra.mxu0 0
  %150 = vmatpush.bf16.msra.mxu0 0
  %151 = vmatpush.bf16.msra.mxu0 0
  %152 = vmatpush.bf16.msra.mxu0 %v78
  %153 = vmatpush.bf16.msra.mxu0 %v77
  %154 = vmatmul.bf16.gmra.mxu0 %v144
  %v155 = vpop.f32.mrf.mxu0
  %v156 = vadd.f32 0.0, %v155
  %v157 = vpop.f32.mrf.mxu0
  %158 = vdwg.mxu0
  %160 = vrot.lane.b32.xlu0 %v156, 96
  %v161 = vpop.permute.xlu0 %160
  %v163 = vmul.f32 %v156, %v161
  %v164 = vadd.f32 %v137, %v163
  %v165 = vmul.f32 %v156, %v105
  %167 = vrot.lane.b32.xlu0 %v165, 32
  %v168 = vpop.permute.xlu0 %167
  %v170 = vadd.f32 %v22, %v168
  %v171 = vadd.f32 %v170, %v21
  %172 = vrot.lane.b32.xlu0 %v58, 96
  %v173 = vpop.permute.xlu0 %172
  %v175 = vmul.f32 %v164, %v173
  %v176 = vadd.f32 %v22, %v175
  %v177 = vadd.f32 %v176, %v105
  %v178 = vsel %vm44, %v177, %v113
  %vm179 = vcmask 523264
  %v180 = vsel %vm179, %v178, %v140
  %vm181 = vcmask 785408
  %v182 = vsel %vm181, %v180, %v171
  %183 = vst [vmem:[%s5] sm:$0xff] %v182
  // Predicated region
  $region22: #{model_i_forward.21} parent=0 // pred_check
    _
  $region23: #{model_i_forward.21} parent=0 // pred_check_branch
    %185 = sbr.rel (0) target = $region25
  $region24: #{model_i_forward.21} parent=0 // pred_region
    _
  $region25: #{model_i_forward.21} parent=0 // pred_fallthru
    _
  // Predicated region
  $region26: #{model_i_forward.21} parent=0 // pred_check
    _
  $region27: #{model_i_forward.21} parent=0 // pred_check_branch
    %187 = sbr.rel (0) target = $region29
  $region28: #{model_i_forward.21} parent=0 // pred_region
    _
  $region29: #{model_i_forward.21} parent=0 // pred_fallthru
    _

// kernel: model_i_forward.27
$region0: #{model_i_forward.27}
  #allocation0 [shape = 'u32[]', space=smem, size = 0x4, offset = 0x4, fixed_abs, tag = 'smem constant byte address 0x4 - core index']
  #allocation1 [shape = 'u32[72,128]{1,0:T(1,128)}', space=vmem, size = 0x9000, scoped, tag = 'internal scratch']
  %s0 = inlined_call_operand.vmem [shape: f32[8,128], index: 0, kind: input, shape index: {}]
  %s1 = inlined_call_operand.vmem [shape: f32[1,32], index: 1, kind: input, shape index: {}]
  %s2 = inlined_call_operand.vmem [shape: f32[1,32], index: 2, kind: input, shape index: {}]
  %s3 = inlined_call_operand.vmem [shape: bf16[32,8], index: 3, kind: input, shape index: {}]
  %s4 = inlined_call_operand.vmem [shape: f32[1,8], index: 4, kind: input, shape index: {}]
  %s5 = inlined_call_operand.hbm [shape: f32[8,8], index: 5, kind: output, shape index: {}]
  %s6 = sld [smem:[#allocation0]]
  $region30: #{model_i_forward.27} parent=0
    _
  %s8 = ssub.s32 1, %s6
  %s9 = scalar_select 0, %s8, %s6
  $region1: #{model_i_forward.27} parent=0
    #allocation2 [shape = 'u8[4096]{0}', space=vmem, size = 0x1000, scoped, tag = 'output window, operand 0, single buffered']
    #allocation3 [shape = 's32[1]{0}', space=sflag, size = 0x4, scoped, tag = 'scoped memory for model_i_forward.27']
    %10 = vsyncpa [#allocation3], 0
    // Predicated region
    $region2: #{model_i_forward.27} parent=1 // pred_check
      _
    $region3: #{model_i_forward.27} parent=1 // pred_check_branch
      %12 = sbr.rel (0) target = $region5
    $region4: #{model_i_forward.27} parent=1 // pred_region
      _
    $region5: #{model_i_forward.27} parent=1 // pred_fallthru
      _
    // Predicated region
    $region6: #{model_i_forward.27} parent=1 // pred_check
      _
    $region7: #{model_i_forward.27} parent=1 // pred_check_branch
      %14 = sbr.rel (0) target = $region9
    $region8: #{model_i_forward.27} parent=1 // pred_region
      _
    $region9: #{model_i_forward.27} parent=1 // pred_fallthru
      _
    // Predicated region
    $region10: #{model_i_forward.27} parent=1 // pred_check
      _
    $region11: #{model_i_forward.27} parent=1 // pred_check_branch
      %16 = sbr.rel (0) target = $region13
    $region12: #{model_i_forward.27} parent=1 // pred_region
      _
    $region13: #{model_i_forward.27} parent=1 // pred_fallthru
      _
    // Predicated region
    $region14: #{model_i_forward.27} parent=1 // pred_check
      _
    $region15: #{model_i_forward.27} parent=1 // pred_check_branch
      %18 = sbr.rel (0) target = $region17
    $region16: #{model_i_forward.27} parent=1 // pred_region
      _
    $region17: #{model_i_forward.27} parent=1 // pred_fallthru
      _
    // Predicated region
    $region18: #{model_i_forward.27} parent=1 // pred_check
      _
    $region19: #{model_i_forward.27} parent=1 // pred_check_branch
      %20 = sbr.rel (0) target = $region21
    $region20: #{model_i_forward.27} parent=1 // pred_region
      _
    $region21: #{model_i_forward.27} parent=1 // pred_fallthru
      _
    %v22 = vld [vmem:[%s0] sm:$0xff]
    %vm23 = vcmask 261120
    %v24 = vsel %vm23, %v22, 0.0
    %25 = vadd.xlane.f32.xlu0 %v24
    %v26 = vpop.xlane.xlu0 %25
    %v27 = vrcp.pop 32.0
    %v28 = vmul.f32 32.0, %v27
    %v29 = vsub.f32 1.0, %v28
    %v30 = vmul.f32 %v27, %v29
    %v31 = vadd.f32 %v27, %v30
    %vm32 = vweird.f32 %v27
    %v33 = vsel %vm32, %v27, %v31
    %v34 = vmul.f32 %v26, %v33
    %v35 = vsub.f32 %v22, %v34
    %v36 = vmul.f32 %v35, %v35
    %v37 = vsel %vm23, %v36, 0.0
    %38 = vadd.xlane.f32.xlu0 %v37
    %v39 = vpop.xlane.xlu0 %38
    %v40 = vmul.f32 %v39, %v33
    %v41 = vadd.f32 %v40, 1e-05
    %v42 = vrsqrt.pop %v41
    %v43 = vmul.f32 %v42, %v41
    %v44 = vmul.f32 %v43, %v42
    %v45 = vmul.f32 0.5, %v44
    %v46 = vsub.f32 1.5, %v45
    %v47 = vmul.f32 %v42, %v46
    %vm48 = vweird.f32 %v41
    %vm49 = vweird.f32 %v42
    %vm50 = vmor %vm48, %vm49
    %v51 = vsel %vm50, %v42, %v47
    %v52 = vmul.f32 %v35, %v51
    %v53 = vld [vmem:[%s1] sm:$0x1]
    %v55 = vperm.slane %v53, 0
    %v57 = vmul.f32 %v52, %v55
    %v58 = vld [vmem:[%s2] sm:$0x1]
    %v60 = vperm.slane %v58, 0
    %v62 = vadd.f32 %v57, %v60
    %v63 = vpack.c.bf16 %v62, %v62
    %v64 = vld [vmem:[%s3] sm:$0xf]
    %v65 = vld [vmem:[%s3 + $0x4] sm:$0xf]
    %v66 = vld [vmem:[%s3 + $0x8] sm:$0xf]
    %v67 = vld [vmem:[%s3 + $0xc] sm:$0xf]
    %v68 = vld [vmem:[%s4] sm:$0x1]
    %v70 = vperm.slane %v68, 0
    %v76 = vunpack.c.l.b16 %v64
    %v77 = vunpack.c.l.b16 %v65
    %v78 = vunpack.c.l.b16 %v66
    %v79 = vunpack.c.l.b16 %v67
    %v80 = vpack.c.b16 %v77, %v76
    %v81 = vpack.c.b16 %v79, %v78
    %v85 = vsel %vm23, %v63, 0
    %87 = vmatpush.bf16.msra.mxu0 0
    %88 = vmatpush.bf16.msra.mxu0 0
    %89 = vmatpush.bf16.msra.mxu0 0
    %90 = vmatpush.bf16.msra.mxu0 0
    %91 = vmatpush.bf16.msra.mxu0 0
    %92 = vmatpush.bf16.msra.mxu0 0
    %93 = vmatpush.bf16.msra.mxu0 %v81
    %94 = vmatpush.bf16.msra.mxu0 %v80
    %95 = vmatmul.bf16.gmra.mxu0 %v85
    %v96 = vpop.f32.mrf.mxu0
    %v97 = vadd.f32 %v70, %v96
    %v98 = vpop.f32.mrf.mxu0
    %99 = vdwg.mxu0
    %vm100 = vcmask 64512
    %101 = vst.msk [vmem:[#allocation2] sm:$0xff] %vm100, %v97
    // Predicated region
    $region22: #{model_i_forward.27} parent=1 // pred_check
      _
    $region23: #{model_i_forward.27} parent=1 // pred_check_branch
      %103 = sbr.rel (0) target = $region25
    $region24: #{model_i_forward.27} parent=1 // pred_region
      %105 = vsyncadd [#allocation3], 0
      %s107 = sshll.u32 [#allocation2], 4
      %s108 = int_to_ptr.vmem [resolvable:$true] %s107
      %s109 = sshll.u32 %s5, 4
      %s110 = int_to_ptr.hbm [resolvable:$true] %s109
      %112 = dma.vmem_to_hbm [thread:$0]  %s108, 128, %s110, [#allocation3]
    $region25: #{model_i_forward.27} parent=1 // pred_fallthru
      _
    // Predicated region
    $region26: #{model_i_forward.27} parent=1 // pred_check
      _
    $region27: #{model_i_forward.27} parent=1 // pred_check_branch
      %114 = sbr.rel (0) target = $region29
    $region28: #{model_i_forward.27} parent=1 // pred_region
      %116 = dma.done [#allocation3], 128
    $region29: #{model_i_forward.27} parent=1 // pred_fallthru
      _
    %117 = vsyncpa [#allocation3], 1

</llo_original>
